<compile_context>
chip_gen: v6e
topology: v6e:2x2x1
jax: 0.10.0
libtpu: 0.0.40
codegen_flags: <defaults>
</compile_context>

<pallas_src>
import functools
import math

import jax
import jax.numpy as jnp
from jax import lax
from jax.experimental import pallas as pl
from jax.experimental.pallas import tpu as pltpu


def _bottleneck_kernel(x_ref, w1_ref, b1_ref, w2_ref, b2_ref, w3_ref, b3_ref,
                       o_ref, y1pad_ref, col_ref, *, H, W):
    """One image per grid step: x_ref is the (H*W, C_in) tile of that image."""
    HW = H * W
    c_mid = y1pad_ref.shape[2]

    x = x_ref[...]                                        # (HW, C_in) f32

    # ---- conv1 (1x1), BN1 scale folded into w1, + bias + ReLU --------------
    y1 = jnp.dot(x.astype(jnp.bfloat16), w1_ref[...],
                 preferred_element_type=jnp.float32)      # (HW, c_mid) f32
    y1 = jnp.maximum(y1 + b1_ref[...], 0.0)

    # ---- stage y1 into a zero-halo (H+2, W+2, c_mid) scratch ---------------
    # The halo is built by concatenation (one store of the padded tile), so
    # 3x3 taps below are pure static slices -- no runtime boundary masks.
    y1_hw = y1.reshape(H, W, c_mid)
    zrow = jnp.zeros((1, W + 2, c_mid), jnp.float32)
    zcol = jnp.zeros((H, 1, c_mid), jnp.float32)
    y1pad_ref[...] = jnp.concatenate(
        [zrow, jnp.concatenate([zcol, y1_hw, zcol], axis=1), zrow], axis=0)

    # ---- conv2 (3x3, stride 1, pad 1) via im2col + one K=9*c_mid matmul ----
    for kh in range(3):
        for kw in range(3):
            t = kh * 3 + kw
            col_ref[:, :, t * c_mid:(t + 1) * c_mid] = (
                y1pad_ref[kh:kh + H, kw:kw + W, :].astype(jnp.bfloat16))
    patches = col_ref[...].reshape(HW, 9 * c_mid)          # bf16, K = 9*c_mid
    y2 = jnp.dot(patches, w2_ref[...],
                 preferred_element_type=jnp.float32)       # (HW, c_mid) f32
    y2 = jnp.maximum(y2 + b2_ref[...], 0.0)

    # ---- conv3 (1x1), BN3 scale folded, + bias + identity residual + ReLU --
    y3 = jnp.dot(y2.astype(jnp.bfloat16), w3_ref[...],
                 preferred_element_type=jnp.float32)       # (HW, c_out) f32
    o_ref[...] = jnp.maximum(y3 + b3_ref[...] + x, 0.0)


def bottleneck_forward_nhwc(x_nhwc, params):
    """NHWC-native entry point (preferred: keep NHWC across the network)."""
    N, H, W, C = x_nhwc.shape
    c_mid = params["w1"].shape[1]
    c_out = params["w3"].shape[1]
    assert C == c_out, \
        "identity residual (downsample=None) requires inplanes == planes*4"
    HW = H * W
    x3d = x_nhwc.reshape(N, HW, C).astype(jnp.float32)

    kernel = functools.partial(_bottleneck_kernel, H=H, W=W)
    out = pl.pallas_call(
        kernel,
        out_shape=jax.ShapeDtypeStruct((N, HW, c_out), jnp.float32),
        grid=(N,),
        in_specs=[
            # activations: one image tile per grid step (pipelined DMA)
            pl.BlockSpec((None, HW, C), lambda n: (n, 0, 0)),
            # weights / biases: constant index maps -> VMEM resident
            pl.BlockSpec((C, c_mid), lambda n: (0, 0)),
            pl.BlockSpec((1, c_mid), lambda n: (0, 0)),
            pl.BlockSpec((9 * c_mid, c_mid), lambda n: (0, 0)),
            pl.BlockSpec((1, c_mid), lambda n: (0, 0)),
            pl.BlockSpec((c_mid, c_out), lambda n: (0, 0)),
            pl.BlockSpec((1, c_out), lambda n: (0, 0)),
        ],
        out_specs=pl.BlockSpec((None, HW, c_out), lambda n: (n, 0, 0)),
        scratch_shapes=[
            pltpu.VMEM((H + 2, W + 2, c_mid), jnp.float32),   # zero-halo y1
            pltpu.VMEM((H, W, 9 * c_mid), jnp.bfloat16),      # im2col patches
        ],
        compiler_params=pltpu.CompilerParams(
            dimension_semantics=("parallel",),                # megacore on v7x
            vmem_limit_bytes=32 * 1024 * 1024,
        ),
    )(x3d,
      params["w1"], params["b1"],
      params["w2"], params["b2"],
      params["w3"], params["b3"])

    return out.reshape(N, H, W, c_out)


def bottleneck_forward(x_nchw, params):
    """PyTorch-layout (NCHW) wrapper around the NHWC kernel."""
    N, C, H, W = x_nchw.shape
    out_nhwc = bottleneck_forward_nhwc(jnp.transpose(x_nchw, (0, 2, 3, 1)), params)
    return jnp.transpose(out_nhwc, (0, 3, 1, 2))


def init_params(key, inplanes, planes, eps=1e-5):
    expansion = 4
    ks = jax.random.split(key, 15)

    # PyTorch-layout (OIHW) conv weights, deterministic synthetic init.
    w1_oihw = jax.random.normal(ks[0], (planes, inplanes, 1, 1), jnp.float32) / math.sqrt(inplanes)
    w2_oihw = jax.random.normal(ks[1], (planes, planes, 3, 3), jnp.float32) / math.sqrt(planes * 9)
    w3_oihw = jax.random.normal(ks[2], (planes * expansion, planes, 1, 1), jnp.float32) / math.sqrt(planes)

    def bn_fold(kg, kb, km, kv, c):
        gamma = 0.5 + jax.random.uniform(kg, (c,), jnp.float32)
        beta = 0.1 * jax.random.normal(kb, (c,), jnp.float32)
        mean = 0.1 * jax.random.normal(km, (c,), jnp.float32)
        var = 0.5 + jax.random.uniform(kv, (c,), jnp.float32)
        scale = gamma / jnp.sqrt(var + eps)
        bias = beta - mean * scale
        return scale, bias

    s1, b1 = bn_fold(ks[3], ks[4], ks[5], ks[6], planes)
    s2, b2 = bn_fold(ks[7], ks[8], ks[9], ks[10], planes)
    s3, b3 = bn_fold(ks[11], ks[12], ks[13], ks[14], planes * expansion)

    # Kernel-layout weights with the BN *scale* folded into the conv weight
    # columns (one-time constant fold in f32), then cast to bf16 for the MXU.
    w1 = w1_oihw[:, :, 0, 0].T * s1[None, :]                              # (Cin, P)
    w2 = (jnp.transpose(w2_oihw, (2, 3, 1, 0)).reshape(9 * planes, planes)
          * s2[None, :])                                                  # (9P, P), rows = (kh,kw,cin)
    w3 = w3_oihw[:, :, 0, 0].T * s3[None, :]                              # (P, 4P)

    return {
        # kernel-layout weights / biases
        "w1": w1.astype(jnp.bfloat16), "b1": b1.reshape(1, -1),
        "w2": w2.astype(jnp.bfloat16), "b2": b2.reshape(1, -1),
        "w3": w3.astype(jnp.bfloat16), "b3": b3.reshape(1, -1),
        # reference-layout copies (unfused, f32)
        "w1_oihw": w1_oihw, "w2_oihw": w2_oihw, "w3_oihw": w3_oihw,
        "s1r": s1, "b1r": b1, "s2r": s2, "b2r": b2, "s3r": s3, "b3r": b3,
    }


def reference_forward(x, p):
    hi = lax.Precision.HIGHEST

    def conv(x, w, padding):
        return lax.conv_general_dilated(
            x, w, (1, 1), padding,
            dimension_numbers=("NCHW", "OIHW", "NCHW"), precision=hi)

    def bn(x, s, b):
        return x * s[None, :, None, None] + b[None, :, None, None]

    y = jax.nn.relu(bn(conv(x, p["w1_oihw"], "VALID"), p["s1r"], p["b1r"]))
    y = jax.nn.relu(bn(conv(y, p["w2_oihw"], ((1, 1), (1, 1))), p["s2r"], p["b2r"]))
    y = bn(conv(y, p["w3_oihw"], "VALID"), p["s3r"], p["b3r"])
    return jax.nn.relu(y + x)


if __name__ == "__main__":
    planes = 4
    inplanes = planes * 4        # downsample=None -> identity residual
    N, H, W = 2, 16, 16

    key = jax.random.PRNGKey(0)
    kx, kp = jax.random.split(key)
    x = jax.random.normal(kx, (N, inplanes, H, W), jnp.float32)
    params = init_params(kp, inplanes, planes)

    out = jax.block_until_ready(bottleneck_forward(x, params))
    ref = jax.block_until_ready(reference_forward(x, params))

    assert out.shape == (N, planes * 4, H, W), out.shape
    # bf16 matmul path vs f32 HIGHEST reference -> use a relative tolerance.
    err = float(jnp.max(jnp.abs(out - ref)))
    ref_scale = float(jnp.max(jnp.abs(ref))) + 1.0
    assert err / ref_scale < 3e-2, f"relative error too large: {err} / {ref_scale}"
    print("KERNEL_OK")
</pallas_src>

<mosaic_0001>
module attributes {stable_mosaic.version = 11 : i64} {
  func.func @_bottleneck_kernel(%arg0: i32, %arg1: memref<1x256x16xf32, #tpu.memory_space<vmem>>, %arg2: memref<16x4xbf16, #tpu.memory_space<vmem>>, %arg3: memref<1x4xf32, #tpu.memory_space<vmem>>, %arg4: memref<36x4xbf16, #tpu.memory_space<vmem>>, %arg5: memref<1x4xf32, #tpu.memory_space<vmem>>, %arg6: memref<4x16xbf16, #tpu.memory_space<vmem>>, %arg7: memref<1x16xf32, #tpu.memory_space<vmem>>, %arg8: memref<1x256x16xf32, #tpu.memory_space<vmem>>, %arg9: memref<18x18x4xf32, #tpu.memory_space<vmem>>, %arg10: memref<16x16x36xbf16, #tpu.memory_space<vmem>>) attributes {dimension_semantics = [#tpu.dimension_semantics<parallel>], iteration_bounds = array<i64: 2>, scalar_prefetch = 0 : i64, scratch_operands = 2 : i64, tpu.core_type = #tpu.core_type<tc>, window_params = [{transform_indices = @transform_0, window_bounds = array<i64: 1, 256, 16>}, {pipeline_mode = #tpu.pipeline_mode<synchronous>, transform_indices = @transform_1, window_bounds = array<i64: 16, 4>}, {pipeline_mode = #tpu.pipeline_mode<synchronous>, transform_indices = @transform_2, window_bounds = array<i64: 1, 4>}, {pipeline_mode = #tpu.pipeline_mode<synchronous>, transform_indices = @transform_3, window_bounds = array<i64: 36, 4>}, {pipeline_mode = #tpu.pipeline_mode<synchronous>, transform_indices = @transform_4, window_bounds = array<i64: 1, 4>}, {pipeline_mode = #tpu.pipeline_mode<synchronous>, transform_indices = @transform_5, window_bounds = array<i64: 4, 16>}, {pipeline_mode = #tpu.pipeline_mode<synchronous>, transform_indices = @transform_6, window_bounds = array<i64: 1, 16>}, {transform_indices = @transform_7, window_bounds = array<i64: 1, 256, 16>}]} {
    %c0 = arith.constant 0 : index
    %c0_0 = arith.constant 0 : index
    %c0_1 = arith.constant 0 : index
    %0 = vector.load %arg1[%c0, %c0_0, %c0_1] : memref<1x256x16xf32, #tpu.memory_space<vmem>>, vector<1x256x16xf32>
    %1 = vector.shape_cast %0 : vector<1x256x16xf32> to vector<256x16xf32>
    %2 = arith.truncf %1 : vector<256x16xf32> to vector<256x16xbf16>
    %c0_2 = arith.constant 0 : index
    %c0_3 = arith.constant 0 : index
    %3 = vector.load %arg2[%c0_2, %c0_3] : memref<16x4xbf16, #tpu.memory_space<vmem>>, vector<16x4xbf16>
    %cst = arith.constant dense<0.000000e+00> : vector<256x4xf32>
    %4 = tpu.matmul %2, %3, %cst {dimension_numbers = #tpu.dot_dimension_numbers<[1], [0], [0], [1], [0, 0, 1, 1], [], []>} : vector<256x16xbf16>, vector<16x4xbf16>, vector<256x4xf32> -> vector<256x4xf32>
    %c0_4 = arith.constant 0 : index
    %c0_5 = arith.constant 0 : index
    %5 = vector.load %arg3[%c0_4, %c0_5] : memref<1x4xf32, #tpu.memory_space<vmem>>, vector<1x4xf32>
    %6 = vector.broadcast %5 : vector<1x4xf32> to vector<256x4xf32>
    %7 = arith.addf %4, %6 : vector<256x4xf32>
    %cst_6 = arith.constant 0.000000e+00 : f32
    %8 = vector.broadcast %cst_6 : f32 to vector<256x4xf32>
    %9 = arith.maximumf %7, %8 : vector<256x4xf32>
    %10 = vector.shape_cast %9 : vector<256x4xf32> to vector<16x16x4xf32>
    %cst_7 = arith.constant 0.000000e+00 : f32
    %11 = vector.broadcast %cst_7 : f32 to vector<1x18x4xf32>
    %cst_8 = arith.constant 0.000000e+00 : f32
    %12 = vector.broadcast %cst_8 : f32 to vector<16x1x4xf32>
    %13 = tpu.concatenate %12, %10, %12 in 1 : vector<16x1x4xf32>, vector<16x16x4xf32>, vector<16x1x4xf32> -> vector<16x18x4xf32>
    %14 = tpu.concatenate %11, %13, %11 in 0 : vector<1x18x4xf32>, vector<16x18x4xf32>, vector<1x18x4xf32> -> vector<18x18x4xf32>
    %c0_9 = arith.constant 0 : index
    %c0_10 = arith.constant 0 : index
    %c0_11 = arith.constant 0 : index
    %15 = vector.load %arg9[%c0_9, %c0_10, %c0_11] : memref<18x18x4xf32, #tpu.memory_space<vmem>>, vector<18x18x4xf32>
    tpu.vector_store %arg9[%c0_9, %c0_10, %c0_11], %14 {strides = array<i32>} : memref<18x18x4xf32, #tpu.memory_space<vmem>>, vector<18x18x4xf32>,
    %c0_12 = arith.constant 0 : index
    %c0_13 = arith.constant 0 : index
    %c0_14 = arith.constant 0 : index
    %16 = vector.load %arg9[%c0_12, %c0_13, %c0_14] : memref<18x18x4xf32, #tpu.memory_space<vmem>>, vector<16x16x4xf32>
    %17 = arith.truncf %16 : vector<16x16x4xf32> to vector<16x16x4xbf16>
    %c0_15 = arith.constant 0 : index
    %c0_16 = arith.constant 0 : index
    %c0_17 = arith.constant 0 : index
    %18 = vector.load %arg10[%c0_15, %c0_16, %c0_17] : memref<16x16x36xbf16, #tpu.memory_space<vmem>>, vector<16x16x4xbf16>
    tpu.vector_store %arg10[%c0_15, %c0_16, %c0_17], %17 {strides = array<i32>} : memref<16x16x36xbf16, #tpu.memory_space<vmem>>, vector<16x16x4xbf16>,
    %c0_18 = arith.constant 0 : index
    %c1 = arith.constant 1 : index
    %c0_19 = arith.constant 0 : index
    %19 = vector.load %arg9[%c0_18, %c1, %c0_19] : memref<18x18x4xf32, #tpu.memory_space<vmem>>, vector<16x16x4xf32>
    %20 = arith.truncf %19 : vector<16x16x4xf32> to vector<16x16x4xbf16>
    %c0_20 = arith.constant 0 : index
    %c0_21 = arith.constant 0 : index
    %c4 = arith.constant 4 : index
    %21 = vector.load %arg10[%c0_20, %c0_21, %c4] : memref<16x16x36xbf16, #tpu.memory_space<vmem>>, vector<16x16x4xbf16>
    tpu.vector_store %arg10[%c0_20, %c0_21, %c4], %20 {strides = array<i32>} : memref<16x16x36xbf16, #tpu.memory_space<vmem>>, vector<16x16x4xbf16>,
    %c0_22 = arith.constant 0 : index
    %c2 = arith.constant 2 : index
    %c0_23 = arith.constant 0 : index
    %22 = vector.load %arg9[%c0_22, %c2, %c0_23] : memref<18x18x4xf32, #tpu.memory_space<vmem>>, vector<16x16x4xf32>
    %23 = arith.truncf %22 : vector<16x16x4xf32> to vector<16x16x4xbf16>
    %c0_24 = arith.constant 0 : index
    %c0_25 = arith.constant 0 : index
    %c8 = arith.constant 8 : index
    %24 = vector.load %arg10[%c0_24, %c0_25, %c8] : memref<16x16x36xbf16, #tpu.memory_space<vmem>>, vector<16x16x4xbf16>
    tpu.vector_store %arg10[%c0_24, %c0_25, %c8], %23 {strides = array<i32>} : memref<16x16x36xbf16, #tpu.memory_space<vmem>>, vector<16x16x4xbf16>,
    %c1_26 = arith.constant 1 : index
    %c0_27 = arith.constant 0 : index
    %c0_28 = arith.constant 0 : index
    %25 = vector.load %arg9[%c1_26, %c0_27, %c0_28] : memref<18x18x4xf32, #tpu.memory_space<vmem>>, vector<16x16x4xf32>
    %26 = arith.truncf %25 : vector<16x16x4xf32> to vector<16x16x4xbf16>
    %c0_29 = arith.constant 0 : index
    %c0_30 = arith.constant 0 : index
    %c12 = arith.constant 12 : index
    %27 = vector.load %arg10[%c0_29, %c0_30, %c12] : memref<16x16x36xbf16, #tpu.memory_space<vmem>>, vector<16x16x4xbf16>
    tpu.vector_store %arg10[%c0_29, %c0_30, %c12], %26 {strides = array<i32>} : memref<16x16x36xbf16, #tpu.memory_space<vmem>>, vector<16x16x4xbf16>,
    %c1_31 = arith.constant 1 : index
    %c1_32 = arith.constant 1 : index
    %c0_33 = arith.constant 0 : index
    %28 = vector.load %arg9[%c1_31, %c1_32, %c0_33] : memref<18x18x4xf32, #tpu.memory_space<vmem>>, vector<16x16x4xf32>
    %29 = arith.truncf %28 : vector<16x16x4xf32> to vector<16x16x4xbf16>
    %c0_34 = arith.constant 0 : index
    %c0_35 = arith.constant 0 : index
    %c16 = arith.constant 16 : index
    %30 = vector.load %arg10[%c0_34, %c0_35, %c16] : memref<16x16x36xbf16, #tpu.memory_space<vmem>>, vector<16x16x4xbf16>
    tpu.vector_store %arg10[%c0_34, %c0_35, %c16], %29 {strides = array<i32>} : memref<16x16x36xbf16, #tpu.memory_space<vmem>>, vector<16x16x4xbf16>,
    %c1_36 = arith.constant 1 : index
    %c2_37 = arith.constant 2 : index
    %c0_38 = arith.constant 0 : index
    %31 = vector.load %arg9[%c1_36, %c2_37, %c0_38] : memref<18x18x4xf32, #tpu.memory_space<vmem>>, vector<16x16x4xf32>
    %32 = arith.truncf %31 : vector<16x16x4xf32> to vector<16x16x4xbf16>
    %c0_39 = arith.constant 0 : index
    %c0_40 = arith.constant 0 : index
    %c20 = arith.constant 20 : index
    %33 = vector.load %arg10[%c0_39, %c0_40, %c20] : memref<16x16x36xbf16, #tpu.memory_space<vmem>>, vector<16x16x4xbf16>
    tpu.vector_store %arg10[%c0_39, %c0_40, %c20], %32 {strides = array<i32>} : memref<16x16x36xbf16, #tpu.memory_space<vmem>>, vector<16x16x4xbf16>,
    %c2_41 = arith.constant 2 : index
    %c0_42 = arith.constant 0 : index
    %c0_43 = arith.constant 0 : index
    %34 = vector.load %arg9[%c2_41, %c0_42, %c0_43] : memref<18x18x4xf32, #tpu.memory_space<vmem>>, vector<16x16x4xf32>
    %35 = arith.truncf %34 : vector<16x16x4xf32> to vector<16x16x4xbf16>
    %c0_44 = arith.constant 0 : index
    %c0_45 = arith.constant 0 : index
    %c24 = arith.constant 24 : index
    %36 = vector.load %arg10[%c0_44, %c0_45, %c24] : memref<16x16x36xbf16, #tpu.memory_space<vmem>>, vector<16x16x4xbf16>
    tpu.vector_store %arg10[%c0_44, %c0_45, %c24], %35 {strides = array<i32>} : memref<16x16x36xbf16, #tpu.memory_space<vmem>>, vector<16x16x4xbf16>,
    %c2_46 = arith.constant 2 : index
    %c1_47 = arith.constant 1 : index
    %c0_48 = arith.constant 0 : index
    %37 = vector.load %arg9[%c2_46, %c1_47, %c0_48] : memref<18x18x4xf32, #tpu.memory_space<vmem>>, vector<16x16x4xf32>
    %38 = arith.truncf %37 : vector<16x16x4xf32> to vector<16x16x4xbf16>
    %c0_49 = arith.constant 0 : index
    %c0_50 = arith.constant 0 : index
    %c28 = arith.constant 28 : index
    %39 = vector.load %arg10[%c0_49, %c0_50, %c28] : memref<16x16x36xbf16, #tpu.memory_space<vmem>>, vector<16x16x4xbf16>
    tpu.vector_store %arg10[%c0_49, %c0_50, %c28], %38 {strides = array<i32>} : memref<16x16x36xbf16, #tpu.memory_space<vmem>>, vector<16x16x4xbf16>,
    %c2_51 = arith.constant 2 : index
    %c2_52 = arith.constant 2 : index
    %c0_53 = arith.constant 0 : index
    %40 = vector.load %arg9[%c2_51, %c2_52, %c0_53] : memref<18x18x4xf32, #tpu.memory_space<vmem>>, vector<16x16x4xf32>
    %41 = arith.truncf %40 : vector<16x16x4xf32> to vector<16x16x4xbf16>
    %c0_54 = arith.constant 0 : index
    %c0_55 = arith.constant 0 : index
    %c32 = arith.constant 32 : index
    %42 = vector.load %arg10[%c0_54, %c0_55, %c32] : memref<16x16x36xbf16, #tpu.memory_space<vmem>>, vector<16x16x4xbf16>
    tpu.vector_store %arg10[%c0_54, %c0_55, %c32], %41 {strides = array<i32>} : memref<16x16x36xbf16, #tpu.memory_space<vmem>>, vector<16x16x4xbf16>,
    %c0_56 = arith.constant 0 : index
    %c0_57 = arith.constant 0 : index
    %c0_58 = arith.constant 0 : index
    %43 = vector.load %arg10[%c0_56, %c0_57, %c0_58] : memref<16x16x36xbf16, #tpu.memory_space<vmem>>, vector<16x16x36xbf16>
    %44 = vector.shape_cast %43 : vector<16x16x36xbf16> to vector<256x36xbf16>
    %c0_59 = arith.constant 0 : index
    %c0_60 = arith.constant 0 : index
    %45 = vector.load %arg4[%c0_59, %c0_60] : memref<36x4xbf16, #tpu.memory_space<vmem>>, vector<36x4xbf16>
    %cst_61 = arith.constant dense<0.000000e+00> : vector<256x4xf32>
    %46 = tpu.matmul %44, %45, %cst_61 {dimension_numbers = #tpu.dot_dimension_numbers<[1], [0], [0], [1], [0, 0, 1, 1], [], []>} : vector<256x36xbf16>, vector<36x4xbf16>, vector<256x4xf32> -> vector<256x4xf32>
    %c0_62 = arith.constant 0 : index
    %c0_63 = arith.constant 0 : index
    %47 = vector.load %arg5[%c0_62, %c0_63] : memref<1x4xf32, #tpu.memory_space<vmem>>, vector<1x4xf32>
    %48 = vector.broadcast %47 : vector<1x4xf32> to vector<256x4xf32>
    %49 = arith.addf %46, %48 : vector<256x4xf32>
    %cst_64 = arith.constant 0.000000e+00 : f32
    %50 = vector.broadcast %cst_64 : f32 to vector<256x4xf32>
    %51 = arith.maximumf %49, %50 : vector<256x4xf32>
    %52 = arith.truncf %51 : vector<256x4xf32> to vector<256x4xbf16>
    %c0_65 = arith.constant 0 : index
    %c0_66 = arith.constant 0 : index
    %53 = vector.load %arg6[%c0_65, %c0_66] : memref<4x16xbf16, #tpu.memory_space<vmem>>, vector<4x16xbf16>
    %cst_67 = arith.constant dense<0.000000e+00> : vector<256x16xf32>
    %54 = tpu.matmul %52, %53, %cst_67 {dimension_numbers = #tpu.dot_dimension_numbers<[1], [0], [0], [1], [0, 0, 1, 1], [], []>} : vector<256x4xbf16>, vector<4x16xbf16>, vector<256x16xf32> -> vector<256x16xf32>
    %c0_68 = arith.constant 0 : index
    %c0_69 = arith.constant 0 : index
    %55 = vector.load %arg7[%c0_68, %c0_69] : memref<1x16xf32, #tpu.memory_space<vmem>>, vector<1x16xf32>
    %56 = vector.broadcast %55 : vector<1x16xf32> to vector<256x16xf32>
    %57 = arith.addf %54, %56 : vector<256x16xf32>
    %58 = arith.addf %57, %1 : vector<256x16xf32>
    %cst_70 = arith.constant 0.000000e+00 : f32
    %59 = vector.broadcast %cst_70 : f32 to vector<256x16xf32>
    %60 = arith.maximumf %58, %59 : vector<256x16xf32>
    %c0_71 = arith.constant 0 : index
    %c0_72 = arith.constant 0 : index
    %c0_73 = arith.constant 0 : index
    %61 = vector.load %arg8[%c0_71, %c0_72, %c0_73] : memref<1x256x16xf32, #tpu.memory_space<vmem>>, vector<1x256x16xf32>
    %62 = vector.shape_cast %61 : vector<1x256x16xf32> to vector<256x16xf32>
    %63 = vector.shape_cast %60 : vector<256x16xf32> to vector<1x256x16xf32>
    tpu.vector_store %arg8[%c0_71, %c0_72, %c0_73], %63 {strides = array<i32>} : memref<1x256x16xf32, #tpu.memory_space<vmem>>, vector<1x256x16xf32>,
    return
  }
  func.func @transform_0(%arg0: i32) -> (i32, i32, i32) {
    %c0_i32 = arith.constant 0 : i32
    %c0_i32_0 = arith.constant 0 : i32
    %c0_i32_1 = arith.constant 0 : i32
    return %arg0, %c0_i32, %c0_i32_0 : i32, i32, i32
  }
  func.func @transform_1(%arg0: i32) -> (i32, i32) {
    %c0_i32 = arith.constant 0 : i32
    %c0_i32_0 = arith.constant 0 : i32
    %c0_i32_1 = arith.constant 0 : i32
    return %c0_i32, %c0_i32_0 : i32, i32
  }
  func.func @transform_2(%arg0: i32) -> (i32, i32) {
    %c0_i32 = arith.constant 0 : i32
    %c0_i32_0 = arith.constant 0 : i32
    %c0_i32_1 = arith.constant 0 : i32
    return %c0_i32, %c0_i32_0 : i32, i32
  }
  func.func @transform_3(%arg0: i32) -> (i32, i32) {
    %c0_i32 = arith.constant 0 : i32
    %c0_i32_0 = arith.constant 0 : i32
    %c0_i32_1 = arith.constant 0 : i32
    return %c0_i32, %c0_i32_0 : i32, i32
  }
  func.func @transform_4(%arg0: i32) -> (i32, i32) {
    %c0_i32 = arith.constant 0 : i32
    %c0_i32_0 = arith.constant 0 : i32
    %c0_i32_1 = arith.constant 0 : i32
    return %c0_i32, %c0_i32_0 : i32, i32
  }
  func.func @transform_5(%arg0: i32) -> (i32, i32) {
    %c0_i32 = arith.constant 0 : i32
    %c0_i32_0 = arith.constant 0 : i32
    %c0_i32_1 = arith.constant 0 : i32
    return %c0_i32, %c0_i32_0 : i32, i32
  }
  func.func @transform_6(%arg0: i32) -> (i32, i32) {
    %c0_i32 = arith.constant 0 : i32
    %c0_i32_0 = arith.constant 0 : i32
    %c0_i32_1 = arith.constant 0 : i32
    return %c0_i32, %c0_i32_0 : i32, i32
  }
  func.func @transform_7(%arg0: i32) -> (i32, i32, i32) {
    %c0_i32 = arith.constant 0 : i32
    %c0_i32_0 = arith.constant 0 : i32
    %c0_i32_1 = arith.constant 0 : i32
    return %arg0, %c0_i32, %c0_i32_0 : i32, i32, i32
  }
}

</mosaic_0001>

<llo_original>
// kernel: tpu_custom_call.1
$region0: #{tpu_custom_call.1}
  #allocation0 [shape = 'u32[]', space=smem, size = 0x4, offset = 0x4, fixed_abs, tag = 'smem constant byte address 0x4 - core index']
  #allocation1 [shape = 'u32[144,128]{1,0:T(1,128)}', space=vmem, size = 0x12000, scoped, tag = 'internal scratch']
  #allocation2 [shape = 'f32[18,18,4]{2,1,0:T(8,128)}', space=vmem, size = 0x36000, scoped, tag = 'scratch operand']
  #allocation3 [shape = 'bf16[16,16,36]{2,1,0:T(8,128)(2,1)}', space=vmem, size = 0x10000, scoped, tag = 'scratch operand']
  %s0 = inlined_call_operand.vmem [shape: f32[2,256,16], index: 0, kind: input, shape index: {}]
  %s1 = inlined_call_operand.vmem [shape: bf16[16,4], index: 1, kind: input, shape index: {}]
  %s2 = inlined_call_operand.vmem [shape: f32[1,4], index: 2, kind: input, shape index: {}]
  %s3 = inlined_call_operand.vmem [shape: bf16[36,4], index: 3, kind: input, shape index: {}]
  %s4 = inlined_call_operand.vmem [shape: f32[1,4], index: 4, kind: input, shape index: {}]
  %s5 = inlined_call_operand.vmem [shape: bf16[4,16], index: 5, kind: input, shape index: {}]
  %s6 = inlined_call_operand.vmem [shape: f32[1,16], index: 6, kind: input, shape index: {}]
  %s7 = inlined_call_operand.vmem [shape: f32[2,256,16], index: 7, kind: output, shape index: {}]
  %s8 = sld [smem:[#allocation0]]
  $region61: #{tpu_custom_call.1} parent=0
    _
  %s10 = ssub.s32 1, %s8
  %s11 = scalar_select 0, %s10, %s8
  loop: start=0, step=1, limit=4
  $region2: #{tpu_custom_call.1} parent=0 // loop_pre_header
    _
  $region3: #{tpu_custom_call.1} parent=0 // loop_header
    %s13 = sphi 0, %s17
    %p14 = scmp.ge.s32.totalorder %s13, 4
    %s23 = sphi 0, %s25
    %s26 = sphi 0, %s23
    %s27 = sphi 0, %s26
    %s43 = sphi 0, %s27
    %s47 = sphi 0, %s47
    %s49 = sphi 0, %s47
    %s50 = sphi 0, %s49
    %s64 = sphi 0, %s50
    %s68 = sphi 0, %s68
    %s70 = sphi 0, %s68
    %s71 = sphi 0, %s70
    %s85 = sphi 0, %s71
    %s89 = sphi 0, %s89
    %s91 = sphi 0, %s89
    %s92 = sphi 0, %s91
    %s106 = sphi 0, %s92
    %s110 = sphi 0, %s110
    %s112 = sphi 0, %s110
    %s113 = sphi 0, %s112
    %s127 = sphi 0, %s113
    %s131 = sphi 0, %s131
    %s133 = sphi 0, %s131
    %s134 = sphi 0, %s133
    %s148 = sphi 0, %s134
    %s152 = sphi 0, %s152
    %s154 = sphi 0, %s152
    %s155 = sphi 0, %s154
    %s169 = sphi 0, %s155
    %s175 = sphi 0, %s177
    %s178 = sphi 0, %s175
    %s179 = sphi 0, %s178
    %s195 = sphi 0, %s179
  $region4: #{tpu_custom_call.1} parent=0 // loop_header_branch
    %16 = sbr.rel (%p14) target = $region8
  $region5: #{tpu_custom_call.1} parent=0 // loop_body
    %s18 = ssub.s32 %s13, 1
    %s19 = ssub.s32 %s13, 2
    %s20 = sadd.s32 %s13, 1
    %s21 = ssub.s32 %s13, %s20
    %p22 = scmp.eq.s32.totalorder %s21, 0
    %s24 = sadd.s32 %s23, 1
    %s25 = scalar_select %p22, %s23, %s24
    %p28 = pneg %p22
    %p29 = scmp.eq.s32.totalorder %s13, 1
    %p30 = por %p28, %p29
    %p31 = scmp.ne.s32.totalorder %s23, %s26
    %p32 = scmp.eq.s32.totalorder %s13, 0
    %p33 = por %p31, %p32
    %p34 = scmp.ne.s32.totalorder %s23, %s26
    %p35 = scmp.eq.s32.totalorder %s18, 1
    %p36 = por %p34, %p35
    %p37 = scmp.ne.s32.totalorder %s26, %s27
    %p38 = scmp.eq.s32.totalorder %s18, 0
    %p39 = por %p37, %p38
    %p40 = scmp.ne.s32.totalorder %s26, %s27
    %p41 = scmp.eq.s32.totalorder %s19, 1
    %p42 = por %p40, %p41
    %p44 = scmp.ne.s32.totalorder %s27, %s43
    %p45 = scmp.eq.s32.totalorder %s19, 0
    %p46 = por %p44, %p45
    %s48 = sadd.s32 %s47, 1
    %p51 = scmp.eq.s32.totalorder %s13, 1
    %p52 = scmp.ne.s32.totalorder %s47, %s49
    %p53 = scmp.eq.s32.totalorder %s13, 0
    %p54 = por %p52, %p53
    %p55 = scmp.ne.s32.totalorder %s47, %s49
    %p56 = scmp.eq.s32.totalorder %s18, 1
    %p57 = por %p55, %p56
    %p58 = scmp.ne.s32.totalorder %s49, %s50
    %p59 = scmp.eq.s32.totalorder %s18, 0
    %p60 = por %p58, %p59
    %p61 = scmp.ne.s32.totalorder %s49, %s50
    %p62 = scmp.eq.s32.totalorder %s19, 1
    %p63 = por %p61, %p62
    %p65 = scmp.ne.s32.totalorder %s50, %s64
    %p66 = scmp.eq.s32.totalorder %s19, 0
    %p67 = por %p65, %p66
    %s69 = sadd.s32 %s68, 1
    %p72 = scmp.eq.s32.totalorder %s13, 1
    %p73 = scmp.ne.s32.totalorder %s68, %s70
    %p74 = scmp.eq.s32.totalorder %s13, 0
    %p75 = por %p73, %p74
    %p76 = scmp.ne.s32.totalorder %s68, %s70
    %p77 = scmp.eq.s32.totalorder %s18, 1
    %p78 = por %p76, %p77
    %p79 = scmp.ne.s32.totalorder %s70, %s71
    %p80 = scmp.eq.s32.totalorder %s18, 0
    %p81 = por %p79, %p80
    %p82 = scmp.ne.s32.totalorder %s70, %s71
    %p83 = scmp.eq.s32.totalorder %s19, 1
    %p84 = por %p82, %p83
    %p86 = scmp.ne.s32.totalorder %s71, %s85
    %p87 = scmp.eq.s32.totalorder %s19, 0
    %p88 = por %p86, %p87
    %s90 = sadd.s32 %s89, 1
    %p93 = scmp.eq.s32.totalorder %s13, 1
    %p94 = scmp.ne.s32.totalorder %s89, %s91
    %p95 = scmp.eq.s32.totalorder %s13, 0
    %p96 = por %p94, %p95
    %p97 = scmp.ne.s32.totalorder %s89, %s91
    %p98 = scmp.eq.s32.totalorder %s18, 1
    %p99 = por %p97, %p98
    %p100 = scmp.ne.s32.totalorder %s91, %s92
    %p101 = scmp.eq.s32.totalorder %s18, 0
    %p102 = por %p100, %p101
    %p103 = scmp.ne.s32.totalorder %s91, %s92
    %p104 = scmp.eq.s32.totalorder %s19, 1
    %p105 = por %p103, %p104
    %p107 = scmp.ne.s32.totalorder %s92, %s106
    %p108 = scmp.eq.s32.totalorder %s19, 0
    %p109 = por %p107, %p108
    %s111 = sadd.s32 %s110, 1
    %p114 = scmp.eq.s32.totalorder %s13, 1
    %p115 = scmp.ne.s32.totalorder %s110, %s112
    %p116 = scmp.eq.s32.totalorder %s13, 0
    %p117 = por %p115, %p116
    %p118 = scmp.ne.s32.totalorder %s110, %s112
    %p119 = scmp.eq.s32.totalorder %s18, 1
    %p120 = por %p118, %p119
    %p121 = scmp.ne.s32.totalorder %s112, %s113
    %p122 = scmp.eq.s32.totalorder %s18, 0
    %p123 = por %p121, %p122
    %p124 = scmp.ne.s32.totalorder %s112, %s113
    %p125 = scmp.eq.s32.totalorder %s19, 1
    %p126 = por %p124, %p125
    %p128 = scmp.ne.s32.totalorder %s113, %s127
    %p129 = scmp.eq.s32.totalorder %s19, 0
    %p130 = por %p128, %p129
    %s132 = sadd.s32 %s131, 1
    %p135 = scmp.eq.s32.totalorder %s13, 1
    %p136 = scmp.ne.s32.totalorder %s131, %s133
    %p137 = scmp.eq.s32.totalorder %s13, 0
    %p138 = por %p136, %p137
    %p139 = scmp.ne.s32.totalorder %s131, %s133
    %p140 = scmp.eq.s32.totalorder %s18, 1
    %p141 = por %p139, %p140
    %p142 = scmp.ne.s32.totalorder %s133, %s134
    %p143 = scmp.eq.s32.totalorder %s18, 0
    %p144 = por %p142, %p143
    %p145 = scmp.ne.s32.totalorder %s133, %s134
    %p146 = scmp.eq.s32.totalorder %s19, 1
    %p147 = por %p145, %p146
    %p149 = scmp.ne.s32.totalorder %s134, %s148
    %p150 = scmp.eq.s32.totalorder %s19, 0
    %p151 = por %p149, %p150
    %s153 = sadd.s32 %s152, 1
    %p156 = scmp.eq.s32.totalorder %s13, 1
    %p157 = scmp.ne.s32.totalorder %s152, %s154
    %p158 = scmp.eq.s32.totalorder %s13, 0
    %p159 = por %p157, %p158
    %p160 = scmp.ne.s32.totalorder %s152, %s154
    %p161 = scmp.eq.s32.totalorder %s18, 1
    %p162 = por %p160, %p161
    %p163 = scmp.ne.s32.totalorder %s154, %s155
    %p164 = scmp.eq.s32.totalorder %s18, 0
    %p165 = por %p163, %p164
    %p166 = scmp.ne.s32.totalorder %s154, %s155
    %p167 = scmp.eq.s32.totalorder %s19, 1
    %p168 = por %p166, %p167
    %p170 = scmp.ne.s32.totalorder %s155, %s169
    %p171 = scmp.eq.s32.totalorder %s19, 0
    %p172 = por %p170, %p171
    %s173 = ssub.s32 %s13, %s20
    %p174 = scmp.eq.s32.totalorder %s173, 0
    %s176 = sadd.s32 %s175, 1
    %s177 = scalar_select %p174, %s175, %s176
    %p180 = pneg %p174
    %p181 = scmp.eq.s32.totalorder %s13, 1
    %p182 = por %p180, %p181
    %p183 = scmp.ne.s32.totalorder %s175, %s178
    %p184 = scmp.eq.s32.totalorder %s13, 0
    %p185 = por %p183, %p184
    %p186 = scmp.ne.s32.totalorder %s175, %s178
    %p187 = scmp.eq.s32.totalorder %s18, 1
    %p188 = por %p186, %p187
    %p189 = scmp.ne.s32.totalorder %s178, %s179
    %p190 = scmp.eq.s32.totalorder %s18, 0
    %p191 = por %p189, %p190
    %p192 = scmp.ne.s32.totalorder %s178, %s179
    %p193 = scmp.eq.s32.totalorder %s19, 1
    %p194 = por %p192, %p193
    %p196 = scmp.ne.s32.totalorder %s179, %s195
    %p197 = scmp.eq.s32.totalorder %s19, 0
    %p198 = por %p196, %p197
    %p199 = scmp.le.s32.totalorder 1, %s13
    %p200 = scmp.lt.s32.totalorder %s13, 3
    %p201 = pnand %p199, %p200
    %p202 = pneg %p201
    // Predicated region
    $region9: #{tpu_custom_call.1} parent=5 // pred_check
      _
    $region10: #{tpu_custom_call.1} parent=5 // pred_check_branch
      %204 = sbr.rel (%p201) target = $region12
    $region11: #{tpu_custom_call.1} parent=5 // pred_region
      %s205 = ssub.s32 %s13, 1
      // Predicated region
      $region13: #{tpu_custom_call.1} parent=11 // pred_check
        %p206 = pneg %p60
      $region14: #{tpu_custom_call.1} parent=11 // pred_check_branch
        %208 = sbr.rel (%p206) target = $region16
      $region15: #{tpu_custom_call.1} parent=11 // pred_region
        _
      $region16: #{tpu_custom_call.1} parent=11 // pred_fallthru
        _
      // Predicated region
      $region17: #{tpu_custom_call.1} parent=11 // pred_check
        %p209 = pneg %p81
      $region18: #{tpu_custom_call.1} parent=11 // pred_check_branch
        %211 = sbr.rel (%p209) target = $region20
      $region19: #{tpu_custom_call.1} parent=11 // pred_region
        _
      $region20: #{tpu_custom_call.1} parent=11 // pred_fallthru
        _
      // Predicated region
      $region21: #{tpu_custom_call.1} parent=11 // pred_check
        %p212 = pneg %p102
      $region22: #{tpu_custom_call.1} parent=11 // pred_check_branch
        %214 = sbr.rel (%p212) target = $region24
      $region23: #{tpu_custom_call.1} parent=11 // pred_region
        _
      $region24: #{tpu_custom_call.1} parent=11 // pred_fallthru
        _
      // Predicated region
      $region25: #{tpu_custom_call.1} parent=11 // pred_check
        %p215 = pneg %p123
      $region26: #{tpu_custom_call.1} parent=11 // pred_check_branch
        %217 = sbr.rel (%p215) target = $region28
      $region27: #{tpu_custom_call.1} parent=11 // pred_region
        _
      $region28: #{tpu_custom_call.1} parent=11 // pred_fallthru
        _
      // Predicated region
      $region29: #{tpu_custom_call.1} parent=11 // pred_check
        %p218 = pneg %p144
      $region30: #{tpu_custom_call.1} parent=11 // pred_check_branch
        %220 = sbr.rel (%p218) target = $region32
      $region31: #{tpu_custom_call.1} parent=11 // pred_region
        _
      $region32: #{tpu_custom_call.1} parent=11 // pred_fallthru
        _
      // Predicated region
      $region33: #{tpu_custom_call.1} parent=11 // pred_check
        %p221 = pneg %p165
      $region34: #{tpu_custom_call.1} parent=11 // pred_check_branch
        %223 = sbr.rel (%p221) target = $region36
      $region35: #{tpu_custom_call.1} parent=11 // pred_region
        _
      $region36: #{tpu_custom_call.1} parent=11 // pred_fallthru
        _
    $region12: #{tpu_custom_call.1} parent=5 // pred_fallthru
      _
    %p224 = scmp.lt.s32.totalorder %s13, 2
    // Predicated region
    $region37: #{tpu_custom_call.1} parent=5 // pred_check
      %p225 = pneg %p224
    $region38: #{tpu_custom_call.1} parent=5 // pred_check_branch
      %227 = sbr.rel (%p225) target = $region40
    $region39: #{tpu_custom_call.1} parent=5 // pred_region
      // Predicated region
      $region41: #{tpu_custom_call.1} parent=39 // pred_check
        %p228 = pneg %p33
      $region42: #{tpu_custom_call.1} parent=39 // pred_check_branch
        %230 = sbr.rel (%p228) target = $region44
      $region43: #{tpu_custom_call.1} parent=39 // pred_region
        %p231 = scmp.lt.s32.totalorder %s13, 1
        %s232 = scalar_select %p231, %s13, 1
        %s233 = smul.addr %s232, 32
        %s234 = smul.addr %s233, 8
        %s235 = scalar_lea.vmem %s0, %s234
      $region44: #{tpu_custom_call.1} parent=39 // pred_fallthru
        _
    $region40: #{tpu_custom_call.1} parent=5 // pred_fallthru
      _
    %p236 = scmp.le.s32.totalorder 1, %s13
    %p237 = scmp.lt.s32.totalorder %s13, 3
    %p238 = pnand %p236, %p237
    %p239 = pneg %p238
    // Predicated region
    $region45: #{tpu_custom_call.1} parent=5 // pred_check
      _
    $region46: #{tpu_custom_call.1} parent=5 // pred_check_branch
      %241 = sbr.rel (%p238) target = $region48
    $region47: #{tpu_custom_call.1} parent=5 // pred_region
      %s242 = ssub.s32 %s13, 1
      %p243 = scmp.lt.s32.totalorder %s18, 1
      %s244 = scalar_select %p243, %s18, 1
      %s245 = smul.addr %s244, 32
      %s246 = smul.addr %s245, 8
      %s247 = scalar_lea.vmem %s0, %s246
      %p248 = pneg %p39
      %p249 = pneg %p36
      %p250 = pneg %p60
      %p251 = pneg %p57
      %p252 = pneg %p81
      %p253 = pneg %p78
      %p254 = pneg %p102
      %p255 = pneg %p99
      %p256 = pneg %p123
      %p257 = pneg %p120
      %p258 = pneg %p144
      %p259 = pneg %p141
      %p260 = pneg %p165
      %p261 = pneg %p162
      %p262 = pneg %p191
      %p263 = pneg %p188
      %p264 = scmp.lt.s32.totalorder %s18, 1
      %s265 = scalar_select %p264, %s18, 1
      %s266 = smul.addr %s265, 32
      %s267 = smul.addr %s266, 8
      %s268 = scalar_lea.vmem %s7, %s267
      %p269 = scmp.lt.s32.totalorder %s18, 1
      %s270 = scalar_select %p269, %s18, 1
      %s271 = smul.addr %s270, 32
      %s272 = smul.addr %s271, 8
      %s273 = scalar_lea.vmem %s0, %s272
      %p274 = scmp.lt.s32.totalorder %s18, 1
      %s275 = scalar_select %p274, %s18, 1
      %s276 = smul.addr %s275, 32
      %s277 = smul.addr %s276, 8
      %s278 = scalar_lea.vmem %s7, %s277
      %v280 = vld [vmem:[%s273] sm:$0xff]
      %v281 = vld [vmem:[%s273 + $0x8] sm:$0xff]
      %v282 = vld [vmem:[%s273 + $0x10] sm:$0xff]
      %v283 = vld [vmem:[%s273 + $0x18] sm:$0xff]
      %v284 = vld [vmem:[%s273 + $0x20] sm:$0xff]
      %v285 = vld [vmem:[%s273 + $0x28] sm:$0xff]
      %v286 = vld [vmem:[%s273 + $0x30] sm:$0xff]
      %v287 = vld [vmem:[%s273 + $0x38] sm:$0xff]
      %v288 = vld [vmem:[%s273 + $0x40] sm:$0xff]
      %v289 = vld [vmem:[%s273 + $0x48] sm:$0xff]
      %v290 = vld [vmem:[%s273 + $0x50] sm:$0xff]
      %v291 = vld [vmem:[%s273 + $0x58] sm:$0xff]
      %v292 = vld [vmem:[%s273 + $0x60] sm:$0xff]
      %v293 = vld [vmem:[%s273 + $0x68] sm:$0xff]
      %v294 = vld [vmem:[%s273 + $0x70] sm:$0xff]
      %v295 = vld [vmem:[%s273 + $0x78] sm:$0xff]
      %v296 = vld [vmem:[%s273 + $0x80] sm:$0xff]
      %v297 = vld [vmem:[%s273 + $0x88] sm:$0xff]
      %v298 = vld [vmem:[%s273 + $0x90] sm:$0xff]
      %v299 = vld [vmem:[%s273 + $0x98] sm:$0xff]
      %v300 = vld [vmem:[%s273 + $0xa0] sm:$0xff]
      %v301 = vld [vmem:[%s273 + $0xa8] sm:$0xff]
      %v302 = vld [vmem:[%s273 + $0xb0] sm:$0xff]
      %v303 = vld [vmem:[%s273 + $0xb8] sm:$0xff]
      %v304 = vld [vmem:[%s273 + $0xc0] sm:$0xff]
      %v305 = vld [vmem:[%s273 + $0xc8] sm:$0xff]
      %v306 = vld [vmem:[%s273 + $0xd0] sm:$0xff]
      %v307 = vld [vmem:[%s273 + $0xd8] sm:$0xff]
      %v308 = vld [vmem:[%s273 + $0xe0] sm:$0xff]
      %v309 = vld [vmem:[%s273 + $0xe8] sm:$0xff]
      %v310 = vld [vmem:[%s273 + $0xf0] sm:$0xff]
      %v311 = vld [vmem:[%s273 + $0xf8] sm:$0xff]
      %v312 = vpack.c.bf16 %v281, %v280
      %v313 = vpack.c.bf16 %v283, %v282
      %v314 = vpack.c.bf16 %v285, %v284
      %v315 = vpack.c.bf16 %v287, %v286
      %v316 = vpack.c.bf16 %v289, %v288
      %v317 = vpack.c.bf16 %v291, %v290
      %v318 = vpack.c.bf16 %v293, %v292
      %v319 = vpack.c.bf16 %v295, %v294
      %v320 = vpack.c.bf16 %v297, %v296
      %v321 = vpack.c.bf16 %v299, %v298
      %v322 = vpack.c.bf16 %v301, %v300
      %v323 = vpack.c.bf16 %v303, %v302
      %v324 = vpack.c.bf16 %v305, %v304
      %v325 = vpack.c.bf16 %v307, %v306
      %v326 = vpack.c.bf16 %v309, %v308
      %v327 = vpack.c.bf16 %v311, %v310
      %v328 = vld [vmem:[%s1] sm:$0xf]
      %v329 = vld [vmem:[%s1 + $0x4] sm:$0xf]
      %v330 = vld [vmem:[%s2] sm:$0x1]
      %v332 = vlaneseq
      %v333 = vshrl.u32 %v332, 7
      %v334 = vsub.s32 0, %v333
      %v335 = vrot.slane %v330, %v334
      %v339 = vunpack.c.l.b16 %v328
      %v340 = vunpack.c.l.b16 %v329
      %v341 = vpack.c.b16 %v340, %v339
      %vm343 = vcmask 130048
      %v345 = vsel %vm343, %v312, 0
      %v348 = vsel %vm343, %v313, 0
      %v351 = vsel %vm343, %v314, 0
      %v354 = vsel %vm343, %v315, 0
      %v357 = vsel %vm343, %v316, 0
      %v360 = vsel %vm343, %v317, 0
      %v363 = vsel %vm343, %v318, 0
      %v366 = vsel %vm343, %v319, 0
      %v369 = vsel %vm343, %v320, 0
      %v372 = vsel %vm343, %v321, 0
      %v375 = vsel %vm343, %v322, 0
      %v378 = vsel %vm343, %v323, 0
      %v381 = vsel %vm343, %v324, 0
      %v384 = vsel %vm343, %v325, 0
      %v387 = vsel %vm343, %v326, 0
      %v390 = vsel %vm343, %v327, 0
      %392 = vmatprep.subr.bf16.mxu0 0
      %393 = vmatpush1.bf16.msra.mxu0 0
      %394 = vmatprep.subr.bf16.mxu0 0
      %395 = vmatpush1.bf16.msra.mxu0 0
      %396 = vmatprep.subr.bf16.mxu0 0
      %397 = vmatpush1.bf16.msra.mxu0 0
      %398 = vmatprep.subr.bf16.mxu0 0
      %399 = vmatpush1.bf16.msra.mxu0 0
      %400 = vmatprep.subr.bf16.mxu0 0
      %401 = vmatpush1.bf16.msra.mxu0 0
      %402 = vmatprep.subr.bf16.mxu0 0
      %403 = vmatpush1.bf16.msra.mxu0 0
      %404 = vmatprep.subr.bf16.mxu0 0
      %405 = vmatpush1.bf16.msra.mxu0 0
      %406 = vmatprep.subr.bf16.mxu0 0
      %407 = vmatpush1.bf16.msra.mxu0 %v341
      %408 = vmatprep.subr.bf16.mxu0 0
      %409 = vmatpush2.bf16.msra.mxu0 0
      %410 = vmatprep.subr.bf16.mxu0 0
      %411 = vmatpush2.bf16.msra.mxu0 0
      %412 = vmatprep.subr.bf16.mxu0 0
      %413 = vmatpush2.bf16.msra.mxu0 0
      %414 = vmatprep.subr.bf16.mxu0 0
      %415 = vmatpush2.bf16.msra.mxu0 0
      %416 = vmatprep.subr.bf16.mxu0 0
      %417 = vmatpush2.bf16.msra.mxu0 0
      %418 = vmatprep.subr.bf16.mxu0 0
      %419 = vmatpush2.bf16.msra.mxu0 0
      %420 = vmatprep.subr.bf16.mxu0 0
      %421 = vmatpush2.bf16.msra.mxu0 0
      %422 = vmatprep.subr.bf16.mxu0 0
      %423 = vmatpush2.bf16.msra.mxu0 0
      %424 = vmatprep.mubr.bf16.mxu0 0
      %425 = vmatmul.mubr.bf16.gmra.mxu0 %v345
      %v426 = vpop.f32.mrf.mxu0
      %v427 = vadd.f32 %v335, %v426
      %v428 = vpop.f32.mrf.mxu0
      %v429 = vpop.f32.mrf.mxu0
      %v430 = vadd.f32 %v335, %v429
      %v431 = vpop.f32.mrf.mxu0
      %432 = vmatprep.mubr.bf16.mxu0 0
      %433 = vmatmul.mubr.bf16.gmra.mxu0 %v348
      %v434 = vpop.f32.mrf.mxu0
      %v435 = vadd.f32 %v335, %v434
      %v436 = vpop.f32.mrf.mxu0
      %v437 = vpop.f32.mrf.mxu0
      %v438 = vadd.f32 %v335, %v437
      %v439 = vpop.f32.mrf.mxu0
      %440 = vmatprep.mubr.bf16.mxu0 0
      %441 = vmatmul.mubr.bf16.gmra.mxu0 %v351
      %v442 = vpop.f32.mrf.mxu0
      %v443 = vadd.f32 %v335, %v442
      %v444 = vpop.f32.mrf.mxu0
      %v445 = vpop.f32.mrf.mxu0
      %v446 = vadd.f32 %v335, %v445
      %v447 = vpop.f32.mrf.mxu0
      %448 = vmatprep.mubr.bf16.mxu0 0
      %449 = vmatmul.mubr.bf16.gmra.mxu0 %v354
      %v450 = vpop.f32.mrf.mxu0
      %v451 = vadd.f32 %v335, %v450
      %v452 = vpop.f32.mrf.mxu0
      %v453 = vpop.f32.mrf.mxu0
      %v454 = vadd.f32 %v335, %v453
      %v455 = vpop.f32.mrf.mxu0
      %456 = vmatprep.mubr.bf16.mxu0 0
      %457 = vmatmul.mubr.bf16.gmra.mxu0 %v357
      %v458 = vpop.f32.mrf.mxu0
      %v459 = vadd.f32 %v335, %v458
      %v460 = vpop.f32.mrf.mxu0
      %v461 = vpop.f32.mrf.mxu0
      %v462 = vadd.f32 %v335, %v461
      %v463 = vpop.f32.mrf.mxu0
      %464 = vmatprep.mubr.bf16.mxu0 0
      %465 = vmatmul.mubr.bf16.gmra.mxu0 %v360
      %v466 = vpop.f32.mrf.mxu0
      %v467 = vadd.f32 %v335, %v466
      %v468 = vpop.f32.mrf.mxu0
      %v469 = vpop.f32.mrf.mxu0
      %v470 = vadd.f32 %v335, %v469
      %v471 = vpop.f32.mrf.mxu0
      %472 = vmatprep.mubr.bf16.mxu0 0
      %473 = vmatmul.mubr.bf16.gmra.mxu0 %v363
      %v474 = vpop.f32.mrf.mxu0
      %v475 = vadd.f32 %v335, %v474
      %v476 = vpop.f32.mrf.mxu0
      %v477 = vpop.f32.mrf.mxu0
      %v478 = vadd.f32 %v335, %v477
      %v479 = vpop.f32.mrf.mxu0
      %480 = vmatprep.mubr.bf16.mxu0 0
      %481 = vmatmul.mubr.bf16.gmra.mxu0 %v366
      %v482 = vpop.f32.mrf.mxu0
      %v483 = vadd.f32 %v335, %v482
      %v484 = vpop.f32.mrf.mxu0
      %v485 = vpop.f32.mrf.mxu0
      %v486 = vadd.f32 %v335, %v485
      %v487 = vpop.f32.mrf.mxu0
      %488 = vmatprep.mubr.bf16.mxu0 0
      %489 = vmatmul.mubr.bf16.gmra.mxu0 %v369
      %v490 = vpop.f32.mrf.mxu0
      %v491 = vadd.f32 %v335, %v490
      %v492 = vpop.f32.mrf.mxu0
      %v493 = vpop.f32.mrf.mxu0
      %v494 = vadd.f32 %v335, %v493
      %v495 = vpop.f32.mrf.mxu0
      %496 = vmatprep.mubr.bf16.mxu0 0
      %497 = vmatmul.mubr.bf16.gmra.mxu0 %v372
      %v498 = vpop.f32.mrf.mxu0
      %v499 = vadd.f32 %v335, %v498
      %v500 = vpop.f32.mrf.mxu0
      %v501 = vpop.f32.mrf.mxu0
      %v502 = vadd.f32 %v335, %v501
      %v503 = vpop.f32.mrf.mxu0
      %504 = vmatprep.mubr.bf16.mxu0 0
      %505 = vmatmul.mubr.bf16.gmra.mxu0 %v375
      %v506 = vpop.f32.mrf.mxu0
      %v507 = vadd.f32 %v335, %v506
      %v508 = vpop.f32.mrf.mxu0
      %v509 = vpop.f32.mrf.mxu0
      %v510 = vadd.f32 %v335, %v509
      %v511 = vpop.f32.mrf.mxu0
      %512 = vmatprep.mubr.bf16.mxu0 0
      %513 = vmatmul.mubr.bf16.gmra.mxu0 %v378
      %v514 = vpop.f32.mrf.mxu0
      %v515 = vadd.f32 %v335, %v514
      %v516 = vpop.f32.mrf.mxu0
      %v517 = vpop.f32.mrf.mxu0
      %v518 = vadd.f32 %v335, %v517
      %v519 = vpop.f32.mrf.mxu0
      %520 = vmatprep.mubr.bf16.mxu0 0
      %521 = vmatmul.mubr.bf16.gmra.mxu0 %v381
      %v522 = vpop.f32.mrf.mxu0
      %v523 = vadd.f32 %v335, %v522
      %v524 = vpop.f32.mrf.mxu0
      %v525 = vpop.f32.mrf.mxu0
      %v526 = vadd.f32 %v335, %v525
      %v527 = vpop.f32.mrf.mxu0
      %528 = vmatprep.mubr.bf16.mxu0 0
      %529 = vmatmul.mubr.bf16.gmra.mxu0 %v384
      %v530 = vpop.f32.mrf.mxu0
      %v531 = vadd.f32 %v335, %v530
      %v532 = vpop.f32.mrf.mxu0
      %v533 = vpop.f32.mrf.mxu0
      %v534 = vadd.f32 %v335, %v533
      %v535 = vpop.f32.mrf.mxu0
      %536 = vmatprep.mubr.bf16.mxu0 0
      %537 = vmatmul.mubr.bf16.gmra.mxu0 %v387
      %v538 = vpop.f32.mrf.mxu0
      %v539 = vadd.f32 %v335, %v538
      %v540 = vpop.f32.mrf.mxu0
      %v541 = vpop.f32.mrf.mxu0
      %v542 = vadd.f32 %v335, %v541
      %v543 = vpop.f32.mrf.mxu0
      %544 = vmatprep.mubr.bf16.mxu0 0
      %545 = vmatmul.mubr.bf16.gmra.mxu0 %v390
      %v546 = vpop.f32.mrf.mxu0
      %v547 = vadd.f32 %v335, %v546
      %v548 = vpop.f32.mrf.mxu0
      %v549 = vpop.f32.mrf.mxu0
      %v550 = vadd.f32 %v335, %v549
      %v551 = vpop.f32.mrf.mxu0
      %552 = vdwg.mxu0
      %v553 = vmax.f32 %v427, 0.0
      %v554 = vmax.f32 %v430, 0.0
      %v555 = vmax.f32 %v435, 0.0
      %v556 = vmax.f32 %v438, 0.0
      %v557 = vmax.f32 %v443, 0.0
      %v558 = vmax.f32 %v446, 0.0
      %v559 = vmax.f32 %v451, 0.0
      %v560 = vmax.f32 %v454, 0.0
      %v561 = vmax.f32 %v459, 0.0
      %v562 = vmax.f32 %v462, 0.0
      %v563 = vmax.f32 %v467, 0.0
      %v564 = vmax.f32 %v470, 0.0
      %v565 = vmax.f32 %v475, 0.0
      %v566 = vmax.f32 %v478, 0.0
      %v567 = vmax.f32 %v483, 0.0
      %v568 = vmax.f32 %v486, 0.0
      %v569 = vmax.f32 %v491, 0.0
      %v570 = vmax.f32 %v494, 0.0
      %v571 = vmax.f32 %v499, 0.0
      %v572 = vmax.f32 %v502, 0.0
      %v573 = vmax.f32 %v507, 0.0
      %v574 = vmax.f32 %v510, 0.0
      %v575 = vmax.f32 %v515, 0.0
      %v576 = vmax.f32 %v518, 0.0
      %v577 = vmax.f32 %v523, 0.0
      %v578 = vmax.f32 %v526, 0.0
      %v579 = vmax.f32 %v531, 0.0
      %v580 = vmax.f32 %v534, 0.0
      %v581 = vmax.f32 %v539, 0.0
      %v582 = vmax.f32 %v542, 0.0
      %v583 = vmax.f32 %v547, 0.0
      %v584 = vmax.f32 %v550, 0.0
      %vm617 = vcmask 1040384
      %v618 = vrot.slane %v553, 7
      %v619 = vrot.slane %v554, 7
      %v620 = vsel %vm617, %v618, %v619
      %v621 = vrot.slane %v555, 7
      %v622 = vrot.slane %v556, 7
      %v623 = vsel %vm617, %v621, %v622
      %v624 = vrot.slane %v557, 7
      %v625 = vrot.slane %v558, 7
      %v626 = vsel %vm617, %v624, %v625
      %v627 = vrot.slane %v559, 7
      %v628 = vrot.slane %v560, 7
      %v629 = vsel %vm617, %v627, %v628
      %v630 = vrot.slane %v561, 7
      %v631 = vrot.slane %v562, 7
      %v632 = vsel %vm617, %v630, %v631
      %v633 = vrot.slane %v563, 7
      %v634 = vrot.slane %v564, 7
      %v635 = vsel %vm617, %v633, %v634
      %v636 = vrot.slane %v565, 7
      %v637 = vrot.slane %v566, 7
      %v638 = vsel %vm617, %v636, %v637
      %v639 = vrot.slane %v567, 7
      %v640 = vrot.slane %v568, 7
      %v641 = vsel %vm617, %v639, %v640
      %v642 = vrot.slane %v569, 7
      %v643 = vrot.slane %v570, 7
      %v644 = vsel %vm617, %v642, %v643
      %v645 = vrot.slane %v571, 7
      %v646 = vrot.slane %v572, 7
      %v647 = vsel %vm617, %v645, %v646
      %v648 = vrot.slane %v573, 7
      %v649 = vrot.slane %v574, 7
      %v650 = vsel %vm617, %v648, %v649
      %v651 = vrot.slane %v575, 7
      %v652 = vrot.slane %v576, 7
      %v653 = vsel %vm617, %v651, %v652
      %v654 = vrot.slane %v577, 7
      %v655 = vrot.slane %v578, 7
      %v656 = vsel %vm617, %v654, %v655
      %v657 = vrot.slane %v579, 7
      %v658 = vrot.slane %v580, 7
      %v659 = vsel %vm617, %v657, %v658
      %v660 = vrot.slane %v581, 7
      %v661 = vrot.slane %v582, 7
      %v662 = vsel %vm617, %v660, %v661
      %v663 = vrot.slane %v583, 7
      %v664 = vrot.slane %v584, 7
      %v665 = vsel %vm617, %v663, %v664
      %v714 = vsel %vm617, 0.0, %v618
      %v715 = vsel %vm617, 0.0, %v621
      %v716 = vsel %vm617, 0.0, %v624
      %v717 = vsel %vm617, 0.0, %v627
      %v718 = vsel %vm617, 0.0, %v630
      %v719 = vsel %vm617, 0.0, %v633
      %v720 = vsel %vm617, 0.0, %v636
      %v721 = vsel %vm617, 0.0, %v639
      %v722 = vsel %vm617, 0.0, %v642
      %v723 = vsel %vm617, 0.0, %v645
      %v724 = vsel %vm617, 0.0, %v648
      %v725 = vsel %vm617, 0.0, %v651
      %v726 = vsel %vm617, 0.0, %v654
      %v727 = vsel %vm617, 0.0, %v657
      %v728 = vsel %vm617, 0.0, %v660
      %v729 = vsel %vm617, 0.0, %v663
      %v730 = vsel %vm617, %v619, 0.0
      %v731 = vsel %vm617, %v622, 0.0
      %v732 = vsel %vm617, %v625, 0.0
      %v733 = vsel %vm617, %v628, 0.0
      %v734 = vsel %vm617, %v631, 0.0
      %v735 = vsel %vm617, %v634, 0.0
      %v736 = vsel %vm617, %v637, 0.0
      %v737 = vsel %vm617, %v640, 0.0
      %v738 = vsel %vm617, %v643, 0.0
      %v739 = vsel %vm617, %v646, 0.0
      %v740 = vsel %vm617, %v649, 0.0
      %v741 = vsel %vm617, %v652, 0.0
      %v742 = vsel %vm617, %v655, 0.0
      %v743 = vsel %vm617, %v658, 0.0
      %v744 = vsel %vm617, %v661, 0.0
      %v745 = vsel %vm617, %v664, 0.0
      %vm746 = vcmask 31744
      %747 = vst.msk [vmem:[#allocation2] sm:$0xff] %vm746, 0.0
      %748 = vst.msk [vmem:[#allocation2 + $0x8] sm:$0xff] %vm746, 0.0
      %vm749 = vcmask 25600
      %750 = vst.msk [vmem:[#allocation2 + $0x10] sm:$0x3] %vm749, 0.0
      %751 = vst.msk [vmem:[#allocation2 + $0x18] sm:$0xff] %vm746, %v714
      %752 = vst.msk [vmem:[#allocation2 + $0x20] sm:$0xff] %vm746, %v620
      %753 = vst.msk [vmem:[#allocation2 + $0x28] sm:$0x3] %vm749, %v730
      %754 = vst.msk [vmem:[#allocation2 + $0x30] sm:$0xff] %vm746, %v715
      %755 = vst.msk [vmem:[#allocation2 + $0x38] sm:$0xff] %vm746, %v623
      %756 = vst.msk [vmem:[#allocation2 + $0x40] sm:$0x3] %vm749, %v731
      %757 = vst.msk [vmem:[#allocation2 + $0x48] sm:$0xff] %vm746, %v716
      %758 = vst.msk [vmem:[#allocation2 + $0x50] sm:$0xff] %vm746, %v626
      %759 = vst.msk [vmem:[#allocation2 + $0x58] sm:$0x3] %vm749, %v732
      %760 = vst.msk [vmem:[#allocation2 + $0x60] sm:$0xff] %vm746, %v717
      %761 = vst.msk [vmem:[#allocation2 + $0x68] sm:$0xff] %vm746, %v629
      %762 = vst.msk [vmem:[#allocation2 + $0x70] sm:$0x3] %vm749, %v733
      %763 = vst.msk [vmem:[#allocation2 + $0x78] sm:$0xff] %vm746, %v718
      %764 = vst.msk [vmem:[#allocation2 + $0x80] sm:$0xff] %vm746, %v632
      %765 = vst.msk [vmem:[#allocation2 + $0x88] sm:$0x3] %vm749, %v734
      %766 = vst.msk [vmem:[#allocation2 + $0x90] sm:$0xff] %vm746, %v719
      %767 = vst.msk [vmem:[#allocation2 + $0x98] sm:$0xff] %vm746, %v635
      %768 = vst.msk [vmem:[#allocation2 + $0xa0] sm:$0x3] %vm749, %v735
      %769 = vst.msk [vmem:[#allocation2 + $0xa8] sm:$0xff] %vm746, %v720
      %770 = vst.msk [vmem:[#allocation2 + $0xb0] sm:$0xff] %vm746, %v638
      %771 = vst.msk [vmem:[#allocation2 + $0xb8] sm:$0x3] %vm749, %v736
      %772 = vst.msk [vmem:[#allocation2 + $0xc0] sm:$0xff] %vm746, %v721
      %773 = vst.msk [vmem:[#allocation2 + $0xc8] sm:$0xff] %vm746, %v641
      %774 = vst.msk [vmem:[#allocation2 + $0xd0] sm:$0x3] %vm749, %v737
      %775 = vst.msk [vmem:[#allocation2 + $0xd8] sm:$0xff] %vm746, %v722
      %776 = vst.msk [vmem:[#allocation2 + $0xe0] sm:$0xff] %vm746, %v644
      %777 = vst.msk [vmem:[#allocation2 + $0xe8] sm:$0x3] %vm749, %v738
      %778 = vst.msk [vmem:[#allocation2 + $0xf0] sm:$0xff] %vm746, %v723
      %779 = vst.msk [vmem:[#allocation2 + $0xf8] sm:$0xff] %vm746, %v647
      %780 = vst.msk [vmem:[#allocation2 + $0x100] sm:$0x3] %vm749, %v739
      %781 = vst.msk [vmem:[#allocation2 + $0x108] sm:$0xff] %vm746, %v724
      %782 = vst.msk [vmem:[#allocation2 + $0x110] sm:$0xff] %vm746, %v650
      %783 = vst.msk [vmem:[#allocation2 + $0x118] sm:$0x3] %vm749, %v740
      %784 = vst.msk [vmem:[#allocation2 + $0x120] sm:$0xff] %vm746, %v725
      %785 = vst.msk [vmem:[#allocation2 + $0x128] sm:$0xff] %vm746, %v653
      %786 = vst.msk [vmem:[#allocation2 + $0x130] sm:$0x3] %vm749, %v741
      %787 = vst.msk [vmem:[#allocation2 + $0x138] sm:$0xff] %vm746, %v726
      %788 = vst.msk [vmem:[#allocation2 + $0x140] sm:$0xff] %vm746, %v656
      %789 = vst.msk [vmem:[#allocation2 + $0x148] sm:$0x3] %vm749, %v742
      %790 = vst.msk [vmem:[#allocation2 + $0x150] sm:$0xff] %vm746, %v727
      %791 = vst.msk [vmem:[#allocation2 + $0x158] sm:$0xff] %vm746, %v659
      %792 = vst.msk [vmem:[#allocation2 + $0x160] sm:$0x3] %vm749, %v743
      %793 = vst.msk [vmem:[#allocation2 + $0x168] sm:$0xff] %vm746, %v728
      %794 = vst.msk [vmem:[#allocation2 + $0x170] sm:$0xff] %vm746, %v662
      %795 = vst.msk [vmem:[#allocation2 + $0x178] sm:$0x3] %vm749, %v744
      %796 = vst.msk [vmem:[#allocation2 + $0x180] sm:$0xff] %vm746, %v729
      %797 = vst.msk [vmem:[#allocation2 + $0x188] sm:$0xff] %vm746, %v665
      %798 = vst.msk [vmem:[#allocation2 + $0x190] sm:$0x3] %vm749, %v745
      %799 = vst.msk [vmem:[#allocation2 + $0x198] sm:$0xff] %vm746, 0.0
      %800 = vst.msk [vmem:[#allocation2 + $0x1a0] sm:$0xff] %vm746, 0.0
      %801 = vst.msk [vmem:[#allocation2 + $0x1a8] sm:$0x3] %vm749, 0.0
      %v802 = vld [vmem:[#allocation2] sm:$0xff]
      %v803 = vld [vmem:[#allocation2 + $0x8] sm:$0xff]
      %v804 = vld [vmem:[#allocation2 + $0x18] sm:$0xff]
      %v805 = vld [vmem:[#allocation2 + $0x20] sm:$0xff]
      %v806 = vld [vmem:[#allocation2 + $0x30] sm:$0xff]
      %v807 = vld [vmem:[#allocation2 + $0x38] sm:$0xff]
      %v808 = vld [vmem:[#allocation2 + $0x48] sm:$0xff]
      %v809 = vld [vmem:[#allocation2 + $0x50] sm:$0xff]
      %v810 = vld [vmem:[#allocation2 + $0x60] sm:$0xff]
      %v811 = vld [vmem:[#allocation2 + $0x68] sm:$0xff]
      %v812 = vld [vmem:[#allocation2 + $0x78] sm:$0xff]
      %v813 = vld [vmem:[#allocation2 + $0x80] sm:$0xff]
      %v814 = vld [vmem:[#allocation2 + $0x90] sm:$0xff]
      %v815 = vld [vmem:[#allocation2 + $0x98] sm:$0xff]
      %v816 = vld [vmem:[#allocation2 + $0xa8] sm:$0xff]
      %v817 = vld [vmem:[#allocation2 + $0xb0] sm:$0xff]
      %v818 = vld [vmem:[#allocation2 + $0xc0] sm:$0xff]
      %v819 = vld [vmem:[#allocation2 + $0xc8] sm:$0xff]
      %v820 = vld [vmem:[#allocation2 + $0xd8] sm:$0xff]
      %v821 = vld [vmem:[#allocation2 + $0xe0] sm:$0xff]
      %v822 = vld [vmem:[#allocation2 + $0xf0] sm:$0xff]
      %v823 = vld [vmem:[#allocation2 + $0xf8] sm:$0xff]
      %v824 = vld [vmem:[#allocation2 + $0x108] sm:$0xff]
      %v825 = vld [vmem:[#allocation2 + $0x110] sm:$0xff]
      %v826 = vld [vmem:[#allocation2 + $0x120] sm:$0xff]
      %v827 = vld [vmem:[#allocation2 + $0x128] sm:$0xff]
      %v828 = vld [vmem:[#allocation2 + $0x138] sm:$0xff]
      %v829 = vld [vmem:[#allocation2 + $0x140] sm:$0xff]
      %v830 = vld [vmem:[#allocation2 + $0x150] sm:$0xff]
      %v831 = vld [vmem:[#allocation2 + $0x158] sm:$0xff]
      %v832 = vld [vmem:[#allocation2 + $0x168] sm:$0xff]
      %v833 = vld [vmem:[#allocation2 + $0x170] sm:$0xff]
      %v834 = vpack.c.bf16 %v803, %v802
      %v835 = vpack.c.bf16 %v805, %v804
      %v836 = vpack.c.bf16 %v807, %v806
      %v837 = vpack.c.bf16 %v809, %v808
      %v838 = vpack.c.bf16 %v811, %v810
      %v839 = vpack.c.bf16 %v813, %v812
      %v840 = vpack.c.bf16 %v815, %v814
      %v841 = vpack.c.bf16 %v817, %v816
      %v842 = vpack.c.bf16 %v819, %v818
      %v843 = vpack.c.bf16 %v821, %v820
      %v844 = vpack.c.bf16 %v823, %v822
      %v845 = vpack.c.bf16 %v825, %v824
      %v846 = vpack.c.bf16 %v827, %v826
      %v847 = vpack.c.bf16 %v829, %v828
      %v848 = vpack.c.bf16 %v831, %v830
      %v849 = vpack.c.bf16 %v833, %v832
      %v866 = vunpack.c.l.b16 %v834
      %v867 = vunpack.c.h.b16 %v834
      %v868 = vunpack.c.l.b16 %v835
      %v869 = vunpack.c.h.b16 %v835
      %v870 = vunpack.c.l.b16 %v836
      %v871 = vunpack.c.h.b16 %v836
      %v872 = vunpack.c.l.b16 %v837
      %v873 = vunpack.c.h.b16 %v837
      %v874 = vunpack.c.l.b16 %v838
      %v875 = vunpack.c.h.b16 %v838
      %v876 = vunpack.c.l.b16 %v839
      %v877 = vunpack.c.h.b16 %v839
      %v878 = vunpack.c.l.b16 %v840
      %v879 = vunpack.c.h.b16 %v840
      %v880 = vunpack.c.l.b16 %v841
      %v881 = vunpack.c.h.b16 %v841
      %v882 = vunpack.c.l.b16 %v842
      %v883 = vunpack.c.h.b16 %v842
      %v884 = vunpack.c.l.b16 %v843
      %v885 = vunpack.c.h.b16 %v843
      %v886 = vunpack.c.l.b16 %v844
      %v887 = vunpack.c.h.b16 %v844
      %v888 = vunpack.c.l.b16 %v845
      %v889 = vunpack.c.h.b16 %v845
      %v890 = vunpack.c.l.b16 %v846
      %v891 = vunpack.c.h.b16 %v846
      %v892 = vunpack.c.l.b16 %v847
      %v893 = vunpack.c.h.b16 %v847
      %v894 = vunpack.c.l.b16 %v848
      %v895 = vunpack.c.h.b16 %v848
      %v896 = vunpack.c.l.b16 %v849
      %v897 = vunpack.c.h.b16 %v849
      %v898 = vpack.c.b16 %v866, %v866
      %v899 = vpack.c.b16 %v867, %v867
      %v900 = vpack.c.b16 %v868, %v868
      %v901 = vpack.c.b16 %v869, %v869
      %v902 = vpack.c.b16 %v870, %v870
      %v903 = vpack.c.b16 %v871, %v871
      %v904 = vpack.c.b16 %v872, %v872
      %v905 = vpack.c.b16 %v873, %v873
      %v906 = vpack.c.b16 %v874, %v874
      %v907 = vpack.c.b16 %v875, %v875
      %v908 = vpack.c.b16 %v876, %v876
      %v909 = vpack.c.b16 %v877, %v877
      %v910 = vpack.c.b16 %v878, %v878
      %v911 = vpack.c.b16 %v879, %v879
      %v912 = vpack.c.b16 %v880, %v880
      %v913 = vpack.c.b16 %v881, %v881
      %v914 = vpack.c.b16 %v882, %v882
      %v915 = vpack.c.b16 %v883, %v883
      %v916 = vpack.c.b16 %v884, %v884
      %v917 = vpack.c.b16 %v885, %v885
      %v918 = vpack.c.b16 %v886, %v886
      %v919 = vpack.c.b16 %v887, %v887
      %v920 = vpack.c.b16 %v888, %v888
      %v921 = vpack.c.b16 %v889, %v889
      %v922 = vpack.c.b16 %v890, %v890
      %v923 = vpack.c.b16 %v891, %v891
      %v924 = vpack.c.b16 %v892, %v892
      %v925 = vpack.c.b16 %v893, %v893
      %v926 = vpack.c.b16 %v894, %v894
      %v927 = vpack.c.b16 %v895, %v895
      %v928 = vpack.c.b16 %v896, %v896
      %v929 = vpack.c.b16 %v897, %v897
      %vm962 = vcmask 27648
      %963 = vst.msk [vmem:[#allocation3] sm:$0xf] %vm962, %v898
      %964 = vst.msk [vmem:[#allocation3 + $0x4] sm:$0xf] %vm962, %v899
      %965 = vst.msk [vmem:[#allocation3 + $0x8] sm:$0xf] %vm962, %v900
      %966 = vst.msk [vmem:[#allocation3 + $0xc] sm:$0xf] %vm962, %v901
      %967 = vst.msk [vmem:[#allocation3 + $0x10] sm:$0xf] %vm962, %v902
      %968 = vst.msk [vmem:[#allocation3 + $0x14] sm:$0xf] %vm962, %v903
      %969 = vst.msk [vmem:[#allocation3 + $0x18] sm:$0xf] %vm962, %v904
      %970 = vst.msk [vmem:[#allocation3 + $0x1c] sm:$0xf] %vm962, %v905
      %971 = vst.msk [vmem:[#allocation3 + $0x20] sm:$0xf] %vm962, %v906
      %972 = vst.msk [vmem:[#allocation3 + $0x24] sm:$0xf] %vm962, %v907
      %973 = vst.msk [vmem:[#allocation3 + $0x28] sm:$0xf] %vm962, %v908
      %974 = vst.msk [vmem:[#allocation3 + $0x2c] sm:$0xf] %vm962, %v909
      %975 = vst.msk [vmem:[#allocation3 + $0x30] sm:$0xf] %vm962, %v910
      %976 = vst.msk [vmem:[#allocation3 + $0x34] sm:$0xf] %vm962, %v911
      %977 = vst.msk [vmem:[#allocation3 + $0x38] sm:$0xf] %vm962, %v912
      %978 = vst.msk [vmem:[#allocation3 + $0x3c] sm:$0xf] %vm962, %v913
      %979 = vst.msk [vmem:[#allocation3 + $0x40] sm:$0xf] %vm962, %v914
      %980 = vst.msk [vmem:[#allocation3 + $0x44] sm:$0xf] %vm962, %v915
      %981 = vst.msk [vmem:[#allocation3 + $0x48] sm:$0xf] %vm962, %v916
      %982 = vst.msk [vmem:[#allocation3 + $0x4c] sm:$0xf] %vm962, %v917
      %983 = vst.msk [vmem:[#allocation3 + $0x50] sm:$0xf] %vm962, %v918
      %984 = vst.msk [vmem:[#allocation3 + $0x54] sm:$0xf] %vm962, %v919
      %985 = vst.msk [vmem:[#allocation3 + $0x58] sm:$0xf] %vm962, %v920
      %986 = vst.msk [vmem:[#allocation3 + $0x5c] sm:$0xf] %vm962, %v921
      %987 = vst.msk [vmem:[#allocation3 + $0x60] sm:$0xf] %vm962, %v922
      %988 = vst.msk [vmem:[#allocation3 + $0x64] sm:$0xf] %vm962, %v923
      %989 = vst.msk [vmem:[#allocation3 + $0x68] sm:$0xf] %vm962, %v924
      %990 = vst.msk [vmem:[#allocation3 + $0x6c] sm:$0xf] %vm962, %v925
      %991 = vst.msk [vmem:[#allocation3 + $0x70] sm:$0xf] %vm962, %v926
      %992 = vst.msk [vmem:[#allocation3 + $0x74] sm:$0xf] %vm962, %v927
      %993 = vst.msk [vmem:[#allocation3 + $0x78] sm:$0xf] %vm962, %v928
      %994 = vst.msk [vmem:[#allocation3 + $0x7c] sm:$0xf] %vm962, %v929
      %v995 = vld [vmem:[#allocation2 + $0x1] sm:$0xff]
      %v996 = vld [vmem:[#allocation2 + $0x9] sm:$0xff]
      %v997 = vld [vmem:[#allocation2 + $0x19] sm:$0xff]
      %v998 = vld [vmem:[#allocation2 + $0x21] sm:$0xff]
      %v999 = vld [vmem:[#allocation2 + $0x31] sm:$0xff]
      %v1000 = vld [vmem:[#allocation2 + $0x39] sm:$0xff]
      %v1001 = vld [vmem:[#allocation2 + $0x49] sm:$0xff]
      %v1002 = vld [vmem:[#allocation2 + $0x51] sm:$0xff]
      %v1003 = vld [vmem:[#allocation2 + $0x61] sm:$0xff]
      %v1004 = vld [vmem:[#allocation2 + $0x69] sm:$0xff]
      %v1005 = vld [vmem:[#allocation2 + $0x79] sm:$0xff]
      %v1006 = vld [vmem:[#allocation2 + $0x81] sm:$0xff]
      %v1007 = vld [vmem:[#allocation2 + $0x91] sm:$0xff]
      %v1008 = vld [vmem:[#allocation2 + $0x99] sm:$0xff]
      %v1009 = vld [vmem:[#allocation2 + $0xa9] sm:$0xff]
      %v1010 = vld [vmem:[#allocation2 + $0xb1] sm:$0xff]
      %v1011 = vld [vmem:[#allocation2 + $0xc1] sm:$0xff]
      %v1012 = vld [vmem:[#allocation2 + $0xc9] sm:$0xff]
      %v1013 = vld [vmem:[#allocation2 + $0xd9] sm:$0xff]
      %v1014 = vld [vmem:[#allocation2 + $0xe1] sm:$0xff]
      %v1015 = vld [vmem:[#allocation2 + $0xf1] sm:$0xff]
      %v1016 = vld [vmem:[#allocation2 + $0xf9] sm:$0xff]
      %v1017 = vld [vmem:[#allocation2 + $0x109] sm:$0xff]
      %v1018 = vld [vmem:[#allocation2 + $0x111] sm:$0xff]
      %v1019 = vld [vmem:[#allocation2 + $0x121] sm:$0xff]
      %v1020 = vld [vmem:[#allocation2 + $0x129] sm:$0xff]
      %v1021 = vld [vmem:[#allocation2 + $0x139] sm:$0xff]
      %v1022 = vld [vmem:[#allocation2 + $0x141] sm:$0xff]
      %v1023 = vld [vmem:[#allocation2 + $0x151] sm:$0xff]
      %v1024 = vld [vmem:[#allocation2 + $0x159] sm:$0xff]
      %v1025 = vld [vmem:[#allocation2 + $0x169] sm:$0xff]
      %v1026 = vld [vmem:[#allocation2 + $0x171] sm:$0xff]
      %v1027 = vpack.c.bf16 %v996, %v995
      %v1028 = vpack.c.bf16 %v998, %v997
      %v1029 = vpack.c.bf16 %v1000, %v999
      %v1030 = vpack.c.bf16 %v1002, %v1001
      %v1031 = vpack.c.bf16 %v1004, %v1003
      %v1032 = vpack.c.bf16 %v1006, %v1005
      %v1033 = vpack.c.bf16 %v1008, %v1007
      %v1034 = vpack.c.bf16 %v1010, %v1009
      %v1035 = vpack.c.bf16 %v1012, %v1011
      %v1036 = vpack.c.bf16 %v1014, %v1013
      %v1037 = vpack.c.bf16 %v1016, %v1015
      %v1038 = vpack.c.bf16 %v1018, %v1017
      %v1039 = vpack.c.bf16 %v1020, %v1019
      %v1040 = vpack.c.bf16 %v1022, %v1021
      %v1041 = vpack.c.bf16 %v1024, %v1023
      %v1042 = vpack.c.bf16 %v1026, %v1025
      %v1059 = vunpack.c.l.b16 %v1027
      %v1060 = vunpack.c.h.b16 %v1027
      %v1061 = vunpack.c.l.b16 %v1028
      %v1062 = vunpack.c.h.b16 %v1028
      %v1063 = vunpack.c.l.b16 %v1029
      %v1064 = vunpack.c.h.b16 %v1029
      %v1065 = vunpack.c.l.b16 %v1030
      %v1066 = vunpack.c.h.b16 %v1030
      %v1067 = vunpack.c.l.b16 %v1031
      %v1068 = vunpack.c.h.b16 %v1031
      %v1069 = vunpack.c.l.b16 %v1032
      %v1070 = vunpack.c.h.b16 %v1032
      %v1071 = vunpack.c.l.b16 %v1033
      %v1072 = vunpack.c.h.b16 %v1033
      %v1073 = vunpack.c.l.b16 %v1034
      %v1074 = vunpack.c.h.b16 %v1034
      %v1075 = vunpack.c.l.b16 %v1035
      %v1076 = vunpack.c.h.b16 %v1035
      %v1077 = vunpack.c.l.b16 %v1036
      %v1078 = vunpack.c.h.b16 %v1036
      %v1079 = vunpack.c.l.b16 %v1037
      %v1080 = vunpack.c.h.b16 %v1037
      %v1081 = vunpack.c.l.b16 %v1038
      %v1082 = vunpack.c.h.b16 %v1038
      %v1083 = vunpack.c.l.b16 %v1039
      %v1084 = vunpack.c.h.b16 %v1039
      %v1085 = vunpack.c.l.b16 %v1040
      %v1086 = vunpack.c.h.b16 %v1040
      %v1087 = vunpack.c.l.b16 %v1041
      %v1088 = vunpack.c.h.b16 %v1041
      %v1089 = vunpack.c.l.b16 %v1042
      %v1090 = vunpack.c.h.b16 %v1042
      %v1091 = vpack.c.b16 %v1059, %v1059
      %v1092 = vpack.c.b16 %v1060, %v1060
      %v1093 = vpack.c.b16 %v1061, %v1061
      %v1094 = vpack.c.b16 %v1062, %v1062
      %v1095 = vpack.c.b16 %v1063, %v1063
      %v1096 = vpack.c.b16 %v1064, %v1064
      %v1097 = vpack.c.b16 %v1065, %v1065
      %v1098 = vpack.c.b16 %v1066, %v1066
      %v1099 = vpack.c.b16 %v1067, %v1067
      %v1100 = vpack.c.b16 %v1068, %v1068
      %v1101 = vpack.c.b16 %v1069, %v1069
      %v1102 = vpack.c.b16 %v1070, %v1070
      %v1103 = vpack.c.b16 %v1071, %v1071
      %v1104 = vpack.c.b16 %v1072, %v1072
      %v1105 = vpack.c.b16 %v1073, %v1073
      %v1106 = vpack.c.b16 %v1074, %v1074
      %v1107 = vpack.c.b16 %v1075, %v1075
      %v1108 = vpack.c.b16 %v1076, %v1076
      %v1109 = vpack.c.b16 %v1077, %v1077
      %v1110 = vpack.c.b16 %v1078, %v1078
      %v1111 = vpack.c.b16 %v1079, %v1079
      %v1112 = vpack.c.b16 %v1080, %v1080
      %v1113 = vpack.c.b16 %v1081, %v1081
      %v1114 = vpack.c.b16 %v1082, %v1082
      %v1115 = vpack.c.b16 %v1083, %v1083
      %v1116 = vpack.c.b16 %v1084, %v1084
      %v1117 = vpack.c.b16 %v1085, %v1085
      %v1118 = vpack.c.b16 %v1086, %v1086
      %v1119 = vpack.c.b16 %v1087, %v1087
      %v1120 = vpack.c.b16 %v1088, %v1088
      %v1121 = vpack.c.b16 %v1089, %v1089
      %v1122 = vpack.c.b16 %v1090, %v1090
      %1123 = vrot.lane.b32.xlu0 %v1091, 4
      %v1124 = vpop.permute.xlu0 %1123
      %1125 = vrot.lane.b32.xlu0 %v1092, 4
      %v1126 = vpop.permute.xlu0 %1125
      %1127 = vrot.lane.b32.xlu0 %v1093, 4
      %v1128 = vpop.permute.xlu0 %1127
      %1129 = vrot.lane.b32.xlu0 %v1094, 4
      %v1130 = vpop.permute.xlu0 %1129
      %1131 = vrot.lane.b32.xlu0 %v1095, 4
      %v1132 = vpop.permute.xlu0 %1131
      %1133 = vrot.lane.b32.xlu0 %v1096, 4
      %v1134 = vpop.permute.xlu0 %1133
      %1135 = vrot.lane.b32.xlu0 %v1097, 4
      %v1136 = vpop.permute.xlu0 %1135
      %1137 = vrot.lane.b32.xlu0 %v1098, 4
      %v1138 = vpop.permute.xlu0 %1137
      %1139 = vrot.lane.b32.xlu0 %v1099, 4
      %v1140 = vpop.permute.xlu0 %1139
      %1141 = vrot.lane.b32.xlu0 %v1100, 4
      %v1142 = vpop.permute.xlu0 %1141
      %1143 = vrot.lane.b32.xlu0 %v1101, 4
      %v1144 = vpop.permute.xlu0 %1143
      %1145 = vrot.lane.b32.xlu0 %v1102, 4
      %v1146 = vpop.permute.xlu0 %1145
      %1147 = vrot.lane.b32.xlu0 %v1103, 4
      %v1148 = vpop.permute.xlu0 %1147
      %1149 = vrot.lane.b32.xlu0 %v1104, 4
      %v1150 = vpop.permute.xlu0 %1149
      %1151 = vrot.lane.b32.xlu0 %v1105, 4
      %v1152 = vpop.permute.xlu0 %1151
      %1153 = vrot.lane.b32.xlu0 %v1106, 4
      %v1154 = vpop.permute.xlu0 %1153
      %1155 = vrot.lane.b32.xlu0 %v1107, 4
      %v1156 = vpop.permute.xlu0 %1155
      %1157 = vrot.lane.b32.xlu0 %v1108, 4
      %v1158 = vpop.permute.xlu0 %1157
      %1159 = vrot.lane.b32.xlu0 %v1109, 4
      %v1160 = vpop.permute.xlu0 %1159
      %1161 = vrot.lane.b32.xlu0 %v1110, 4
      %v1162 = vpop.permute.xlu0 %1161
      %1163 = vrot.lane.b32.xlu0 %v1111, 4
      %v1164 = vpop.permute.xlu0 %1163
      %1165 = vrot.lane.b32.xlu0 %v1112, 4
      %v1166 = vpop.permute.xlu0 %1165
      %1167 = vrot.lane.b32.xlu0 %v1113, 4
      %v1168 = vpop.permute.xlu0 %1167
      %1169 = vrot.lane.b32.xlu0 %v1114, 4
      %v1170 = vpop.permute.xlu0 %1169
      %1171 = vrot.lane.b32.xlu0 %v1115, 4
      %v1172 = vpop.permute.xlu0 %1171
      %1173 = vrot.lane.b32.xlu0 %v1116, 4
      %v1174 = vpop.permute.xlu0 %1173
      %1175 = vrot.lane.b32.xlu0 %v1117, 4
      %v1176 = vpop.permute.xlu0 %1175
      %1177 = vrot.lane.b32.xlu0 %v1118, 4
      %v1178 = vpop.permute.xlu0 %1177
      %1179 = vrot.lane.b32.xlu0 %v1119, 4
      %v1180 = vpop.permute.xlu0 %1179
      %1181 = vrot.lane.b32.xlu0 %v1120, 4
      %v1182 = vpop.permute.xlu0 %1181
      %1183 = vrot.lane.b32.xlu0 %v1121, 4
      %v1184 = vpop.permute.xlu0 %1183
      %1185 = vrot.lane.b32.xlu0 %v1122, 4
      %v1186 = vpop.permute.xlu0 %1185
      %vm1219 = vcmask 60448
      %1220 = vst.msk [vmem:[#allocation3] sm:$0xf] %vm1219, %v1124
      %1221 = vst.msk [vmem:[#allocation3 + $0x4] sm:$0xf] %vm1219, %v1126
      %1222 = vst.msk [vmem:[#allocation3 + $0x8] sm:$0xf] %vm1219, %v1128
      %1223 = vst.msk [vmem:[#allocation3 + $0xc] sm:$0xf] %vm1219, %v1130
      %1224 = vst.msk [vmem:[#allocation3 + $0x10] sm:$0xf] %vm1219, %v1132
      %1225 = vst.msk [vmem:[#allocation3 + $0x14] sm:$0xf] %vm1219, %v1134
      %1226 = vst.msk [vmem:[#allocation3 + $0x18] sm:$0xf] %vm1219, %v1136
      %1227 = vst.msk [vmem:[#allocation3 + $0x1c] sm:$0xf] %vm1219, %v1138
      %1228 = vst.msk [vmem:[#allocation3 + $0x20] sm:$0xf] %vm1219, %v1140
      %1229 = vst.msk [vmem:[#allocation3 + $0x24] sm:$0xf] %vm1219, %v1142
      %1230 = vst.msk [vmem:[#allocation3 + $0x28] sm:$0xf] %vm1219, %v1144
      %1231 = vst.msk [vmem:[#allocation3 + $0x2c] sm:$0xf] %vm1219, %v1146
      %1232 = vst.msk [vmem:[#allocation3 + $0x30] sm:$0xf] %vm1219, %v1148
      %1233 = vst.msk [vmem:[#allocation3 + $0x34] sm:$0xf] %vm1219, %v1150
      %1234 = vst.msk [vmem:[#allocation3 + $0x38] sm:$0xf] %vm1219, %v1152
      %1235 = vst.msk [vmem:[#allocation3 + $0x3c] sm:$0xf] %vm1219, %v1154
      %1236 = vst.msk [vmem:[#allocation3 + $0x40] sm:$0xf] %vm1219, %v1156
      %1237 = vst.msk [vmem:[#allocation3 + $0x44] sm:$0xf] %vm1219, %v1158
      %1238 = vst.msk [vmem:[#allocation3 + $0x48] sm:$0xf] %vm1219, %v1160
      %1239 = vst.msk [vmem:[#allocation3 + $0x4c] sm:$0xf] %vm1219, %v1162
      %1240 = vst.msk [vmem:[#allocation3 + $0x50] sm:$0xf] %vm1219, %v1164
      %1241 = vst.msk [vmem:[#allocation3 + $0x54] sm:$0xf] %vm1219, %v1166
      %1242 = vst.msk [vmem:[#allocation3 + $0x58] sm:$0xf] %vm1219, %v1168
      %1243 = vst.msk [vmem:[#allocation3 + $0x5c] sm:$0xf] %vm1219, %v1170
      %1244 = vst.msk [vmem:[#allocation3 + $0x60] sm:$0xf] %vm1219, %v1172
      %1245 = vst.msk [vmem:[#allocation3 + $0x64] sm:$0xf] %vm1219, %v1174
      %1246 = vst.msk [vmem:[#allocation3 + $0x68] sm:$0xf] %vm1219, %v1176
      %1247 = vst.msk [vmem:[#allocation3 + $0x6c] sm:$0xf] %vm1219, %v1178
      %1248 = vst.msk [vmem:[#allocation3 + $0x70] sm:$0xf] %vm1219, %v1180
      %1249 = vst.msk [vmem:[#allocation3 + $0x74] sm:$0xf] %vm1219, %v1182
      %1250 = vst.msk [vmem:[#allocation3 + $0x78] sm:$0xf] %vm1219, %v1184
      %1251 = vst.msk [vmem:[#allocation3 + $0x7c] sm:$0xf] %vm1219, %v1186
      %v1252 = vld [vmem:[#allocation2 + $0x2] sm:$0xff]
      %v1253 = vld [vmem:[#allocation2 + $0xa] sm:$0xff]
      %v1254 = vld [vmem:[#allocation2 + $0x1a] sm:$0xff]
      %v1255 = vld [vmem:[#allocation2 + $0x22] sm:$0xff]
      %v1256 = vld [vmem:[#allocation2 + $0x32] sm:$0xff]
      %v1257 = vld [vmem:[#allocation2 + $0x3a] sm:$0xff]
      %v1258 = vld [vmem:[#allocation2 + $0x4a] sm:$0xff]
      %v1259 = vld [vmem:[#allocation2 + $0x52] sm:$0xff]
      %v1260 = vld [vmem:[#allocation2 + $0x62] sm:$0xff]
      %v1261 = vld [vmem:[#allocation2 + $0x6a] sm:$0xff]
      %v1262 = vld [vmem:[#allocation2 + $0x7a] sm:$0xff]
      %v1263 = vld [vmem:[#allocation2 + $0x82] sm:$0xff]
      %v1264 = vld [vmem:[#allocation2 + $0x92] sm:$0xff]
      %v1265 = vld [vmem:[#allocation2 + $0x9a] sm:$0xff]
      %v1266 = vld [vmem:[#allocation2 + $0xaa] sm:$0xff]
      %v1267 = vld [vmem:[#allocation2 + $0xb2] sm:$0xff]
      %v1268 = vld [vmem:[#allocation2 + $0xc2] sm:$0xff]
      %v1269 = vld [vmem:[#allocation2 + $0xca] sm:$0xff]
      %v1270 = vld [vmem:[#allocation2 + $0xda] sm:$0xff]
      %v1271 = vld [vmem:[#allocation2 + $0xe2] sm:$0xff]
      %v1272 = vld [vmem:[#allocation2 + $0xf2] sm:$0xff]
      %v1273 = vld [vmem:[#allocation2 + $0xfa] sm:$0xff]
      %v1274 = vld [vmem:[#allocation2 + $0x10a] sm:$0xff]
      %v1275 = vld [vmem:[#allocation2 + $0x112] sm:$0xff]
      %v1276 = vld [vmem:[#allocation2 + $0x122] sm:$0xff]
      %v1277 = vld [vmem:[#allocation2 + $0x12a] sm:$0xff]
      %v1278 = vld [vmem:[#allocation2 + $0x13a] sm:$0xff]
      %v1279 = vld [vmem:[#allocation2 + $0x142] sm:$0xff]
      %v1280 = vld [vmem:[#allocation2 + $0x152] sm:$0xff]
      %v1281 = vld [vmem:[#allocation2 + $0x15a] sm:$0xff]
      %v1282 = vld [vmem:[#allocation2 + $0x16a] sm:$0xff]
      %v1283 = vld [vmem:[#allocation2 + $0x172] sm:$0xff]
      %v1284 = vpack.c.bf16 %v1253, %v1252
      %v1285 = vpack.c.bf16 %v1255, %v1254
      %v1286 = vpack.c.bf16 %v1257, %v1256
      %v1287 = vpack.c.bf16 %v1259, %v1258
      %v1288 = vpack.c.bf16 %v1261, %v1260
      %v1289 = vpack.c.bf16 %v1263, %v1262
      %v1290 = vpack.c.bf16 %v1265, %v1264
      %v1291 = vpack.c.bf16 %v1267, %v1266
      %v1292 = vpack.c.bf16 %v1269, %v1268
      %v1293 = vpack.c.bf16 %v1271, %v1270
      %v1294 = vpack.c.bf16 %v1273, %v1272
      %v1295 = vpack.c.bf16 %v1275, %v1274
      %v1296 = vpack.c.bf16 %v1277, %v1276
      %v1297 = vpack.c.bf16 %v1279, %v1278
      %v1298 = vpack.c.bf16 %v1281, %v1280
      %v1299 = vpack.c.bf16 %v1283, %v1282
      %v1316 = vunpack.c.l.b16 %v1284
      %v1317 = vunpack.c.h.b16 %v1284
      %v1318 = vunpack.c.l.b16 %v1285
      %v1319 = vunpack.c.h.b16 %v1285
      %v1320 = vunpack.c.l.b16 %v1286
      %v1321 = vunpack.c.h.b16 %v1286
      %v1322 = vunpack.c.l.b16 %v1287
      %v1323 = vunpack.c.h.b16 %v1287
      %v1324 = vunpack.c.l.b16 %v1288
      %v1325 = vunpack.c.h.b16 %v1288
      %v1326 = vunpack.c.l.b16 %v1289
      %v1327 = vunpack.c.h.b16 %v1289
      %v1328 = vunpack.c.l.b16 %v1290
      %v1329 = vunpack.c.h.b16 %v1290
      %v1330 = vunpack.c.l.b16 %v1291
      %v1331 = vunpack.c.h.b16 %v1291
      %v1332 = vunpack.c.l.b16 %v1292
      %v1333 = vunpack.c.h.b16 %v1292
      %v1334 = vunpack.c.l.b16 %v1293
      %v1335 = vunpack.c.h.b16 %v1293
      %v1336 = vunpack.c.l.b16 %v1294
      %v1337 = vunpack.c.h.b16 %v1294
      %v1338 = vunpack.c.l.b16 %v1295
      %v1339 = vunpack.c.h.b16 %v1295
      %v1340 = vunpack.c.l.b16 %v1296
      %v1341 = vunpack.c.h.b16 %v1296
      %v1342 = vunpack.c.l.b16 %v1297
      %v1343 = vunpack.c.h.b16 %v1297
      %v1344 = vunpack.c.l.b16 %v1298
      %v1345 = vunpack.c.h.b16 %v1298
      %v1346 = vunpack.c.l.b16 %v1299
      %v1347 = vunpack.c.h.b16 %v1299
      %v1348 = vpack.c.b16 %v1316, %v1316
      %v1349 = vpack.c.b16 %v1317, %v1317
      %v1350 = vpack.c.b16 %v1318, %v1318
      %v1351 = vpack.c.b16 %v1319, %v1319
      %v1352 = vpack.c.b16 %v1320, %v1320
      %v1353 = vpack.c.b16 %v1321, %v1321
      %v1354 = vpack.c.b16 %v1322, %v1322
      %v1355 = vpack.c.b16 %v1323, %v1323
      %v1356 = vpack.c.b16 %v1324, %v1324
      %v1357 = vpack.c.b16 %v1325, %v1325
      %v1358 = vpack.c.b16 %v1326, %v1326
      %v1359 = vpack.c.b16 %v1327, %v1327
      %v1360 = vpack.c.b16 %v1328, %v1328
      %v1361 = vpack.c.b16 %v1329, %v1329
      %v1362 = vpack.c.b16 %v1330, %v1330
      %v1363 = vpack.c.b16 %v1331, %v1331
      %v1364 = vpack.c.b16 %v1332, %v1332
      %v1365 = vpack.c.b16 %v1333, %v1333
      %v1366 = vpack.c.b16 %v1334, %v1334
      %v1367 = vpack.c.b16 %v1335, %v1335
      %v1368 = vpack.c.b16 %v1336, %v1336
      %v1369 = vpack.c.b16 %v1337, %v1337
      %v1370 = vpack.c.b16 %v1338, %v1338
      %v1371 = vpack.c.b16 %v1339, %v1339
      %v1372 = vpack.c.b16 %v1340, %v1340
      %v1373 = vpack.c.b16 %v1341, %v1341
      %v1374 = vpack.c.b16 %v1342, %v1342
      %v1375 = vpack.c.b16 %v1343, %v1343
      %v1376 = vpack.c.b16 %v1344, %v1344
      %v1377 = vpack.c.b16 %v1345, %v1345
      %v1378 = vpack.c.b16 %v1346, %v1346
      %v1379 = vpack.c.b16 %v1347, %v1347
      %1380 = vrot.lane.b32.xlu0 %v1348, 8
      %v1381 = vpop.permute.xlu0 %1380
      %1382 = vrot.lane.b32.xlu0 %v1349, 8
      %v1383 = vpop.permute.xlu0 %1382
      %1384 = vrot.lane.b32.xlu0 %v1350, 8
      %v1385 = vpop.permute.xlu0 %1384
      %1386 = vrot.lane.b32.xlu0 %v1351, 8
      %v1387 = vpop.permute.xlu0 %1386
      %1388 = vrot.lane.b32.xlu0 %v1352, 8
      %v1389 = vpop.permute.xlu0 %1388
      %1390 = vrot.lane.b32.xlu0 %v1353, 8
      %v1391 = vpop.permute.xlu0 %1390
      %1392 = vrot.lane.b32.xlu0 %v1354, 8
      %v1393 = vpop.permute.xlu0 %1392
      %1394 = vrot.lane.b32.xlu0 %v1355, 8
      %v1395 = vpop.permute.xlu0 %1394
      %1396 = vrot.lane.b32.xlu0 %v1356, 8
      %v1397 = vpop.permute.xlu0 %1396
      %1398 = vrot.lane.b32.xlu0 %v1357, 8
      %v1399 = vpop.permute.xlu0 %1398
      %1400 = vrot.lane.b32.xlu0 %v1358, 8
      %v1401 = vpop.permute.xlu0 %1400
      %1402 = vrot.lane.b32.xlu0 %v1359, 8
      %v1403 = vpop.permute.xlu0 %1402
      %1404 = vrot.lane.b32.xlu0 %v1360, 8
      %v1405 = vpop.permute.xlu0 %1404
      %1406 = vrot.lane.b32.xlu0 %v1361, 8
      %v1407 = vpop.permute.xlu0 %1406
      %1408 = vrot.lane.b32.xlu0 %v1362, 8
      %v1409 = vpop.permute.xlu0 %1408
      %1410 = vrot.lane.b32.xlu0 %v1363, 8
      %v1411 = vpop.permute.xlu0 %1410
      %1412 = vrot.lane.b32.xlu0 %v1364, 8
      %v1413 = vpop.permute.xlu0 %1412
      %1414 = vrot.lane.b32.xlu0 %v1365, 8
      %v1415 = vpop.permute.xlu0 %1414
      %1416 = vrot.lane.b32.xlu0 %v1366, 8
      %v1417 = vpop.permute.xlu0 %1416
      %1418 = vrot.lane.b32.xlu0 %v1367, 8
      %v1419 = vpop.permute.xlu0 %1418
      %1420 = vrot.lane.b32.xlu0 %v1368, 8
      %v1421 = vpop.permute.xlu0 %1420
      %1422 = vrot.lane.b32.xlu0 %v1369, 8
      %v1423 = vpop.permute.xlu0 %1422
      %1424 = vrot.lane.b32.xlu0 %v1370, 8
      %v1425 = vpop.permute.xlu0 %1424
      %1426 = vrot.lane.b32.xlu0 %v1371, 8
      %v1427 = vpop.permute.xlu0 %1426
      %1428 = vrot.lane.b32.xlu0 %v1372, 8
      %v1429 = vpop.permute.xlu0 %1428
      %1430 = vrot.lane.b32.xlu0 %v1373, 8
      %v1431 = vpop.permute.xlu0 %1430
      %1432 = vrot.lane.b32.xlu0 %v1374, 8
      %v1433 = vpop.permute.xlu0 %1432
      %1434 = vrot.lane.b32.xlu0 %v1375, 8
      %v1435 = vpop.permute.xlu0 %1434
      %1436 = vrot.lane.b32.xlu0 %v1376, 8
      %v1437 = vpop.permute.xlu0 %1436
      %1438 = vrot.lane.b32.xlu0 %v1377, 8
      %v1439 = vpop.permute.xlu0 %1438
      %1440 = vrot.lane.b32.xlu0 %v1378, 8
      %v1441 = vpop.permute.xlu0 %1440
      %1442 = vrot.lane.b32.xlu0 %v1379, 8
      %v1443 = vpop.permute.xlu0 %1442
      %vm1476 = vcmask 93248
      %1477 = vst.msk [vmem:[#allocation3] sm:$0xf] %vm1476, %v1381
      %1478 = vst.msk [vmem:[#allocation3 + $0x4] sm:$0xf] %vm1476, %v1383
      %1479 = vst.msk [vmem:[#allocation3 + $0x8] sm:$0xf] %vm1476, %v1385
      %1480 = vst.msk [vmem:[#allocation3 + $0xc] sm:$0xf] %vm1476, %v1387
      %1481 = vst.msk [vmem:[#allocation3 + $0x10] sm:$0xf] %vm1476, %v1389
      %1482 = vst.msk [vmem:[#allocation3 + $0x14] sm:$0xf] %vm1476, %v1391
      %1483 = vst.msk [vmem:[#allocation3 + $0x18] sm:$0xf] %vm1476, %v1393
      %1484 = vst.msk [vmem:[#allocation3 + $0x1c] sm:$0xf] %vm1476, %v1395
      %1485 = vst.msk [vmem:[#allocation3 + $0x20] sm:$0xf] %vm1476, %v1397
      %1486 = vst.msk [vmem:[#allocation3 + $0x24] sm:$0xf] %vm1476, %v1399
      %1487 = vst.msk [vmem:[#allocation3 + $0x28] sm:$0xf] %vm1476, %v1401
      %1488 = vst.msk [vmem:[#allocation3 + $0x2c] sm:$0xf] %vm1476, %v1403
      %1489 = vst.msk [vmem:[#allocation3 + $0x30] sm:$0xf] %vm1476, %v1405
      %1490 = vst.msk [vmem:[#allocation3 + $0x34] sm:$0xf] %vm1476, %v1407
      %1491 = vst.msk [vmem:[#allocation3 + $0x38] sm:$0xf] %vm1476, %v1409
      %1492 = vst.msk [vmem:[#allocation3 + $0x3c] sm:$0xf] %vm1476, %v1411
      %1493 = vst.msk [vmem:[#allocation3 + $0x40] sm:$0xf] %vm1476, %v1413
      %1494 = vst.msk [vmem:[#allocation3 + $0x44] sm:$0xf] %vm1476, %v1415
      %1495 = vst.msk [vmem:[#allocation3 + $0x48] sm:$0xf] %vm1476, %v1417
      %1496 = vst.msk [vmem:[#allocation3 + $0x4c] sm:$0xf] %vm1476, %v1419
      %1497 = vst.msk [vmem:[#allocation3 + $0x50] sm:$0xf] %vm1476, %v1421
      %1498 = vst.msk [vmem:[#allocation3 + $0x54] sm:$0xf] %vm1476, %v1423
      %1499 = vst.msk [vmem:[#allocation3 + $0x58] sm:$0xf] %vm1476, %v1425
      %1500 = vst.msk [vmem:[#allocation3 + $0x5c] sm:$0xf] %vm1476, %v1427
      %1501 = vst.msk [vmem:[#allocation3 + $0x60] sm:$0xf] %vm1476, %v1429
      %1502 = vst.msk [vmem:[#allocation3 + $0x64] sm:$0xf] %vm1476, %v1431
      %1503 = vst.msk [vmem:[#allocation3 + $0x68] sm:$0xf] %vm1476, %v1433
      %1504 = vst.msk [vmem:[#allocation3 + $0x6c] sm:$0xf] %vm1476, %v1435
      %1505 = vst.msk [vmem:[#allocation3 + $0x70] sm:$0xf] %vm1476, %v1437
      %1506 = vst.msk [vmem:[#allocation3 + $0x74] sm:$0xf] %vm1476, %v1439
      %1507 = vst.msk [vmem:[#allocation3 + $0x78] sm:$0xf] %vm1476, %v1441
      %1508 = vst.msk [vmem:[#allocation3 + $0x7c] sm:$0xf] %vm1476, %v1443
      %s1509 = scalar_lea.vmem [#allocation2], 24
      %v1510 = vld [vmem:[%s1509] sm:$0xff]
      %v1511 = vld [vmem:[%s1509 + $0x8] sm:$0xff]
      %v1512 = vld [vmem:[%s1509 + $0x18] sm:$0xff]
      %v1513 = vld [vmem:[%s1509 + $0x20] sm:$0xff]
      %v1514 = vld [vmem:[%s1509 + $0x30] sm:$0xff]
      %v1515 = vld [vmem:[%s1509 + $0x38] sm:$0xff]
      %v1516 = vld [vmem:[%s1509 + $0x48] sm:$0xff]
      %v1517 = vld [vmem:[%s1509 + $0x50] sm:$0xff]
      %v1518 = vld [vmem:[%s1509 + $0x60] sm:$0xff]
      %v1519 = vld [vmem:[%s1509 + $0x68] sm:$0xff]
      %v1520 = vld [vmem:[%s1509 + $0x78] sm:$0xff]
      %v1521 = vld [vmem:[%s1509 + $0x80] sm:$0xff]
      %v1522 = vld [vmem:[%s1509 + $0x90] sm:$0xff]
      %v1523 = vld [vmem:[%s1509 + $0x98] sm:$0xff]
      %v1524 = vld [vmem:[%s1509 + $0xa8] sm:$0xff]
      %v1525 = vld [vmem:[%s1509 + $0xb0] sm:$0xff]
      %v1526 = vld [vmem:[%s1509 + $0xc0] sm:$0xff]
      %v1527 = vld [vmem:[%s1509 + $0xc8] sm:$0xff]
      %v1528 = vld [vmem:[%s1509 + $0xd8] sm:$0xff]
      %v1529 = vld [vmem:[%s1509 + $0xe0] sm:$0xff]
      %v1530 = vld [vmem:[%s1509 + $0xf0] sm:$0xff]
      %v1531 = vld [vmem:[%s1509 + $0xf8] sm:$0xff]
      %v1532 = vld [vmem:[%s1509 + $0x108] sm:$0xff]
      %v1533 = vld [vmem:[%s1509 + $0x110] sm:$0xff]
      %v1534 = vld [vmem:[%s1509 + $0x120] sm:$0xff]
      %v1535 = vld [vmem:[%s1509 + $0x128] sm:$0xff]
      %v1536 = vld [vmem:[%s1509 + $0x138] sm:$0xff]
      %v1537 = vld [vmem:[%s1509 + $0x140] sm:$0xff]
      %v1538 = vld [vmem:[%s1509 + $0x150] sm:$0xff]
      %v1539 = vld [vmem:[%s1509 + $0x158] sm:$0xff]
      %v1540 = vld [vmem:[%s1509 + $0x168] sm:$0xff]
      %v1541 = vld [vmem:[%s1509 + $0x170] sm:$0xff]
      %v1542 = vpack.c.bf16 %v1511, %v1510
      %v1543 = vpack.c.bf16 %v1513, %v1512
      %v1544 = vpack.c.bf16 %v1515, %v1514
      %v1545 = vpack.c.bf16 %v1517, %v1516
      %v1546 = vpack.c.bf16 %v1519, %v1518
      %v1547 = vpack.c.bf16 %v1521, %v1520
      %v1548 = vpack.c.bf16 %v1523, %v1522
      %v1549 = vpack.c.bf16 %v1525, %v1524
      %v1550 = vpack.c.bf16 %v1527, %v1526
      %v1551 = vpack.c.bf16 %v1529, %v1528
      %v1552 = vpack.c.bf16 %v1531, %v1530
      %v1553 = vpack.c.bf16 %v1533, %v1532
      %v1554 = vpack.c.bf16 %v1535, %v1534
      %v1555 = vpack.c.bf16 %v1537, %v1536
      %v1556 = vpack.c.bf16 %v1539, %v1538
      %v1557 = vpack.c.bf16 %v1541, %v1540
      %v1574 = vunpack.c.l.b16 %v1542
      %v1575 = vunpack.c.h.b16 %v1542
      %v1576 = vunpack.c.l.b16 %v1543
      %v1577 = vunpack.c.h.b16 %v1543
      %v1578 = vunpack.c.l.b16 %v1544
      %v1579 = vunpack.c.h.b16 %v1544
      %v1580 = vunpack.c.l.b16 %v1545
      %v1581 = vunpack.c.h.b16 %v1545
      %v1582 = vunpack.c.l.b16 %v1546
      %v1583 = vunpack.c.h.b16 %v1546
      %v1584 = vunpack.c.l.b16 %v1547
      %v1585 = vunpack.c.h.b16 %v1547
      %v1586 = vunpack.c.l.b16 %v1548
      %v1587 = vunpack.c.h.b16 %v1548
      %v1588 = vunpack.c.l.b16 %v1549
      %v1589 = vunpack.c.h.b16 %v1549
      %v1590 = vunpack.c.l.b16 %v1550
      %v1591 = vunpack.c.h.b16 %v1550
      %v1592 = vunpack.c.l.b16 %v1551
      %v1593 = vunpack.c.h.b16 %v1551
      %v1594 = vunpack.c.l.b16 %v1552
      %v1595 = vunpack.c.h.b16 %v1552
      %v1596 = vunpack.c.l.b16 %v1553
      %v1597 = vunpack.c.h.b16 %v1553
      %v1598 = vunpack.c.l.b16 %v1554
      %v1599 = vunpack.c.h.b16 %v1554
      %v1600 = vunpack.c.l.b16 %v1555
      %v1601 = vunpack.c.h.b16 %v1555
      %v1602 = vunpack.c.l.b16 %v1556
      %v1603 = vunpack.c.h.b16 %v1556
      %v1604 = vunpack.c.l.b16 %v1557
      %v1605 = vunpack.c.h.b16 %v1557
      %v1606 = vpack.c.b16 %v1574, %v1574
      %v1607 = vpack.c.b16 %v1575, %v1575
      %v1608 = vpack.c.b16 %v1576, %v1576
      %v1609 = vpack.c.b16 %v1577, %v1577
      %v1610 = vpack.c.b16 %v1578, %v1578
      %v1611 = vpack.c.b16 %v1579, %v1579
      %v1612 = vpack.c.b16 %v1580, %v1580
      %v1613 = vpack.c.b16 %v1581, %v1581
      %v1614 = vpack.c.b16 %v1582, %v1582
      %v1615 = vpack.c.b16 %v1583, %v1583
      %v1616 = vpack.c.b16 %v1584, %v1584
      %v1617 = vpack.c.b16 %v1585, %v1585
      %v1618 = vpack.c.b16 %v1586, %v1586
      %v1619 = vpack.c.b16 %v1587, %v1587
      %v1620 = vpack.c.b16 %v1588, %v1588
      %v1621 = vpack.c.b16 %v1589, %v1589
      %v1622 = vpack.c.b16 %v1590, %v1590
      %v1623 = vpack.c.b16 %v1591, %v1591
      %v1624 = vpack.c.b16 %v1592, %v1592
      %v1625 = vpack.c.b16 %v1593, %v1593
      %v1626 = vpack.c.b16 %v1594, %v1594
      %v1627 = vpack.c.b16 %v1595, %v1595
      %v1628 = vpack.c.b16 %v1596, %v1596
      %v1629 = vpack.c.b16 %v1597, %v1597
      %v1630 = vpack.c.b16 %v1598, %v1598
      %v1631 = vpack.c.b16 %v1599, %v1599
      %v1632 = vpack.c.b16 %v1600, %v1600
      %v1633 = vpack.c.b16 %v1601, %v1601
      %v1634 = vpack.c.b16 %v1602, %v1602
      %v1635 = vpack.c.b16 %v1603, %v1603
      %v1636 = vpack.c.b16 %v1604, %v1604
      %v1637 = vpack.c.b16 %v1605, %v1605
      %1638 = vrot.lane.b32.xlu0 %v1606, 12
      %v1639 = vpop.permute.xlu0 %1638
      %1640 = vrot.lane.b32.xlu0 %v1607, 12
      %v1641 = vpop.permute.xlu0 %1640
      %1642 = vrot.lane.b32.xlu0 %v1608, 12
      %v1643 = vpop.permute.xlu0 %1642
      %1644 = vrot.lane.b32.xlu0 %v1609, 12
      %v1645 = vpop.permute.xlu0 %1644
      %1646 = vrot.lane.b32.xlu0 %v1610, 12
      %v1647 = vpop.permute.xlu0 %1646
      %1648 = vrot.lane.b32.xlu0 %v1611, 12
      %v1649 = vpop.permute.xlu0 %1648
      %1650 = vrot.lane.b32.xlu0 %v1612, 12
      %v1651 = vpop.permute.xlu0 %1650
      %1652 = vrot.lane.b32.xlu0 %v1613, 12
      %v1653 = vpop.permute.xlu0 %1652
      %1654 = vrot.lane.b32.xlu0 %v1614, 12
      %v1655 = vpop.permute.xlu0 %1654
      %1656 = vrot.lane.b32.xlu0 %v1615, 12
      %v1657 = vpop.permute.xlu0 %1656
      %1658 = vrot.lane.b32.xlu0 %v1616, 12
      %v1659 = vpop.permute.xlu0 %1658
      %1660 = vrot.lane.b32.xlu0 %v1617, 12
      %v1661 = vpop.permute.xlu0 %1660
      %1662 = vrot.lane.b32.xlu0 %v1618, 12
      %v1663 = vpop.permute.xlu0 %1662
      %1664 = vrot.lane.b32.xlu0 %v1619, 12
      %v1665 = vpop.permute.xlu0 %1664
      %1666 = vrot.lane.b32.xlu0 %v1620, 12
      %v1667 = vpop.permute.xlu0 %1666
      %1668 = vrot.lane.b32.xlu0 %v1621, 12
      %v1669 = vpop.permute.xlu0 %1668
      %1670 = vrot.lane.b32.xlu0 %v1622, 12
      %v1671 = vpop.permute.xlu0 %1670
      %1672 = vrot.lane.b32.xlu0 %v1623, 12
      %v1673 = vpop.permute.xlu0 %1672
      %1674 = vrot.lane.b32.xlu0 %v1624, 12
      %v1675 = vpop.permute.xlu0 %1674
      %1676 = vrot.lane.b32.xlu0 %v1625, 12
      %v1677 = vpop.permute.xlu0 %1676
      %1678 = vrot.lane.b32.xlu0 %v1626, 12
      %v1679 = vpop.permute.xlu0 %1678
      %1680 = vrot.lane.b32.xlu0 %v1627, 12
      %v1681 = vpop.permute.xlu0 %1680
      %1682 = vrot.lane.b32.xlu0 %v1628, 12
      %v1683 = vpop.permute.xlu0 %1682
      %1684 = vrot.lane.b32.xlu0 %v1629, 12
      %v1685 = vpop.permute.xlu0 %1684
      %1686 = vrot.lane.b32.xlu0 %v1630, 12
      %v1687 = vpop.permute.xlu0 %1686
      %1688 = vrot.lane.b32.xlu0 %v1631, 12
      %v1689 = vpop.permute.xlu0 %1688
      %1690 = vrot.lane.b32.xlu0 %v1632, 12
      %v1691 = vpop.permute.xlu0 %1690
      %1692 = vrot.lane.b32.xlu0 %v1633, 12
      %v1693 = vpop.permute.xlu0 %1692
      %1694 = vrot.lane.b32.xlu0 %v1634, 12
      %v1695 = vpop.permute.xlu0 %1694
      %1696 = vrot.lane.b32.xlu0 %v1635, 12
      %v1697 = vpop.permute.xlu0 %1696
      %1698 = vrot.lane.b32.xlu0 %v1636, 12
      %v1699 = vpop.permute.xlu0 %1698
      %1700 = vrot.lane.b32.xlu0 %v1637, 12
      %v1701 = vpop.permute.xlu0 %1700
      %vm1734 = vcmask 126048
      %1735 = vst.msk [vmem:[#allocation3] sm:$0xf] %vm1734, %v1639
      %1736 = vst.msk [vmem:[#allocation3 + $0x4] sm:$0xf] %vm1734, %v1641
      %1737 = vst.msk [vmem:[#allocation3 + $0x8] sm:$0xf] %vm1734, %v1643
      %1738 = vst.msk [vmem:[#allocation3 + $0xc] sm:$0xf] %vm1734, %v1645
      %1739 = vst.msk [vmem:[#allocation3 + $0x10] sm:$0xf] %vm1734, %v1647
      %1740 = vst.msk [vmem:[#allocation3 + $0x14] sm:$0xf] %vm1734, %v1649
      %1741 = vst.msk [vmem:[#allocation3 + $0x18] sm:$0xf] %vm1734, %v1651
      %1742 = vst.msk [vmem:[#allocation3 + $0x1c] sm:$0xf] %vm1734, %v1653
      %1743 = vst.msk [vmem:[#allocation3 + $0x20] sm:$0xf] %vm1734, %v1655
      %1744 = vst.msk [vmem:[#allocation3 + $0x24] sm:$0xf] %vm1734, %v1657
      %1745 = vst.msk [vmem:[#allocation3 + $0x28] sm:$0xf] %vm1734, %v1659
      %1746 = vst.msk [vmem:[#allocation3 + $0x2c] sm:$0xf] %vm1734, %v1661
      %1747 = vst.msk [vmem:[#allocation3 + $0x30] sm:$0xf] %vm1734, %v1663
      %1748 = vst.msk [vmem:[#allocation3 + $0x34] sm:$0xf] %vm1734, %v1665
      %1749 = vst.msk [vmem:[#allocation3 + $0x38] sm:$0xf] %vm1734, %v1667
      %1750 = vst.msk [vmem:[#allocation3 + $0x3c] sm:$0xf] %vm1734, %v1669
      %1751 = vst.msk [vmem:[#allocation3 + $0x40] sm:$0xf] %vm1734, %v1671
      %1752 = vst.msk [vmem:[#allocation3 + $0x44] sm:$0xf] %vm1734, %v1673
      %1753 = vst.msk [vmem:[#allocation3 + $0x48] sm:$0xf] %vm1734, %v1675
      %1754 = vst.msk [vmem:[#allocation3 + $0x4c] sm:$0xf] %vm1734, %v1677
      %1755 = vst.msk [vmem:[#allocation3 + $0x50] sm:$0xf] %vm1734, %v1679
      %1756 = vst.msk [vmem:[#allocation3 + $0x54] sm:$0xf] %vm1734, %v1681
      %1757 = vst.msk [vmem:[#allocation3 + $0x58] sm:$0xf] %vm1734, %v1683
      %1758 = vst.msk [vmem:[#allocation3 + $0x5c] sm:$0xf] %vm1734, %v1685
      %1759 = vst.msk [vmem:[#allocation3 + $0x60] sm:$0xf] %vm1734, %v1687
      %1760 = vst.msk [vmem:[#allocation3 + $0x64] sm:$0xf] %vm1734, %v1689
      %1761 = vst.msk [vmem:[#allocation3 + $0x68] sm:$0xf] %vm1734, %v1691
      %1762 = vst.msk [vmem:[#allocation3 + $0x6c] sm:$0xf] %vm1734, %v1693
      %1763 = vst.msk [vmem:[#allocation3 + $0x70] sm:$0xf] %vm1734, %v1695
      %1764 = vst.msk [vmem:[#allocation3 + $0x74] sm:$0xf] %vm1734, %v1697
      %1765 = vst.msk [vmem:[#allocation3 + $0x78] sm:$0xf] %vm1734, %v1699
      %1766 = vst.msk [vmem:[#allocation3 + $0x7c] sm:$0xf] %vm1734, %v1701
      %v1767 = vld [vmem:[%s1509 + $0x1] sm:$0xff]
      %v1768 = vld [vmem:[%s1509 + $0x9] sm:$0xff]
      %v1769 = vld [vmem:[%s1509 + $0x19] sm:$0xff]
      %v1770 = vld [vmem:[%s1509 + $0x21] sm:$0xff]
      %v1771 = vld [vmem:[%s1509 + $0x31] sm:$0xff]
      %v1772 = vld [vmem:[%s1509 + $0x39] sm:$0xff]
      %v1773 = vld [vmem:[%s1509 + $0x49] sm:$0xff]
      %v1774 = vld [vmem:[%s1509 + $0x51] sm:$0xff]
      %v1775 = vld [vmem:[%s1509 + $0x61] sm:$0xff]
      %v1776 = vld [vmem:[%s1509 + $0x69] sm:$0xff]
      %v1777 = vld [vmem:[%s1509 + $0x79] sm:$0xff]
      %v1778 = vld [vmem:[%s1509 + $0x81] sm:$0xff]
      %v1779 = vld [vmem:[%s1509 + $0x91] sm:$0xff]
      %v1780 = vld [vmem:[%s1509 + $0x99] sm:$0xff]
      %v1781 = vld [vmem:[%s1509 + $0xa9] sm:$0xff]
      %v1782 = vld [vmem:[%s1509 + $0xb1] sm:$0xff]
      %v1783 = vld [vmem:[%s1509 + $0xc1] sm:$0xff]
      %v1784 = vld [vmem:[%s1509 + $0xc9] sm:$0xff]
      %v1785 = vld [vmem:[%s1509 + $0xd9] sm:$0xff]
      %v1786 = vld [vmem:[%s1509 + $0xe1] sm:$0xff]
      %v1787 = vld [vmem:[%s1509 + $0xf1] sm:$0xff]
      %v1788 = vld [vmem:[%s1509 + $0xf9] sm:$0xff]
      %v1789 = vld [vmem:[%s1509 + $0x109] sm:$0xff]
      %v1790 = vld [vmem:[%s1509 + $0x111] sm:$0xff]
      %v1791 = vld [vmem:[%s1509 + $0x121] sm:$0xff]
      %v1792 = vld [vmem:[%s1509 + $0x129] sm:$0xff]
      %v1793 = vld [vmem:[%s1509 + $0x139] sm:$0xff]
      %v1794 = vld [vmem:[%s1509 + $0x141] sm:$0xff]
      %v1795 = vld [vmem:[%s1509 + $0x151] sm:$0xff]
      %v1796 = vld [vmem:[%s1509 + $0x159] sm:$0xff]
      %v1797 = vld [vmem:[%s1509 + $0x169] sm:$0xff]
      %v1798 = vld [vmem:[%s1509 + $0x171] sm:$0xff]
      %v1799 = vpack.c.bf16 %v1768, %v1767
      %v1800 = vpack.c.bf16 %v1770, %v1769
      %v1801 = vpack.c.bf16 %v1772, %v1771
      %v1802 = vpack.c.bf16 %v1774, %v1773
      %v1803 = vpack.c.bf16 %v1776, %v1775
      %v1804 = vpack.c.bf16 %v1778, %v1777
      %v1805 = vpack.c.bf16 %v1780, %v1779
      %v1806 = vpack.c.bf16 %v1782, %v1781
      %v1807 = vpack.c.bf16 %v1784, %v1783
      %v1808 = vpack.c.bf16 %v1786, %v1785
      %v1809 = vpack.c.bf16 %v1788, %v1787
      %v1810 = vpack.c.bf16 %v1790, %v1789
      %v1811 = vpack.c.bf16 %v1792, %v1791
      %v1812 = vpack.c.bf16 %v1794, %v1793
      %v1813 = vpack.c.bf16 %v1796, %v1795
      %v1814 = vpack.c.bf16 %v1798, %v1797
      %v1831 = vunpack.c.l.b16 %v1799
      %v1832 = vunpack.c.h.b16 %v1799
      %v1833 = vunpack.c.l.b16 %v1800
      %v1834 = vunpack.c.h.b16 %v1800
      %v1835 = vunpack.c.l.b16 %v1801
      %v1836 = vunpack.c.h.b16 %v1801
      %v1837 = vunpack.c.l.b16 %v1802
      %v1838 = vunpack.c.h.b16 %v1802
      %v1839 = vunpack.c.l.b16 %v1803
      %v1840 = vunpack.c.h.b16 %v1803
      %v1841 = vunpack.c.l.b16 %v1804
      %v1842 = vunpack.c.h.b16 %v1804
      %v1843 = vunpack.c.l.b16 %v1805
      %v1844 = vunpack.c.h.b16 %v1805
      %v1845 = vunpack.c.l.b16 %v1806
      %v1846 = vunpack.c.h.b16 %v1806
      %v1847 = vunpack.c.l.b16 %v1807
      %v1848 = vunpack.c.h.b16 %v1807
      %v1849 = vunpack.c.l.b16 %v1808
      %v1850 = vunpack.c.h.b16 %v1808
      %v1851 = vunpack.c.l.b16 %v1809
      %v1852 = vunpack.c.h.b16 %v1809
      %v1853 = vunpack.c.l.b16 %v1810
      %v1854 = vunpack.c.h.b16 %v1810
      %v1855 = vunpack.c.l.b16 %v1811
      %v1856 = vunpack.c.h.b16 %v1811
      %v1857 = vunpack.c.l.b16 %v1812
      %v1858 = vunpack.c.h.b16 %v1812
      %v1859 = vunpack.c.l.b16 %v1813
      %v1860 = vunpack.c.h.b16 %v1813
      %v1861 = vunpack.c.l.b16 %v1814
      %v1862 = vunpack.c.h.b16 %v1814
      %v1863 = vpack.c.b16 %v1831, %v1831
      %v1864 = vpack.c.b16 %v1832, %v1832
      %v1865 = vpack.c.b16 %v1833, %v1833
      %v1866 = vpack.c.b16 %v1834, %v1834
      %v1867 = vpack.c.b16 %v1835, %v1835
      %v1868 = vpack.c.b16 %v1836, %v1836
      %v1869 = vpack.c.b16 %v1837, %v1837
      %v1870 = vpack.c.b16 %v1838, %v1838
      %v1871 = vpack.c.b16 %v1839, %v1839
      %v1872 = vpack.c.b16 %v1840, %v1840
      %v1873 = vpack.c.b16 %v1841, %v1841
      %v1874 = vpack.c.b16 %v1842, %v1842
      %v1875 = vpack.c.b16 %v1843, %v1843
      %v1876 = vpack.c.b16 %v1844, %v1844
      %v1877 = vpack.c.b16 %v1845, %v1845
      %v1878 = vpack.c.b16 %v1846, %v1846
      %v1879 = vpack.c.b16 %v1847, %v1847
      %v1880 = vpack.c.b16 %v1848, %v1848
      %v1881 = vpack.c.b16 %v1849, %v1849
      %v1882 = vpack.c.b16 %v1850, %v1850
      %v1883 = vpack.c.b16 %v1851, %v1851
      %v1884 = vpack.c.b16 %v1852, %v1852
      %v1885 = vpack.c.b16 %v1853, %v1853
      %v1886 = vpack.c.b16 %v1854, %v1854
      %v1887 = vpack.c.b16 %v1855, %v1855
      %v1888 = vpack.c.b16 %v1856, %v1856
      %v1889 = vpack.c.b16 %v1857, %v1857
      %v1890 = vpack.c.b16 %v1858, %v1858
      %v1891 = vpack.c.b16 %v1859, %v1859
      %v1892 = vpack.c.b16 %v1860, %v1860
      %v1893 = vpack.c.b16 %v1861, %v1861
      %v1894 = vpack.c.b16 %v1862, %v1862
      %1895 = vrot.lane.b32.xlu0 %v1863, 16
      %v1896 = vpop.permute.xlu0 %1895
      %1897 = vrot.lane.b32.xlu0 %v1864, 16
      %v1898 = vpop.permute.xlu0 %1897
      %1899 = vrot.lane.b32.xlu0 %v1865, 16
      %v1900 = vpop.permute.xlu0 %1899
      %1901 = vrot.lane.b32.xlu0 %v1866, 16
      %v1902 = vpop.permute.xlu0 %1901
      %1903 = vrot.lane.b32.xlu0 %v1867, 16
      %v1904 = vpop.permute.xlu0 %1903
      %1905 = vrot.lane.b32.xlu0 %v1868, 16
      %v1906 = vpop.permute.xlu0 %1905
      %1907 = vrot.lane.b32.xlu0 %v1869, 16
      %v1908 = vpop.permute.xlu0 %1907
      %1909 = vrot.lane.b32.xlu0 %v1870, 16
      %v1910 = vpop.permute.xlu0 %1909
      %1911 = vrot.lane.b32.xlu0 %v1871, 16
      %v1912 = vpop.permute.xlu0 %1911
      %1913 = vrot.lane.b32.xlu0 %v1872, 16
      %v1914 = vpop.permute.xlu0 %1913
      %1915 = vrot.lane.b32.xlu0 %v1873, 16
      %v1916 = vpop.permute.xlu0 %1915
      %1917 = vrot.lane.b32.xlu0 %v1874, 16
      %v1918 = vpop.permute.xlu0 %1917
      %1919 = vrot.lane.b32.xlu0 %v1875, 16
      %v1920 = vpop.permute.xlu0 %1919
      %1921 = vrot.lane.b32.xlu0 %v1876, 16
      %v1922 = vpop.permute.xlu0 %1921
      %1923 = vrot.lane.b32.xlu0 %v1877, 16
      %v1924 = vpop.permute.xlu0 %1923
      %1925 = vrot.lane.b32.xlu0 %v1878, 16
      %v1926 = vpop.permute.xlu0 %1925
      %1927 = vrot.lane.b32.xlu0 %v1879, 16
      %v1928 = vpop.permute.xlu0 %1927
      %1929 = vrot.lane.b32.xlu0 %v1880, 16
      %v1930 = vpop.permute.xlu0 %1929
      %1931 = vrot.lane.b32.xlu0 %v1881, 16
      %v1932 = vpop.permute.xlu0 %1931
      %1933 = vrot.lane.b32.xlu0 %v1882, 16
      %v1934 = vpop.permute.xlu0 %1933
      %1935 = vrot.lane.b32.xlu0 %v1883, 16
      %v1936 = vpop.permute.xlu0 %1935
      %1937 = vrot.lane.b32.xlu0 %v1884, 16
      %v1938 = vpop.permute.xlu0 %1937
      %1939 = vrot.lane.b32.xlu0 %v1885, 16
      %v1940 = vpop.permute.xlu0 %1939
      %1941 = vrot.lane.b32.xlu0 %v1886, 16
      %v1942 = vpop.permute.xlu0 %1941
      %1943 = vrot.lane.b32.xlu0 %v1887, 16
      %v1944 = vpop.permute.xlu0 %1943
      %1945 = vrot.lane.b32.xlu0 %v1888, 16
      %v1946 = vpop.permute.xlu0 %1945
      %1947 = vrot.lane.b32.xlu0 %v1889, 16
      %v1948 = vpop.permute.xlu0 %1947
      %1949 = vrot.lane.b32.xlu0 %v1890, 16
      %v1950 = vpop.permute.xlu0 %1949
      %1951 = vrot.lane.b32.xlu0 %v1891, 16
      %v1952 = vpop.permute.xlu0 %1951
      %1953 = vrot.lane.b32.xlu0 %v1892, 16
      %v1954 = vpop.permute.xlu0 %1953
      %1955 = vrot.lane.b32.xlu0 %v1893, 16
      %v1956 = vpop.permute.xlu0 %1955
      %1957 = vrot.lane.b32.xlu0 %v1894, 16
      %v1958 = vpop.permute.xlu0 %1957
      %vm1991 = vcmask 158848
      %1992 = vst.msk [vmem:[#allocation3] sm:$0xf] %vm1991, %v1896
      %1993 = vst.msk [vmem:[#allocation3 + $0x4] sm:$0xf] %vm1991, %v1898
      %1994 = vst.msk [vmem:[#allocation3 + $0x8] sm:$0xf] %vm1991, %v1900
      %1995 = vst.msk [vmem:[#allocation3 + $0xc] sm:$0xf] %vm1991, %v1902
      %1996 = vst.msk [vmem:[#allocation3 + $0x10] sm:$0xf] %vm1991, %v1904
      %1997 = vst.msk [vmem:[#allocation3 + $0x14] sm:$0xf] %vm1991, %v1906
      %1998 = vst.msk [vmem:[#allocation3 + $0x18] sm:$0xf] %vm1991, %v1908
      %1999 = vst.msk [vmem:[#allocation3 + $0x1c] sm:$0xf] %vm1991, %v1910
      %2000 = vst.msk [vmem:[#allocation3 + $0x20] sm:$0xf] %vm1991, %v1912
      %2001 = vst.msk [vmem:[#allocation3 + $0x24] sm:$0xf] %vm1991, %v1914
      %2002 = vst.msk [vmem:[#allocation3 + $0x28] sm:$0xf] %vm1991, %v1916
      %2003 = vst.msk [vmem:[#allocation3 + $0x2c] sm:$0xf] %vm1991, %v1918
      %2004 = vst.msk [vmem:[#allocation3 + $0x30] sm:$0xf] %vm1991, %v1920
      %2005 = vst.msk [vmem:[#allocation3 + $0x34] sm:$0xf] %vm1991, %v1922
      %2006 = vst.msk [vmem:[#allocation3 + $0x38] sm:$0xf] %vm1991, %v1924
      %2007 = vst.msk [vmem:[#allocation3 + $0x3c] sm:$0xf] %vm1991, %v1926
      %2008 = vst.msk [vmem:[#allocation3 + $0x40] sm:$0xf] %vm1991, %v1928
      %2009 = vst.msk [vmem:[#allocation3 + $0x44] sm:$0xf] %vm1991, %v1930
      %2010 = vst.msk [vmem:[#allocation3 + $0x48] sm:$0xf] %vm1991, %v1932
      %2011 = vst.msk [vmem:[#allocation3 + $0x4c] sm:$0xf] %vm1991, %v1934
      %2012 = vst.msk [vmem:[#allocation3 + $0x50] sm:$0xf] %vm1991, %v1936
      %2013 = vst.msk [vmem:[#allocation3 + $0x54] sm:$0xf] %vm1991, %v1938
      %2014 = vst.msk [vmem:[#allocation3 + $0x58] sm:$0xf] %vm1991, %v1940
      %2015 = vst.msk [vmem:[#allocation3 + $0x5c] sm:$0xf] %vm1991, %v1942
      %2016 = vst.msk [vmem:[#allocation3 + $0x60] sm:$0xf] %vm1991, %v1944
      %2017 = vst.msk [vmem:[#allocation3 + $0x64] sm:$0xf] %vm1991, %v1946
      %2018 = vst.msk [vmem:[#allocation3 + $0x68] sm:$0xf] %vm1991, %v1948
      %2019 = vst.msk [vmem:[#allocation3 + $0x6c] sm:$0xf] %vm1991, %v1950
      %2020 = vst.msk [vmem:[#allocation3 + $0x70] sm:$0xf] %vm1991, %v1952
      %2021 = vst.msk [vmem:[#allocation3 + $0x74] sm:$0xf] %vm1991, %v1954
      %2022 = vst.msk [vmem:[#allocation3 + $0x78] sm:$0xf] %vm1991, %v1956
      %2023 = vst.msk [vmem:[#allocation3 + $0x7c] sm:$0xf] %vm1991, %v1958
      %v2024 = vld [vmem:[%s1509 + $0x2] sm:$0xff]
      %v2025 = vld [vmem:[%s1509 + $0xa] sm:$0xff]
      %v2026 = vld [vmem:[%s1509 + $0x1a] sm:$0xff]
      %v2027 = vld [vmem:[%s1509 + $0x22] sm:$0xff]
      %v2028 = vld [vmem:[%s1509 + $0x32] sm:$0xff]
      %v2029 = vld [vmem:[%s1509 + $0x3a] sm:$0xff]
      %v2030 = vld [vmem:[%s1509 + $0x4a] sm:$0xff]
      %v2031 = vld [vmem:[%s1509 + $0x52] sm:$0xff]
      %v2032 = vld [vmem:[%s1509 + $0x62] sm:$0xff]
      %v2033 = vld [vmem:[%s1509 + $0x6a] sm:$0xff]
      %v2034 = vld [vmem:[%s1509 + $0x7a] sm:$0xff]
      %v2035 = vld [vmem:[%s1509 + $0x82] sm:$0xff]
      %v2036 = vld [vmem:[%s1509 + $0x92] sm:$0xff]
      %v2037 = vld [vmem:[%s1509 + $0x9a] sm:$0xff]
      %v2038 = vld [vmem:[%s1509 + $0xaa] sm:$0xff]
      %v2039 = vld [vmem:[%s1509 + $0xb2] sm:$0xff]
      %v2040 = vld [vmem:[%s1509 + $0xc2] sm:$0xff]
      %v2041 = vld [vmem:[%s1509 + $0xca] sm:$0xff]
      %v2042 = vld [vmem:[%s1509 + $0xda] sm:$0xff]
      %v2043 = vld [vmem:[%s1509 + $0xe2] sm:$0xff]
      %v2044 = vld [vmem:[%s1509 + $0xf2] sm:$0xff]
      %v2045 = vld [vmem:[%s1509 + $0xfa] sm:$0xff]
      %v2046 = vld [vmem:[%s1509 + $0x10a] sm:$0xff]
      %v2047 = vld [vmem:[%s1509 + $0x112] sm:$0xff]
      %v2048 = vld [vmem:[%s1509 + $0x122] sm:$0xff]
      %v2049 = vld [vmem:[%s1509 + $0x12a] sm:$0xff]
      %v2050 = vld [vmem:[%s1509 + $0x13a] sm:$0xff]
      %v2051 = vld [vmem:[%s1509 + $0x142] sm:$0xff]
      %v2052 = vld [vmem:[%s1509 + $0x152] sm:$0xff]
      %v2053 = vld [vmem:[%s1509 + $0x15a] sm:$0xff]
      %v2054 = vld [vmem:[%s1509 + $0x16a] sm:$0xff]
      %v2055 = vld [vmem:[%s1509 + $0x172] sm:$0xff]
      %v2056 = vpack.c.bf16 %v2025, %v2024
      %v2057 = vpack.c.bf16 %v2027, %v2026
      %v2058 = vpack.c.bf16 %v2029, %v2028
      %v2059 = vpack.c.bf16 %v2031, %v2030
      %v2060 = vpack.c.bf16 %v2033, %v2032
      %v2061 = vpack.c.bf16 %v2035, %v2034
      %v2062 = vpack.c.bf16 %v2037, %v2036
      %v2063 = vpack.c.bf16 %v2039, %v2038
      %v2064 = vpack.c.bf16 %v2041, %v2040
      %v2065 = vpack.c.bf16 %v2043, %v2042
      %v2066 = vpack.c.bf16 %v2045, %v2044
      %v2067 = vpack.c.bf16 %v2047, %v2046
      %v2068 = vpack.c.bf16 %v2049, %v2048
      %v2069 = vpack.c.bf16 %v2051, %v2050
      %v2070 = vpack.c.bf16 %v2053, %v2052
      %v2071 = vpack.c.bf16 %v2055, %v2054
      %v2088 = vunpack.c.l.b16 %v2056
      %v2089 = vunpack.c.h.b16 %v2056
      %v2090 = vunpack.c.l.b16 %v2057
      %v2091 = vunpack.c.h.b16 %v2057
      %v2092 = vunpack.c.l.b16 %v2058
      %v2093 = vunpack.c.h.b16 %v2058
      %v2094 = vunpack.c.l.b16 %v2059
      %v2095 = vunpack.c.h.b16 %v2059
      %v2096 = vunpack.c.l.b16 %v2060
      %v2097 = vunpack.c.h.b16 %v2060
      %v2098 = vunpack.c.l.b16 %v2061
      %v2099 = vunpack.c.h.b16 %v2061
      %v2100 = vunpack.c.l.b16 %v2062
      %v2101 = vunpack.c.h.b16 %v2062
      %v2102 = vunpack.c.l.b16 %v2063
      %v2103 = vunpack.c.h.b16 %v2063
      %v2104 = vunpack.c.l.b16 %v2064
      %v2105 = vunpack.c.h.b16 %v2064
      %v2106 = vunpack.c.l.b16 %v2065
      %v2107 = vunpack.c.h.b16 %v2065
      %v2108 = vunpack.c.l.b16 %v2066
      %v2109 = vunpack.c.h.b16 %v2066
      %v2110 = vunpack.c.l.b16 %v2067
      %v2111 = vunpack.c.h.b16 %v2067
      %v2112 = vunpack.c.l.b16 %v2068
      %v2113 = vunpack.c.h.b16 %v2068
      %v2114 = vunpack.c.l.b16 %v2069
      %v2115 = vunpack.c.h.b16 %v2069
      %v2116 = vunpack.c.l.b16 %v2070
      %v2117 = vunpack.c.h.b16 %v2070
      %v2118 = vunpack.c.l.b16 %v2071
      %v2119 = vunpack.c.h.b16 %v2071
      %v2120 = vpack.c.b16 %v2088, %v2088
      %v2121 = vpack.c.b16 %v2089, %v2089
      %v2122 = vpack.c.b16 %v2090, %v2090
      %v2123 = vpack.c.b16 %v2091, %v2091
      %v2124 = vpack.c.b16 %v2092, %v2092
      %v2125 = vpack.c.b16 %v2093, %v2093
      %v2126 = vpack.c.b16 %v2094, %v2094
      %v2127 = vpack.c.b16 %v2095, %v2095
      %v2128 = vpack.c.b16 %v2096, %v2096
      %v2129 = vpack.c.b16 %v2097, %v2097
      %v2130 = vpack.c.b16 %v2098, %v2098
      %v2131 = vpack.c.b16 %v2099, %v2099
      %v2132 = vpack.c.b16 %v2100, %v2100
      %v2133 = vpack.c.b16 %v2101, %v2101
      %v2134 = vpack.c.b16 %v2102, %v2102
      %v2135 = vpack.c.b16 %v2103, %v2103
      %v2136 = vpack.c.b16 %v2104, %v2104
      %v2137 = vpack.c.b16 %v2105, %v2105
      %v2138 = vpack.c.b16 %v2106, %v2106
      %v2139 = vpack.c.b16 %v2107, %v2107
      %v2140 = vpack.c.b16 %v2108, %v2108
      %v2141 = vpack.c.b16 %v2109, %v2109
      %v2142 = vpack.c.b16 %v2110, %v2110
      %v2143 = vpack.c.b16 %v2111, %v2111
      %v2144 = vpack.c.b16 %v2112, %v2112
      %v2145 = vpack.c.b16 %v2113, %v2113
      %v2146 = vpack.c.b16 %v2114, %v2114
      %v2147 = vpack.c.b16 %v2115, %v2115
      %v2148 = vpack.c.b16 %v2116, %v2116
      %v2149 = vpack.c.b16 %v2117, %v2117
      %v2150 = vpack.c.b16 %v2118, %v2118
      %v2151 = vpack.c.b16 %v2119, %v2119
      %2152 = vrot.lane.b32.xlu0 %v2120, 20
      %v2153 = vpop.permute.xlu0 %2152
      %2154 = vrot.lane.b32.xlu0 %v2121, 20
      %v2155 = vpop.permute.xlu0 %2154
      %2156 = vrot.lane.b32.xlu0 %v2122, 20
      %v2157 = vpop.permute.xlu0 %2156
      %2158 = vrot.lane.b32.xlu0 %v2123, 20
      %v2159 = vpop.permute.xlu0 %2158
      %2160 = vrot.lane.b32.xlu0 %v2124, 20
      %v2161 = vpop.permute.xlu0 %2160
      %2162 = vrot.lane.b32.xlu0 %v2125, 20
      %v2163 = vpop.permute.xlu0 %2162
      %2164 = vrot.lane.b32.xlu0 %v2126, 20
      %v2165 = vpop.permute.xlu0 %2164
      %2166 = vrot.lane.b32.xlu0 %v2127, 20
      %v2167 = vpop.permute.xlu0 %2166
      %2168 = vrot.lane.b32.xlu0 %v2128, 20
      %v2169 = vpop.permute.xlu0 %2168
      %2170 = vrot.lane.b32.xlu0 %v2129, 20
      %v2171 = vpop.permute.xlu0 %2170
      %2172 = vrot.lane.b32.xlu0 %v2130, 20
      %v2173 = vpop.permute.xlu0 %2172
      %2174 = vrot.lane.b32.xlu0 %v2131, 20
      %v2175 = vpop.permute.xlu0 %2174
      %2176 = vrot.lane.b32.xlu0 %v2132, 20
      %v2177 = vpop.permute.xlu0 %2176
      %2178 = vrot.lane.b32.xlu0 %v2133, 20
      %v2179 = vpop.permute.xlu0 %2178
      %2180 = vrot.lane.b32.xlu0 %v2134, 20
      %v2181 = vpop.permute.xlu0 %2180
      %2182 = vrot.lane.b32.xlu0 %v2135, 20
      %v2183 = vpop.permute.xlu0 %2182
      %2184 = vrot.lane.b32.xlu0 %v2136, 20
      %v2185 = vpop.permute.xlu0 %2184
      %2186 = vrot.lane.b32.xlu0 %v2137, 20
      %v2187 = vpop.permute.xlu0 %2186
      %2188 = vrot.lane.b32.xlu0 %v2138, 20
      %v2189 = vpop.permute.xlu0 %2188
      %2190 = vrot.lane.b32.xlu0 %v2139, 20
      %v2191 = vpop.permute.xlu0 %2190
      %2192 = vrot.lane.b32.xlu0 %v2140, 20
      %v2193 = vpop.permute.xlu0 %2192
      %2194 = vrot.lane.b32.xlu0 %v2141, 20
      %v2195 = vpop.permute.xlu0 %2194
      %2196 = vrot.lane.b32.xlu0 %v2142, 20
      %v2197 = vpop.permute.xlu0 %2196
      %2198 = vrot.lane.b32.xlu0 %v2143, 20
      %v2199 = vpop.permute.xlu0 %2198
      %2200 = vrot.lane.b32.xlu0 %v2144, 20
      %v2201 = vpop.permute.xlu0 %2200
      %2202 = vrot.lane.b32.xlu0 %v2145, 20
      %v2203 = vpop.permute.xlu0 %2202
      %2204 = vrot.lane.b32.xlu0 %v2146, 20
      %v2205 = vpop.permute.xlu0 %2204
      %2206 = vrot.lane.b32.xlu0 %v2147, 20
      %v2207 = vpop.permute.xlu0 %2206
      %2208 = vrot.lane.b32.xlu0 %v2148, 20
      %v2209 = vpop.permute.xlu0 %2208
      %2210 = vrot.lane.b32.xlu0 %v2149, 20
      %v2211 = vpop.permute.xlu0 %2210
      %2212 = vrot.lane.b32.xlu0 %v2150, 20
      %v2213 = vpop.permute.xlu0 %2212
      %2214 = vrot.lane.b32.xlu0 %v2151, 20
      %v2215 = vpop.permute.xlu0 %2214
      %vm2248 = vcmask 191648
      %2249 = vst.msk [vmem:[#allocation3] sm:$0xf] %vm2248, %v2153
      %2250 = vst.msk [vmem:[#allocation3 + $0x4] sm:$0xf] %vm2248, %v2155
      %2251 = vst.msk [vmem:[#allocation3 + $0x8] sm:$0xf] %vm2248, %v2157
      %2252 = vst.msk [vmem:[#allocation3 + $0xc] sm:$0xf] %vm2248, %v2159
      %2253 = vst.msk [vmem:[#allocation3 + $0x10] sm:$0xf] %vm2248, %v2161
      %2254 = vst.msk [vmem:[#allocation3 + $0x14] sm:$0xf] %vm2248, %v2163
      %2255 = vst.msk [vmem:[#allocation3 + $0x18] sm:$0xf] %vm2248, %v2165
      %2256 = vst.msk [vmem:[#allocation3 + $0x1c] sm:$0xf] %vm2248, %v2167
      %2257 = vst.msk [vmem:[#allocation3 + $0x20] sm:$0xf] %vm2248, %v2169
      %2258 = vst.msk [vmem:[#allocation3 + $0x24] sm:$0xf] %vm2248, %v2171
      %2259 = vst.msk [vmem:[#allocation3 + $0x28] sm:$0xf] %vm2248, %v2173
      %2260 = vst.msk [vmem:[#allocation3 + $0x2c] sm:$0xf] %vm2248, %v2175
      %2261 = vst.msk [vmem:[#allocation3 + $0x30] sm:$0xf] %vm2248, %v2177
      %2262 = vst.msk [vmem:[#allocation3 + $0x34] sm:$0xf] %vm2248, %v2179
      %2263 = vst.msk [vmem:[#allocation3 + $0x38] sm:$0xf] %vm2248, %v2181
      %2264 = vst.msk [vmem:[#allocation3 + $0x3c] sm:$0xf] %vm2248, %v2183
      %2265 = vst.msk [vmem:[#allocation3 + $0x40] sm:$0xf] %vm2248, %v2185
      %2266 = vst.msk [vmem:[#allocation3 + $0x44] sm:$0xf] %vm2248, %v2187
      %2267 = vst.msk [vmem:[#allocation3 + $0x48] sm:$0xf] %vm2248, %v2189
      %2268 = vst.msk [vmem:[#allocation3 + $0x4c] sm:$0xf] %vm2248, %v2191
      %2269 = vst.msk [vmem:[#allocation3 + $0x50] sm:$0xf] %vm2248, %v2193
      %2270 = vst.msk [vmem:[#allocation3 + $0x54] sm:$0xf] %vm2248, %v2195
      %2271 = vst.msk [vmem:[#allocation3 + $0x58] sm:$0xf] %vm2248, %v2197
      %2272 = vst.msk [vmem:[#allocation3 + $0x5c] sm:$0xf] %vm2248, %v2199
      %2273 = vst.msk [vmem:[#allocation3 + $0x60] sm:$0xf] %vm2248, %v2201
      %2274 = vst.msk [vmem:[#allocation3 + $0x64] sm:$0xf] %vm2248, %v2203
      %2275 = vst.msk [vmem:[#allocation3 + $0x68] sm:$0xf] %vm2248, %v2205
      %2276 = vst.msk [vmem:[#allocation3 + $0x6c] sm:$0xf] %vm2248, %v2207
      %2277 = vst.msk [vmem:[#allocation3 + $0x70] sm:$0xf] %vm2248, %v2209
      %2278 = vst.msk [vmem:[#allocation3 + $0x74] sm:$0xf] %vm2248, %v2211
      %2279 = vst.msk [vmem:[#allocation3 + $0x78] sm:$0xf] %vm2248, %v2213
      %2280 = vst.msk [vmem:[#allocation3 + $0x7c] sm:$0xf] %vm2248, %v2215
      %s2281 = scalar_lea.vmem [#allocation2], 48
      %v2282 = vld [vmem:[%s2281] sm:$0xff]
      %v2283 = vld [vmem:[%s2281 + $0x8] sm:$0xff]
      %v2284 = vld [vmem:[%s2281 + $0x18] sm:$0xff]
      %v2285 = vld [vmem:[%s2281 + $0x20] sm:$0xff]
      %v2286 = vld [vmem:[%s2281 + $0x30] sm:$0xff]
      %v2287 = vld [vmem:[%s2281 + $0x38] sm:$0xff]
      %v2288 = vld [vmem:[%s2281 + $0x48] sm:$0xff]
      %v2289 = vld [vmem:[%s2281 + $0x50] sm:$0xff]
      %v2290 = vld [vmem:[%s2281 + $0x60] sm:$0xff]
      %v2291 = vld [vmem:[%s2281 + $0x68] sm:$0xff]
      %v2292 = vld [vmem:[%s2281 + $0x78] sm:$0xff]
      %v2293 = vld [vmem:[%s2281 + $0x80] sm:$0xff]
      %v2294 = vld [vmem:[%s2281 + $0x90] sm:$0xff]
      %v2295 = vld [vmem:[%s2281 + $0x98] sm:$0xff]
      %v2296 = vld [vmem:[%s2281 + $0xa8] sm:$0xff]
      %v2297 = vld [vmem:[%s2281 + $0xb0] sm:$0xff]
      %v2298 = vld [vmem:[%s2281 + $0xc0] sm:$0xff]
      %v2299 = vld [vmem:[%s2281 + $0xc8] sm:$0xff]
      %v2300 = vld [vmem:[%s2281 + $0xd8] sm:$0xff]
      %v2301 = vld [vmem:[%s2281 + $0xe0] sm:$0xff]
      %v2302 = vld [vmem:[%s2281 + $0xf0] sm:$0xff]
      %v2303 = vld [vmem:[%s2281 + $0xf8] sm:$0xff]
      %v2304 = vld [vmem:[%s2281 + $0x108] sm:$0xff]
      %v2305 = vld [vmem:[%s2281 + $0x110] sm:$0xff]
      %v2306 = vld [vmem:[%s2281 + $0x120] sm:$0xff]
      %v2307 = vld [vmem:[%s2281 + $0x128] sm:$0xff]
      %v2308 = vld [vmem:[%s2281 + $0x138] sm:$0xff]
      %v2309 = vld [vmem:[%s2281 + $0x140] sm:$0xff]
      %v2310 = vld [vmem:[%s2281 + $0x150] sm:$0xff]
      %v2311 = vld [vmem:[%s2281 + $0x158] sm:$0xff]
      %v2312 = vld [vmem:[%s2281 + $0x168] sm:$0xff]
      %v2313 = vld [vmem:[%s2281 + $0x170] sm:$0xff]
      %v2314 = vpack.c.bf16 %v2283, %v2282
      %v2315 = vpack.c.bf16 %v2285, %v2284
      %v2316 = vpack.c.bf16 %v2287, %v2286
      %v2317 = vpack.c.bf16 %v2289, %v2288
      %v2318 = vpack.c.bf16 %v2291, %v2290
      %v2319 = vpack.c.bf16 %v2293, %v2292
      %v2320 = vpack.c.bf16 %v2295, %v2294
      %v2321 = vpack.c.bf16 %v2297, %v2296
      %v2322 = vpack.c.bf16 %v2299, %v2298
      %v2323 = vpack.c.bf16 %v2301, %v2300
      %v2324 = vpack.c.bf16 %v2303, %v2302
      %v2325 = vpack.c.bf16 %v2305, %v2304
      %v2326 = vpack.c.bf16 %v2307, %v2306
      %v2327 = vpack.c.bf16 %v2309, %v2308
      %v2328 = vpack.c.bf16 %v2311, %v2310
      %v2329 = vpack.c.bf16 %v2313, %v2312
      %v2346 = vunpack.c.l.b16 %v2314
      %v2347 = vunpack.c.h.b16 %v2314
      %v2348 = vunpack.c.l.b16 %v2315
      %v2349 = vunpack.c.h.b16 %v2315
      %v2350 = vunpack.c.l.b16 %v2316
      %v2351 = vunpack.c.h.b16 %v2316
      %v2352 = vunpack.c.l.b16 %v2317
      %v2353 = vunpack.c.h.b16 %v2317
      %v2354 = vunpack.c.l.b16 %v2318
      %v2355 = vunpack.c.h.b16 %v2318
      %v2356 = vunpack.c.l.b16 %v2319
      %v2357 = vunpack.c.h.b16 %v2319
      %v2358 = vunpack.c.l.b16 %v2320
      %v2359 = vunpack.c.h.b16 %v2320
      %v2360 = vunpack.c.l.b16 %v2321
      %v2361 = vunpack.c.h.b16 %v2321
      %v2362 = vunpack.c.l.b16 %v2322
      %v2363 = vunpack.c.h.b16 %v2322
      %v2364 = vunpack.c.l.b16 %v2323
      %v2365 = vunpack.c.h.b16 %v2323
      %v2366 = vunpack.c.l.b16 %v2324
      %v2367 = vunpack.c.h.b16 %v2324
      %v2368 = vunpack.c.l.b16 %v2325
      %v2369 = vunpack.c.h.b16 %v2325
      %v2370 = vunpack.c.l.b16 %v2326
      %v2371 = vunpack.c.h.b16 %v2326
      %v2372 = vunpack.c.l.b16 %v2327
      %v2373 = vunpack.c.h.b16 %v2327
      %v2374 = vunpack.c.l.b16 %v2328
      %v2375 = vunpack.c.h.b16 %v2328
      %v2376 = vunpack.c.l.b16 %v2329
      %v2377 = vunpack.c.h.b16 %v2329
      %v2378 = vpack.c.b16 %v2346, %v2346
      %v2379 = vpack.c.b16 %v2347, %v2347
      %v2380 = vpack.c.b16 %v2348, %v2348
      %v2381 = vpack.c.b16 %v2349, %v2349
      %v2382 = vpack.c.b16 %v2350, %v2350
      %v2383 = vpack.c.b16 %v2351, %v2351
      %v2384 = vpack.c.b16 %v2352, %v2352
      %v2385 = vpack.c.b16 %v2353, %v2353
      %v2386 = vpack.c.b16 %v2354, %v2354
      %v2387 = vpack.c.b16 %v2355, %v2355
      %v2388 = vpack.c.b16 %v2356, %v2356
      %v2389 = vpack.c.b16 %v2357, %v2357
      %v2390 = vpack.c.b16 %v2358, %v2358
      %v2391 = vpack.c.b16 %v2359, %v2359
      %v2392 = vpack.c.b16 %v2360, %v2360
      %v2393 = vpack.c.b16 %v2361, %v2361
      %v2394 = vpack.c.b16 %v2362, %v2362
      %v2395 = vpack.c.b16 %v2363, %v2363
      %v2396 = vpack.c.b16 %v2364, %v2364
      %v2397 = vpack.c.b16 %v2365, %v2365
      %v2398 = vpack.c.b16 %v2366, %v2366
      %v2399 = vpack.c.b16 %v2367, %v2367
      %v2400 = vpack.c.b16 %v2368, %v2368
      %v2401 = vpack.c.b16 %v2369, %v2369
      %v2402 = vpack.c.b16 %v2370, %v2370
      %v2403 = vpack.c.b16 %v2371, %v2371
      %v2404 = vpack.c.b16 %v2372, %v2372
      %v2405 = vpack.c.b16 %v2373, %v2373
      %v2406 = vpack.c.b16 %v2374, %v2374
      %v2407 = vpack.c.b16 %v2375, %v2375
      %v2408 = vpack.c.b16 %v2376, %v2376
      %v2409 = vpack.c.b16 %v2377, %v2377
      %2410 = vrot.lane.b32.xlu0 %v2378, 24
      %v2411 = vpop.permute.xlu0 %2410
      %2412 = vrot.lane.b32.xlu0 %v2379, 24
      %v2413 = vpop.permute.xlu0 %2412
      %2414 = vrot.lane.b32.xlu0 %v2380, 24
      %v2415 = vpop.permute.xlu0 %2414
      %2416 = vrot.lane.b32.xlu0 %v2381, 24
      %v2417 = vpop.permute.xlu0 %2416
      %2418 = vrot.lane.b32.xlu0 %v2382, 24
      %v2419 = vpop.permute.xlu0 %2418
      %2420 = vrot.lane.b32.xlu0 %v2383, 24
      %v2421 = vpop.permute.xlu0 %2420
      %2422 = vrot.lane.b32.xlu0 %v2384, 24
      %v2423 = vpop.permute.xlu0 %2422
      %2424 = vrot.lane.b32.xlu0 %v2385, 24
      %v2425 = vpop.permute.xlu0 %2424
      %2426 = vrot.lane.b32.xlu0 %v2386, 24
      %v2427 = vpop.permute.xlu0 %2426
      %2428 = vrot.lane.b32.xlu0 %v2387, 24
      %v2429 = vpop.permute.xlu0 %2428
      %2430 = vrot.lane.b32.xlu0 %v2388, 24
      %v2431 = vpop.permute.xlu0 %2430
      %2432 = vrot.lane.b32.xlu0 %v2389, 24
      %v2433 = vpop.permute.xlu0 %2432
      %2434 = vrot.lane.b32.xlu0 %v2390, 24
      %v2435 = vpop.permute.xlu0 %2434
      %2436 = vrot.lane.b32.xlu0 %v2391, 24
      %v2437 = vpop.permute.xlu0 %2436
      %2438 = vrot.lane.b32.xlu0 %v2392, 24
      %v2439 = vpop.permute.xlu0 %2438
      %2440 = vrot.lane.b32.xlu0 %v2393, 24
      %v2441 = vpop.permute.xlu0 %2440
      %2442 = vrot.lane.b32.xlu0 %v2394, 24
      %v2443 = vpop.permute.xlu0 %2442
      %2444 = vrot.lane.b32.xlu0 %v2395, 24
      %v2445 = vpop.permute.xlu0 %2444
      %2446 = vrot.lane.b32.xlu0 %v2396, 24
      %v2447 = vpop.permute.xlu0 %2446
      %2448 = vrot.lane.b32.xlu0 %v2397, 24
      %v2449 = vpop.permute.xlu0 %2448
      %2450 = vrot.lane.b32.xlu0 %v2398, 24
      %v2451 = vpop.permute.xlu0 %2450
      %2452 = vrot.lane.b32.xlu0 %v2399, 24
      %v2453 = vpop.permute.xlu0 %2452
      %2454 = vrot.lane.b32.xlu0 %v2400, 24
      %v2455 = vpop.permute.xlu0 %2454
      %2456 = vrot.lane.b32.xlu0 %v2401, 24
      %v2457 = vpop.permute.xlu0 %2456
      %2458 = vrot.lane.b32.xlu0 %v2402, 24
      %v2459 = vpop.permute.xlu0 %2458
      %2460 = vrot.lane.b32.xlu0 %v2403, 24
      %v2461 = vpop.permute.xlu0 %2460
      %2462 = vrot.lane.b32.xlu0 %v2404, 24
      %v2463 = vpop.permute.xlu0 %2462
      %2464 = vrot.lane.b32.xlu0 %v2405, 24
      %v2465 = vpop.permute.xlu0 %2464
      %2466 = vrot.lane.b32.xlu0 %v2406, 24
      %v2467 = vpop.permute.xlu0 %2466
      %2468 = vrot.lane.b32.xlu0 %v2407, 24
      %v2469 = vpop.permute.xlu0 %2468
      %2470 = vrot.lane.b32.xlu0 %v2408, 24
      %v2471 = vpop.permute.xlu0 %2470
      %2472 = vrot.lane.b32.xlu0 %v2409, 24
      %v2473 = vpop.permute.xlu0 %2472
      %vm2506 = vcmask 224448
      %2507 = vst.msk [vmem:[#allocation3] sm:$0xf] %vm2506, %v2411
      %2508 = vst.msk [vmem:[#allocation3 + $0x4] sm:$0xf] %vm2506, %v2413
      %2509 = vst.msk [vmem:[#allocation3 + $0x8] sm:$0xf] %vm2506, %v2415
      %2510 = vst.msk [vmem:[#allocation3 + $0xc] sm:$0xf] %vm2506, %v2417
      %2511 = vst.msk [vmem:[#allocation3 + $0x10] sm:$0xf] %vm2506, %v2419
      %2512 = vst.msk [vmem:[#allocation3 + $0x14] sm:$0xf] %vm2506, %v2421
      %2513 = vst.msk [vmem:[#allocation3 + $0x18] sm:$0xf] %vm2506, %v2423
      %2514 = vst.msk [vmem:[#allocation3 + $0x1c] sm:$0xf] %vm2506, %v2425
      %2515 = vst.msk [vmem:[#allocation3 + $0x20] sm:$0xf] %vm2506, %v2427
      %2516 = vst.msk [vmem:[#allocation3 + $0x24] sm:$0xf] %vm2506, %v2429
      %2517 = vst.msk [vmem:[#allocation3 + $0x28] sm:$0xf] %vm2506, %v2431
      %2518 = vst.msk [vmem:[#allocation3 + $0x2c] sm:$0xf] %vm2506, %v2433
      %2519 = vst.msk [vmem:[#allocation3 + $0x30] sm:$0xf] %vm2506, %v2435
      %2520 = vst.msk [vmem:[#allocation3 + $0x34] sm:$0xf] %vm2506, %v2437
      %2521 = vst.msk [vmem:[#allocation3 + $0x38] sm:$0xf] %vm2506, %v2439
      %2522 = vst.msk [vmem:[#allocation3 + $0x3c] sm:$0xf] %vm2506, %v2441
      %2523 = vst.msk [vmem:[#allocation3 + $0x40] sm:$0xf] %vm2506, %v2443
      %2524 = vst.msk [vmem:[#allocation3 + $0x44] sm:$0xf] %vm2506, %v2445
      %2525 = vst.msk [vmem:[#allocation3 + $0x48] sm:$0xf] %vm2506, %v2447
      %2526 = vst.msk [vmem:[#allocation3 + $0x4c] sm:$0xf] %vm2506, %v2449
      %2527 = vst.msk [vmem:[#allocation3 + $0x50] sm:$0xf] %vm2506, %v2451
      %2528 = vst.msk [vmem:[#allocation3 + $0x54] sm:$0xf] %vm2506, %v2453
      %2529 = vst.msk [vmem:[#allocation3 + $0x58] sm:$0xf] %vm2506, %v2455
      %2530 = vst.msk [vmem:[#allocation3 + $0x5c] sm:$0xf] %vm2506, %v2457
      %2531 = vst.msk [vmem:[#allocation3 + $0x60] sm:$0xf] %vm2506, %v2459
      %2532 = vst.msk [vmem:[#allocation3 + $0x64] sm:$0xf] %vm2506, %v2461
      %2533 = vst.msk [vmem:[#allocation3 + $0x68] sm:$0xf] %vm2506, %v2463
      %2534 = vst.msk [vmem:[#allocation3 + $0x6c] sm:$0xf] %vm2506, %v2465
      %2535 = vst.msk [vmem:[#allocation3 + $0x70] sm:$0xf] %vm2506, %v2467
      %2536 = vst.msk [vmem:[#allocation3 + $0x74] sm:$0xf] %vm2506, %v2469
      %2537 = vst.msk [vmem:[#allocation3 + $0x78] sm:$0xf] %vm2506, %v2471
      %2538 = vst.msk [vmem:[#allocation3 + $0x7c] sm:$0xf] %vm2506, %v2473
      %v2539 = vld [vmem:[%s2281 + $0x1] sm:$0xff]
      %v2540 = vld [vmem:[%s2281 + $0x9] sm:$0xff]
      %v2541 = vld [vmem:[%s2281 + $0x19] sm:$0xff]
      %v2542 = vld [vmem:[%s2281 + $0x21] sm:$0xff]
      %v2543 = vld [vmem:[%s2281 + $0x31] sm:$0xff]
      %v2544 = vld [vmem:[%s2281 + $0x39] sm:$0xff]
      %v2545 = vld [vmem:[%s2281 + $0x49] sm:$0xff]
      %v2546 = vld [vmem:[%s2281 + $0x51] sm:$0xff]
      %v2547 = vld [vmem:[%s2281 + $0x61] sm:$0xff]
      %v2548 = vld [vmem:[%s2281 + $0x69] sm:$0xff]
      %v2549 = vld [vmem:[%s2281 + $0x79] sm:$0xff]
      %v2550 = vld [vmem:[%s2281 + $0x81] sm:$0xff]
      %v2551 = vld [vmem:[%s2281 + $0x91] sm:$0xff]
      %v2552 = vld [vmem:[%s2281 + $0x99] sm:$0xff]
      %v2553 = vld [vmem:[%s2281 + $0xa9] sm:$0xff]
      %v2554 = vld [vmem:[%s2281 + $0xb1] sm:$0xff]
      %v2555 = vld [vmem:[%s2281 + $0xc1] sm:$0xff]
      %v2556 = vld [vmem:[%s2281 + $0xc9] sm:$0xff]
      %v2557 = vld [vmem:[%s2281 + $0xd9] sm:$0xff]
      %v2558 = vld [vmem:[%s2281 + $0xe1] sm:$0xff]
      %v2559 = vld [vmem:[%s2281 + $0xf1] sm:$0xff]
      %v2560 = vld [vmem:[%s2281 + $0xf9] sm:$0xff]
      %v2561 = vld [vmem:[%s2281 + $0x109] sm:$0xff]
      %v2562 = vld [vmem:[%s2281 + $0x111] sm:$0xff]
      %v2563 = vld [vmem:[%s2281 + $0x121] sm:$0xff]
      %v2564 = vld [vmem:[%s2281 + $0x129] sm:$0xff]
      %v2565 = vld [vmem:[%s2281 + $0x139] sm:$0xff]
      %v2566 = vld [vmem:[%s2281 + $0x141] sm:$0xff]
      %v2567 = vld [vmem:[%s2281 + $0x151] sm:$0xff]
      %v2568 = vld [vmem:[%s2281 + $0x159] sm:$0xff]
      %v2569 = vld [vmem:[%s2281 + $0x169] sm:$0xff]
      %v2570 = vld [vmem:[%s2281 + $0x171] sm:$0xff]
      %v2571 = vpack.c.bf16 %v2540, %v2539
      %v2572 = vpack.c.bf16 %v2542, %v2541
      %v2573 = vpack.c.bf16 %v2544, %v2543
      %v2574 = vpack.c.bf16 %v2546, %v2545
      %v2575 = vpack.c.bf16 %v2548, %v2547
      %v2576 = vpack.c.bf16 %v2550, %v2549
      %v2577 = vpack.c.bf16 %v2552, %v2551
      %v2578 = vpack.c.bf16 %v2554, %v2553
      %v2579 = vpack.c.bf16 %v2556, %v2555
      %v2580 = vpack.c.bf16 %v2558, %v2557
      %v2581 = vpack.c.bf16 %v2560, %v2559
      %v2582 = vpack.c.bf16 %v2562, %v2561
      %v2583 = vpack.c.bf16 %v2564, %v2563
      %v2584 = vpack.c.bf16 %v2566, %v2565
      %v2585 = vpack.c.bf16 %v2568, %v2567
      %v2586 = vpack.c.bf16 %v2570, %v2569
      %v2603 = vunpack.c.l.b16 %v2571
      %v2604 = vunpack.c.h.b16 %v2571
      %v2605 = vunpack.c.l.b16 %v2572
      %v2606 = vunpack.c.h.b16 %v2572
      %v2607 = vunpack.c.l.b16 %v2573
      %v2608 = vunpack.c.h.b16 %v2573
      %v2609 = vunpack.c.l.b16 %v2574
      %v2610 = vunpack.c.h.b16 %v2574
      %v2611 = vunpack.c.l.b16 %v2575
      %v2612 = vunpack.c.h.b16 %v2575
      %v2613 = vunpack.c.l.b16 %v2576
      %v2614 = vunpack.c.h.b16 %v2576
      %v2615 = vunpack.c.l.b16 %v2577
      %v2616 = vunpack.c.h.b16 %v2577
      %v2617 = vunpack.c.l.b16 %v2578
      %v2618 = vunpack.c.h.b16 %v2578
      %v2619 = vunpack.c.l.b16 %v2579
      %v2620 = vunpack.c.h.b16 %v2579
      %v2621 = vunpack.c.l.b16 %v2580
      %v2622 = vunpack.c.h.b16 %v2580
      %v2623 = vunpack.c.l.b16 %v2581
      %v2624 = vunpack.c.h.b16 %v2581
      %v2625 = vunpack.c.l.b16 %v2582
      %v2626 = vunpack.c.h.b16 %v2582
      %v2627 = vunpack.c.l.b16 %v2583
      %v2628 = vunpack.c.h.b16 %v2583
      %v2629 = vunpack.c.l.b16 %v2584
      %v2630 = vunpack.c.h.b16 %v2584
      %v2631 = vunpack.c.l.b16 %v2585
      %v2632 = vunpack.c.h.b16 %v2585
      %v2633 = vunpack.c.l.b16 %v2586
      %v2634 = vunpack.c.h.b16 %v2586
      %v2635 = vpack.c.b16 %v2603, %v2603
      %v2636 = vpack.c.b16 %v2604, %v2604
      %v2637 = vpack.c.b16 %v2605, %v2605
      %v2638 = vpack.c.b16 %v2606, %v2606
      %v2639 = vpack.c.b16 %v2607, %v2607
      %v2640 = vpack.c.b16 %v2608, %v2608
      %v2641 = vpack.c.b16 %v2609, %v2609
      %v2642 = vpack.c.b16 %v2610, %v2610
      %v2643 = vpack.c.b16 %v2611, %v2611
      %v2644 = vpack.c.b16 %v2612, %v2612
      %v2645 = vpack.c.b16 %v2613, %v2613
      %v2646 = vpack.c.b16 %v2614, %v2614
      %v2647 = vpack.c.b16 %v2615, %v2615
      %v2648 = vpack.c.b16 %v2616, %v2616
      %v2649 = vpack.c.b16 %v2617, %v2617
      %v2650 = vpack.c.b16 %v2618, %v2618
      %v2651 = vpack.c.b16 %v2619, %v2619
      %v2652 = vpack.c.b16 %v2620, %v2620
      %v2653 = vpack.c.b16 %v2621, %v2621
      %v2654 = vpack.c.b16 %v2622, %v2622
      %v2655 = vpack.c.b16 %v2623, %v2623
      %v2656 = vpack.c.b16 %v2624, %v2624
      %v2657 = vpack.c.b16 %v2625, %v2625
      %v2658 = vpack.c.b16 %v2626, %v2626
      %v2659 = vpack.c.b16 %v2627, %v2627
      %v2660 = vpack.c.b16 %v2628, %v2628
      %v2661 = vpack.c.b16 %v2629, %v2629
      %v2662 = vpack.c.b16 %v2630, %v2630
      %v2663 = vpack.c.b16 %v2631, %v2631
      %v2664 = vpack.c.b16 %v2632, %v2632
      %v2665 = vpack.c.b16 %v2633, %v2633
      %v2666 = vpack.c.b16 %v2634, %v2634
      %2667 = vrot.lane.b32.xlu0 %v2635, 28
      %v2668 = vpop.permute.xlu0 %2667
      %2669 = vrot.lane.b32.xlu0 %v2636, 28
      %v2670 = vpop.permute.xlu0 %2669
      %2671 = vrot.lane.b32.xlu0 %v2637, 28
      %v2672 = vpop.permute.xlu0 %2671
      %2673 = vrot.lane.b32.xlu0 %v2638, 28
      %v2674 = vpop.permute.xlu0 %2673
      %2675 = vrot.lane.b32.xlu0 %v2639, 28
      %v2676 = vpop.permute.xlu0 %2675
      %2677 = vrot.lane.b32.xlu0 %v2640, 28
      %v2678 = vpop.permute.xlu0 %2677
      %2679 = vrot.lane.b32.xlu0 %v2641, 28
      %v2680 = vpop.permute.xlu0 %2679
      %2681 = vrot.lane.b32.xlu0 %v2642, 28
      %v2682 = vpop.permute.xlu0 %2681
      %2683 = vrot.lane.b32.xlu0 %v2643, 28
      %v2684 = vpop.permute.xlu0 %2683
      %2685 = vrot.lane.b32.xlu0 %v2644, 28
      %v2686 = vpop.permute.xlu0 %2685
      %2687 = vrot.lane.b32.xlu0 %v2645, 28
      %v2688 = vpop.permute.xlu0 %2687
      %2689 = vrot.lane.b32.xlu0 %v2646, 28
      %v2690 = vpop.permute.xlu0 %2689
      %2691 = vrot.lane.b32.xlu0 %v2647, 28
      %v2692 = vpop.permute.xlu0 %2691
      %2693 = vrot.lane.b32.xlu0 %v2648, 28
      %v2694 = vpop.permute.xlu0 %2693
      %2695 = vrot.lane.b32.xlu0 %v2649, 28
      %v2696 = vpop.permute.xlu0 %2695
      %2697 = vrot.lane.b32.xlu0 %v2650, 28
      %v2698 = vpop.permute.xlu0 %2697
      %2699 = vrot.lane.b32.xlu0 %v2651, 28
      %v2700 = vpop.permute.xlu0 %2699
      %2701 = vrot.lane.b32.xlu0 %v2652, 28
      %v2702 = vpop.permute.xlu0 %2701
      %2703 = vrot.lane.b32.xlu0 %v2653, 28
      %v2704 = vpop.permute.xlu0 %2703
      %2705 = vrot.lane.b32.xlu0 %v2654, 28
      %v2706 = vpop.permute.xlu0 %2705
      %2707 = vrot.lane.b32.xlu0 %v2655, 28
      %v2708 = vpop.permute.xlu0 %2707
      %2709 = vrot.lane.b32.xlu0 %v2656, 28
      %v2710 = vpop.permute.xlu0 %2709
      %2711 = vrot.lane.b32.xlu0 %v2657, 28
      %v2712 = vpop.permute.xlu0 %2711
      %2713 = vrot.lane.b32.xlu0 %v2658, 28
      %v2714 = vpop.permute.xlu0 %2713
      %2715 = vrot.lane.b32.xlu0 %v2659, 28
      %v2716 = vpop.permute.xlu0 %2715
      %2717 = vrot.lane.b32.xlu0 %v2660, 28
      %v2718 = vpop.permute.xlu0 %2717
      %2719 = vrot.lane.b32.xlu0 %v2661, 28
      %v2720 = vpop.permute.xlu0 %2719
      %2721 = vrot.lane.b32.xlu0 %v2662, 28
      %v2722 = vpop.permute.xlu0 %2721
      %2723 = vrot.lane.b32.xlu0 %v2663, 28
      %v2724 = vpop.permute.xlu0 %2723
      %2725 = vrot.lane.b32.xlu0 %v2664, 28
      %v2726 = vpop.permute.xlu0 %2725
      %2727 = vrot.lane.b32.xlu0 %v2665, 28
      %v2728 = vpop.permute.xlu0 %2727
      %2729 = vrot.lane.b32.xlu0 %v2666, 28
      %v2730 = vpop.permute.xlu0 %2729
      %vm2763 = vcmask 257248
      %2764 = vst.msk [vmem:[#allocation3] sm:$0xf] %vm2763, %v2668
      %2765 = vst.msk [vmem:[#allocation3 + $0x4] sm:$0xf] %vm2763, %v2670
      %2766 = vst.msk [vmem:[#allocation3 + $0x8] sm:$0xf] %vm2763, %v2672
      %2767 = vst.msk [vmem:[#allocation3 + $0xc] sm:$0xf] %vm2763, %v2674
      %2768 = vst.msk [vmem:[#allocation3 + $0x10] sm:$0xf] %vm2763, %v2676
      %2769 = vst.msk [vmem:[#allocation3 + $0x14] sm:$0xf] %vm2763, %v2678
      %2770 = vst.msk [vmem:[#allocation3 + $0x18] sm:$0xf] %vm2763, %v2680
      %2771 = vst.msk [vmem:[#allocation3 + $0x1c] sm:$0xf] %vm2763, %v2682
      %2772 = vst.msk [vmem:[#allocation3 + $0x20] sm:$0xf] %vm2763, %v2684
      %2773 = vst.msk [vmem:[#allocation3 + $0x24] sm:$0xf] %vm2763, %v2686
      %2774 = vst.msk [vmem:[#allocation3 + $0x28] sm:$0xf] %vm2763, %v2688
      %2775 = vst.msk [vmem:[#allocation3 + $0x2c] sm:$0xf] %vm2763, %v2690
      %2776 = vst.msk [vmem:[#allocation3 + $0x30] sm:$0xf] %vm2763, %v2692
      %2777 = vst.msk [vmem:[#allocation3 + $0x34] sm:$0xf] %vm2763, %v2694
      %2778 = vst.msk [vmem:[#allocation3 + $0x38] sm:$0xf] %vm2763, %v2696
      %2779 = vst.msk [vmem:[#allocation3 + $0x3c] sm:$0xf] %vm2763, %v2698
      %2780 = vst.msk [vmem:[#allocation3 + $0x40] sm:$0xf] %vm2763, %v2700
      %2781 = vst.msk [vmem:[#allocation3 + $0x44] sm:$0xf] %vm2763, %v2702
      %2782 = vst.msk [vmem:[#allocation3 + $0x48] sm:$0xf] %vm2763, %v2704
      %2783 = vst.msk [vmem:[#allocation3 + $0x4c] sm:$0xf] %vm2763, %v2706
      %2784 = vst.msk [vmem:[#allocation3 + $0x50] sm:$0xf] %vm2763, %v2708
      %2785 = vst.msk [vmem:[#allocation3 + $0x54] sm:$0xf] %vm2763, %v2710
      %2786 = vst.msk [vmem:[#allocation3 + $0x58] sm:$0xf] %vm2763, %v2712
      %2787 = vst.msk [vmem:[#allocation3 + $0x5c] sm:$0xf] %vm2763, %v2714
      %2788 = vst.msk [vmem:[#allocation3 + $0x60] sm:$0xf] %vm2763, %v2716
      %2789 = vst.msk [vmem:[#allocation3 + $0x64] sm:$0xf] %vm2763, %v2718
      %2790 = vst.msk [vmem:[#allocation3 + $0x68] sm:$0xf] %vm2763, %v2720
      %2791 = vst.msk [vmem:[#allocation3 + $0x6c] sm:$0xf] %vm2763, %v2722
      %2792 = vst.msk [vmem:[#allocation3 + $0x70] sm:$0xf] %vm2763, %v2724
      %2793 = vst.msk [vmem:[#allocation3 + $0x74] sm:$0xf] %vm2763, %v2726
      %2794 = vst.msk [vmem:[#allocation3 + $0x78] sm:$0xf] %vm2763, %v2728
      %2795 = vst.msk [vmem:[#allocation3 + $0x7c] sm:$0xf] %vm2763, %v2730
      %v2796 = vld [vmem:[%s2281 + $0x2] sm:$0xff]
      %v2797 = vld [vmem:[%s2281 + $0xa] sm:$0xff]
      %v2798 = vld [vmem:[%s2281 + $0x1a] sm:$0xff]
      %v2799 = vld [vmem:[%s2281 + $0x22] sm:$0xff]
      %v2800 = vld [vmem:[%s2281 + $0x32] sm:$0xff]
      %v2801 = vld [vmem:[%s2281 + $0x3a] sm:$0xff]
      %v2802 = vld [vmem:[%s2281 + $0x4a] sm:$0xff]
      %v2803 = vld [vmem:[%s2281 + $0x52] sm:$0xff]
      %v2804 = vld [vmem:[%s2281 + $0x62] sm:$0xff]
      %v2805 = vld [vmem:[%s2281 + $0x6a] sm:$0xff]
      %v2806 = vld [vmem:[%s2281 + $0x7a] sm:$0xff]
      %v2807 = vld [vmem:[%s2281 + $0x82] sm:$0xff]
      %v2808 = vld [vmem:[%s2281 + $0x92] sm:$0xff]
      %v2809 = vld [vmem:[%s2281 + $0x9a] sm:$0xff]
      %v2810 = vld [vmem:[%s2281 + $0xaa] sm:$0xff]
      %v2811 = vld [vmem:[%s2281 + $0xb2] sm:$0xff]
      %v2812 = vld [vmem:[%s2281 + $0xc2] sm:$0xff]
      %v2813 = vld [vmem:[%s2281 + $0xca] sm:$0xff]
      %v2814 = vld [vmem:[%s2281 + $0xda] sm:$0xff]
      %v2815 = vld [vmem:[%s2281 + $0xe2] sm:$0xff]
      %v2816 = vld [vmem:[%s2281 + $0xf2] sm:$0xff]
      %v2817 = vld [vmem:[%s2281 + $0xfa] sm:$0xff]
      %v2818 = vld [vmem:[%s2281 + $0x10a] sm:$0xff]
      %v2819 = vld [vmem:[%s2281 + $0x112] sm:$0xff]
      %v2820 = vld [vmem:[%s2281 + $0x122] sm:$0xff]
      %v2821 = vld [vmem:[%s2281 + $0x12a] sm:$0xff]
      %v2822 = vld [vmem:[%s2281 + $0x13a] sm:$0xff]
      %v2823 = vld [vmem:[%s2281 + $0x142] sm:$0xff]
      %v2824 = vld [vmem:[%s2281 + $0x152] sm:$0xff]
      %v2825 = vld [vmem:[%s2281 + $0x15a] sm:$0xff]
      %v2826 = vld [vmem:[%s2281 + $0x16a] sm:$0xff]
      %v2827 = vld [vmem:[%s2281 + $0x172] sm:$0xff]
      %v2828 = vpack.c.bf16 %v2797, %v2796
      %v2829 = vpack.c.bf16 %v2799, %v2798
      %v2830 = vpack.c.bf16 %v2801, %v2800
      %v2831 = vpack.c.bf16 %v2803, %v2802
      %v2832 = vpack.c.bf16 %v2805, %v2804
      %v2833 = vpack.c.bf16 %v2807, %v2806
      %v2834 = vpack.c.bf16 %v2809, %v2808
      %v2835 = vpack.c.bf16 %v2811, %v2810
      %v2836 = vpack.c.bf16 %v2813, %v2812
      %v2837 = vpack.c.bf16 %v2815, %v2814
      %v2838 = vpack.c.bf16 %v2817, %v2816
      %v2839 = vpack.c.bf16 %v2819, %v2818
      %v2840 = vpack.c.bf16 %v2821, %v2820
      %v2841 = vpack.c.bf16 %v2823, %v2822
      %v2842 = vpack.c.bf16 %v2825, %v2824
      %v2843 = vpack.c.bf16 %v2827, %v2826
      %v2860 = vunpack.c.l.b16 %v2828
      %v2861 = vunpack.c.h.b16 %v2828
      %v2862 = vunpack.c.l.b16 %v2829
      %v2863 = vunpack.c.h.b16 %v2829
      %v2864 = vunpack.c.l.b16 %v2830
      %v2865 = vunpack.c.h.b16 %v2830
      %v2866 = vunpack.c.l.b16 %v2831
      %v2867 = vunpack.c.h.b16 %v2831
      %v2868 = vunpack.c.l.b16 %v2832
      %v2869 = vunpack.c.h.b16 %v2832
      %v2870 = vunpack.c.l.b16 %v2833
      %v2871 = vunpack.c.h.b16 %v2833
      %v2872 = vunpack.c.l.b16 %v2834
      %v2873 = vunpack.c.h.b16 %v2834
      %v2874 = vunpack.c.l.b16 %v2835
      %v2875 = vunpack.c.h.b16 %v2835
      %v2876 = vunpack.c.l.b16 %v2836
      %v2877 = vunpack.c.h.b16 %v2836
      %v2878 = vunpack.c.l.b16 %v2837
      %v2879 = vunpack.c.h.b16 %v2837
      %v2880 = vunpack.c.l.b16 %v2838
      %v2881 = vunpack.c.h.b16 %v2838
      %v2882 = vunpack.c.l.b16 %v2839
      %v2883 = vunpack.c.h.b16 %v2839
      %v2884 = vunpack.c.l.b16 %v2840
      %v2885 = vunpack.c.h.b16 %v2840
      %v2886 = vunpack.c.l.b16 %v2841
      %v2887 = vunpack.c.h.b16 %v2841
      %v2888 = vunpack.c.l.b16 %v2842
      %v2889 = vunpack.c.h.b16 %v2842
      %v2890 = vunpack.c.l.b16 %v2843
      %v2891 = vunpack.c.h.b16 %v2843
      %v2892 = vpack.c.b16 %v2860, %v2860
      %v2893 = vpack.c.b16 %v2861, %v2861
      %v2894 = vpack.c.b16 %v2862, %v2862
      %v2895 = vpack.c.b16 %v2863, %v2863
      %v2896 = vpack.c.b16 %v2864, %v2864
      %v2897 = vpack.c.b16 %v2865, %v2865
      %v2898 = vpack.c.b16 %v2866, %v2866
      %v2899 = vpack.c.b16 %v2867, %v2867
      %v2900 = vpack.c.b16 %v2868, %v2868
      %v2901 = vpack.c.b16 %v2869, %v2869
      %v2902 = vpack.c.b16 %v2870, %v2870
      %v2903 = vpack.c.b16 %v2871, %v2871
      %v2904 = vpack.c.b16 %v2872, %v2872
      %v2905 = vpack.c.b16 %v2873, %v2873
      %v2906 = vpack.c.b16 %v2874, %v2874
      %v2907 = vpack.c.b16 %v2875, %v2875
      %v2908 = vpack.c.b16 %v2876, %v2876
      %v2909 = vpack.c.b16 %v2877, %v2877
      %v2910 = vpack.c.b16 %v2878, %v2878
      %v2911 = vpack.c.b16 %v2879, %v2879
      %v2912 = vpack.c.b16 %v2880, %v2880
      %v2913 = vpack.c.b16 %v2881, %v2881
      %v2914 = vpack.c.b16 %v2882, %v2882
      %v2915 = vpack.c.b16 %v2883, %v2883
      %v2916 = vpack.c.b16 %v2884, %v2884
      %v2917 = vpack.c.b16 %v2885, %v2885
      %v2918 = vpack.c.b16 %v2886, %v2886
      %v2919 = vpack.c.b16 %v2887, %v2887
      %v2920 = vpack.c.b16 %v2888, %v2888
      %v2921 = vpack.c.b16 %v2889, %v2889
      %v2922 = vpack.c.b16 %v2890, %v2890
      %v2923 = vpack.c.b16 %v2891, %v2891
      %2924 = vrot.lane.b32.xlu0 %v2892, 32
      %v2925 = vpop.permute.xlu0 %2924
      %2926 = vrot.lane.b32.xlu0 %v2893, 32
      %v2927 = vpop.permute.xlu0 %2926
      %2928 = vrot.lane.b32.xlu0 %v2894, 32
      %v2929 = vpop.permute.xlu0 %2928
      %2930 = vrot.lane.b32.xlu0 %v2895, 32
      %v2931 = vpop.permute.xlu0 %2930
      %2932 = vrot.lane.b32.xlu0 %v2896, 32
      %v2933 = vpop.permute.xlu0 %2932
      %2934 = vrot.lane.b32.xlu0 %v2897, 32
      %v2935 = vpop.permute.xlu0 %2934
      %2936 = vrot.lane.b32.xlu0 %v2898, 32
      %v2937 = vpop.permute.xlu0 %2936
      %2938 = vrot.lane.b32.xlu0 %v2899, 32
      %v2939 = vpop.permute.xlu0 %2938
      %2940 = vrot.lane.b32.xlu0 %v2900, 32
      %v2941 = vpop.permute.xlu0 %2940
      %2942 = vrot.lane.b32.xlu0 %v2901, 32
      %v2943 = vpop.permute.xlu0 %2942
      %2944 = vrot.lane.b32.xlu0 %v2902, 32
      %v2945 = vpop.permute.xlu0 %2944
      %2946 = vrot.lane.b32.xlu0 %v2903, 32
      %v2947 = vpop.permute.xlu0 %2946
      %2948 = vrot.lane.b32.xlu0 %v2904, 32
      %v2949 = vpop.permute.xlu0 %2948
      %2950 = vrot.lane.b32.xlu0 %v2905, 32
      %v2951 = vpop.permute.xlu0 %2950
      %2952 = vrot.lane.b32.xlu0 %v2906, 32
      %v2953 = vpop.permute.xlu0 %2952
      %2954 = vrot.lane.b32.xlu0 %v2907, 32
      %v2955 = vpop.permute.xlu0 %2954
      %2956 = vrot.lane.b32.xlu0 %v2908, 32
      %v2957 = vpop.permute.xlu0 %2956
      %2958 = vrot.lane.b32.xlu0 %v2909, 32
      %v2959 = vpop.permute.xlu0 %2958
      %2960 = vrot.lane.b32.xlu0 %v2910, 32
      %v2961 = vpop.permute.xlu0 %2960
      %2962 = vrot.lane.b32.xlu0 %v2911, 32
      %v2963 = vpop.permute.xlu0 %2962
      %2964 = vrot.lane.b32.xlu0 %v2912, 32
      %v2965 = vpop.permute.xlu0 %2964
      %2966 = vrot.lane.b32.xlu0 %v2913, 32
      %v2967 = vpop.permute.xlu0 %2966
      %2968 = vrot.lane.b32.xlu0 %v2914, 32
      %v2969 = vpop.permute.xlu0 %2968
      %2970 = vrot.lane.b32.xlu0 %v2915, 32
      %v2971 = vpop.permute.xlu0 %2970
      %2972 = vrot.lane.b32.xlu0 %v2916, 32
      %v2973 = vpop.permute.xlu0 %2972
      %2974 = vrot.lane.b32.xlu0 %v2917, 32
      %v2975 = vpop.permute.xlu0 %2974
      %2976 = vrot.lane.b32.xlu0 %v2918, 32
      %v2977 = vpop.permute.xlu0 %2976
      %2978 = vrot.lane.b32.xlu0 %v2919, 32
      %v2979 = vpop.permute.xlu0 %2978
      %2980 = vrot.lane.b32.xlu0 %v2920, 32
      %v2981 = vpop.permute.xlu0 %2980
      %2982 = vrot.lane.b32.xlu0 %v2921, 32
      %v2983 = vpop.permute.xlu0 %2982
      %2984 = vrot.lane.b32.xlu0 %v2922, 32
      %v2985 = vpop.permute.xlu0 %2984
      %2986 = vrot.lane.b32.xlu0 %v2923, 32
      %v2987 = vpop.permute.xlu0 %2986
      %vm3020 = vcmask 290048
      %3021 = vst.msk [vmem:[#allocation3] sm:$0xf] %vm3020, %v2925
      %3022 = vst.msk [vmem:[#allocation3 + $0x4] sm:$0xf] %vm3020, %v2927
      %3023 = vst.msk [vmem:[#allocation3 + $0x8] sm:$0xf] %vm3020, %v2929
      %3024 = vst.msk [vmem:[#allocation3 + $0xc] sm:$0xf] %vm3020, %v2931
      %3025 = vst.msk [vmem:[#allocation3 + $0x10] sm:$0xf] %vm3020, %v2933
      %3026 = vst.msk [vmem:[#allocation3 + $0x14] sm:$0xf] %vm3020, %v2935
      %3027 = vst.msk [vmem:[#allocation3 + $0x18] sm:$0xf] %vm3020, %v2937
      %3028 = vst.msk [vmem:[#allocation3 + $0x1c] sm:$0xf] %vm3020, %v2939
      %3029 = vst.msk [vmem:[#allocation3 + $0x20] sm:$0xf] %vm3020, %v2941
      %3030 = vst.msk [vmem:[#allocation3 + $0x24] sm:$0xf] %vm3020, %v2943
      %3031 = vst.msk [vmem:[#allocation3 + $0x28] sm:$0xf] %vm3020, %v2945
      %3032 = vst.msk [vmem:[#allocation3 + $0x2c] sm:$0xf] %vm3020, %v2947
      %3033 = vst.msk [vmem:[#allocation3 + $0x30] sm:$0xf] %vm3020, %v2949
      %3034 = vst.msk [vmem:[#allocation3 + $0x34] sm:$0xf] %vm3020, %v2951
      %3035 = vst.msk [vmem:[#allocation3 + $0x38] sm:$0xf] %vm3020, %v2953
      %3036 = vst.msk [vmem:[#allocation3 + $0x3c] sm:$0xf] %vm3020, %v2955
      %3037 = vst.msk [vmem:[#allocation3 + $0x40] sm:$0xf] %vm3020, %v2957
      %3038 = vst.msk [vmem:[#allocation3 + $0x44] sm:$0xf] %vm3020, %v2959
      %3039 = vst.msk [vmem:[#allocation3 + $0x48] sm:$0xf] %vm3020, %v2961
      %3040 = vst.msk [vmem:[#allocation3 + $0x4c] sm:$0xf] %vm3020, %v2963
      %3041 = vst.msk [vmem:[#allocation3 + $0x50] sm:$0xf] %vm3020, %v2965
      %3042 = vst.msk [vmem:[#allocation3 + $0x54] sm:$0xf] %vm3020, %v2967
      %3043 = vst.msk [vmem:[#allocation3 + $0x58] sm:$0xf] %vm3020, %v2969
      %3044 = vst.msk [vmem:[#allocation3 + $0x5c] sm:$0xf] %vm3020, %v2971
      %3045 = vst.msk [vmem:[#allocation3 + $0x60] sm:$0xf] %vm3020, %v2973
      %3046 = vst.msk [vmem:[#allocation3 + $0x64] sm:$0xf] %vm3020, %v2975
      %3047 = vst.msk [vmem:[#allocation3 + $0x68] sm:$0xf] %vm3020, %v2977
      %3048 = vst.msk [vmem:[#allocation3 + $0x6c] sm:$0xf] %vm3020, %v2979
      %3049 = vst.msk [vmem:[#allocation3 + $0x70] sm:$0xf] %vm3020, %v2981
      %3050 = vst.msk [vmem:[#allocation3 + $0x74] sm:$0xf] %vm3020, %v2983
      %3051 = vst.msk [vmem:[#allocation3 + $0x78] sm:$0xf] %vm3020, %v2985
      %3052 = vst.msk [vmem:[#allocation3 + $0x7c] sm:$0xf] %vm3020, %v2987
      %v3053 = vld [vmem:[#allocation3] sm:$0xf]
      %v3054 = vld [vmem:[#allocation3 + $0x4] sm:$0xf]
      %v3055 = vld [vmem:[#allocation3 + $0x8] sm:$0xf]
      %v3056 = vld [vmem:[#allocation3 + $0xc] sm:$0xf]
      %v3057 = vld [vmem:[#allocation3 + $0x10] sm:$0xf]
      %v3058 = vld [vmem:[#allocation3 + $0x14] sm:$0xf]
      %v3059 = vld [vmem:[#allocation3 + $0x18] sm:$0xf]
      %v3060 = vld [vmem:[#allocation3 + $0x1c] sm:$0xf]
      %v3061 = vld [vmem:[#allocation3 + $0x20] sm:$0xf]
      %v3062 = vld [vmem:[#allocation3 + $0x24] sm:$0xf]
      %v3063 = vld [vmem:[#allocation3 + $0x28] sm:$0xf]
      %v3064 = vld [vmem:[#allocation3 + $0x2c] sm:$0xf]
      %v3065 = vld [vmem:[#allocation3 + $0x30] sm:$0xf]
      %v3066 = vld [vmem:[#allocation3 + $0x34] sm:$0xf]
      %v3067 = vld [vmem:[#allocation3 + $0x38] sm:$0xf]
      %v3068 = vld [vmem:[#allocation3 + $0x3c] sm:$0xf]
      %v3069 = vld [vmem:[#allocation3 + $0x40] sm:$0xf]
      %v3070 = vld [vmem:[#allocation3 + $0x44] sm:$0xf]
      %v3071 = vld [vmem:[#allocation3 + $0x48] sm:$0xf]
      %v3072 = vld [vmem:[#allocation3 + $0x4c] sm:$0xf]
      %v3073 = vld [vmem:[#allocation3 + $0x50] sm:$0xf]
      %v3074 = vld [vmem:[#allocation3 + $0x54] sm:$0xf]
      %v3075 = vld [vmem:[#allocation3 + $0x58] sm:$0xf]
      %v3076 = vld [vmem:[#allocation3 + $0x5c] sm:$0xf]
      %v3077 = vld [vmem:[#allocation3 + $0x60] sm:$0xf]
      %v3078 = vld [vmem:[#allocation3 + $0x64] sm:$0xf]
      %v3079 = vld [vmem:[#allocation3 + $0x68] sm:$0xf]
      %v3080 = vld [vmem:[#allocation3 + $0x6c] sm:$0xf]
      %v3081 = vld [vmem:[#allocation3 + $0x70] sm:$0xf]
      %v3082 = vld [vmem:[#allocation3 + $0x74] sm:$0xf]
      %v3083 = vld [vmem:[#allocation3 + $0x78] sm:$0xf]
      %v3084 = vld [vmem:[#allocation3 + $0x7c] sm:$0xf]
      %v3085 = vld [vmem:[%s3] sm:$0xf]
      %v3086 = vld [vmem:[%s3 + $0x4] sm:$0xf]
      %v3087 = vld [vmem:[%s3 + $0x8] sm:$0xf]
      %v3088 = vld [vmem:[%s3 + $0xc] sm:$0xf]
      %v3089 = vld [vmem:[%s3 + $0x10] sm:$0x3]
      %v3090 = vld [vmem:[%s4] sm:$0x1]
      %v3092 = vlaneseq
      %v3093 = vshrl.u32 %v3092, 7
      %v3094 = vsub.s32 0, %v3093
      %v3095 = vrot.slane %v3090, %v3094
      %v3129 = vunpack.c.l.b16 %v3053
      %v3130 = vunpack.c.l.b16 %v3054
      %v3131 = vunpack.c.l.b16 %v3055
      %v3132 = vunpack.c.l.b16 %v3056
      %v3133 = vunpack.c.l.b16 %v3057
      %v3134 = vunpack.c.l.b16 %v3058
      %v3135 = vunpack.c.l.b16 %v3059
      %v3136 = vunpack.c.l.b16 %v3060
      %v3137 = vunpack.c.l.b16 %v3061
      %v3138 = vunpack.c.l.b16 %v3062
      %v3139 = vunpack.c.l.b16 %v3063
      %v3140 = vunpack.c.l.b16 %v3064
      %v3141 = vunpack.c.l.b16 %v3065
      %v3142 = vunpack.c.l.b16 %v3066
      %v3143 = vunpack.c.l.b16 %v3067
      %v3144 = vunpack.c.l.b16 %v3068
      %v3145 = vunpack.c.l.b16 %v3069
      %v3146 = vunpack.c.l.b16 %v3070
      %v3147 = vunpack.c.l.b16 %v3071
      %v3148 = vunpack.c.l.b16 %v3072
      %v3149 = vunpack.c.l.b16 %v3073
      %v3150 = vunpack.c.l.b16 %v3074
      %v3151 = vunpack.c.l.b16 %v3075
      %v3152 = vunpack.c.l.b16 %v3076
      %v3153 = vunpack.c.l.b16 %v3077
      %v3154 = vunpack.c.l.b16 %v3078
      %v3155 = vunpack.c.l.b16 %v3079
      %v3156 = vunpack.c.l.b16 %v3080
      %v3157 = vunpack.c.l.b16 %v3081
      %v3158 = vunpack.c.l.b16 %v3082
      %v3159 = vunpack.c.l.b16 %v3083
      %v3160 = vunpack.c.l.b16 %v3084
      %v3161 = vpack.c.b16 %v3130, %v3129
      %v3162 = vpack.c.b16 %v3132, %v3131
      %v3163 = vpack.c.b16 %v3134, %v3133
      %v3164 = vpack.c.b16 %v3136, %v3135
      %v3165 = vpack.c.b16 %v3138, %v3137
      %v3166 = vpack.c.b16 %v3140, %v3139
      %v3167 = vpack.c.b16 %v3142, %v3141
      %v3168 = vpack.c.b16 %v3144, %v3143
      %v3169 = vpack.c.b16 %v3146, %v3145
      %v3170 = vpack.c.b16 %v3148, %v3147
      %v3171 = vpack.c.b16 %v3150, %v3149
      %v3172 = vpack.c.b16 %v3152, %v3151
      %v3173 = vpack.c.b16 %v3154, %v3153
      %v3174 = vpack.c.b16 %v3156, %v3155
      %v3175 = vpack.c.b16 %v3158, %v3157
      %v3176 = vpack.c.b16 %v3160, %v3159
      %v3182 = vunpack.c.l.b16 %v3085
      %v3183 = vunpack.c.l.b16 %v3086
      %v3184 = vunpack.c.l.b16 %v3087
      %v3185 = vunpack.c.l.b16 %v3088
      %v3186 = vunpack.c.l.b16 %v3089
      %v3187 = vpack.c.b16 %v3183, %v3182
      %v3188 = vpack.c.b16 %v3185, %v3184
      %v3189 = vpack.c.b16 %v3186, %v3186
      %vm3192 = vcmask 293888
      %v3194 = vsel %vm3192, %v3161, 0
      %v3197 = vsel %vm3192, %v3162, 0
      %v3200 = vsel %vm3192, %v3163, 0
      %v3203 = vsel %vm3192, %v3164, 0
      %v3206 = vsel %vm3192, %v3165, 0
      %v3209 = vsel %vm3192, %v3166, 0
      %v3212 = vsel %vm3192, %v3167, 0
      %v3215 = vsel %vm3192, %v3168, 0
      %v3218 = vsel %vm3192, %v3169, 0
      %v3221 = vsel %vm3192, %v3170, 0
      %v3224 = vsel %vm3192, %v3171, 0
      %v3227 = vsel %vm3192, %v3172, 0
      %v3230 = vsel %vm3192, %v3173, 0
      %v3233 = vsel %vm3192, %v3174, 0
      %v3236 = vsel %vm3192, %v3175, 0
      %v3239 = vsel %vm3192, %v3176, 0
      %vm3241 = vcmask 1041408
      %v3243 = vsel %vm3241, %v3189, 0
      %3245 = vmatprep.subr.bf16.mxu0 0
      %3246 = vmatpush1.bf16.msra.mxu0 0
      %3247 = vmatprep.subr.bf16.mxu0 0
      %3248 = vmatpush1.bf16.msra.mxu0 0
      %3249 = vmatprep.subr.bf16.mxu0 0
      %3250 = vmatpush1.bf16.msra.mxu0 0
      %3251 = vmatprep.subr.bf16.mxu0 0
      %3252 = vmatpush1.bf16.msra.mxu0 0
      %3253 = vmatprep.subr.bf16.mxu0 0
      %3254 = vmatpush1.bf16.msra.mxu0 0
      %3255 = vmatprep.subr.bf16.mxu0 0
      %3256 = vmatpush1.bf16.msra.mxu0 %v3243
      %3257 = vmatprep.subr.bf16.mxu0 0
      %3258 = vmatpush1.bf16.msra.mxu0 %v3188
      %3259 = vmatprep.subr.bf16.mxu0 0
      %3260 = vmatpush1.bf16.msra.mxu0 %v3187
      %3261 = vmatprep.subr.bf16.mxu0 0
      %3262 = vmatpush2.bf16.msra.mxu0 0
      %3263 = vmatprep.subr.bf16.mxu0 0
      %3264 = vmatpush2.bf16.msra.mxu0 0
      %3265 = vmatprep.subr.bf16.mxu0 0
      %3266 = vmatpush2.bf16.msra.mxu0 0
      %3267 = vmatprep.subr.bf16.mxu0 0
      %3268 = vmatpush2.bf16.msra.mxu0 0
      %3269 = vmatprep.subr.bf16.mxu0 0
      %3270 = vmatpush2.bf16.msra.mxu0 0
      %3271 = vmatprep.subr.bf16.mxu0 0
      %3272 = vmatpush2.bf16.msra.mxu0 0
      %3273 = vmatprep.subr.bf16.mxu0 0
      %3274 = vmatpush2.bf16.msra.mxu0 0
      %3275 = vmatprep.subr.bf16.mxu0 0
      %3276 = vmatpush2.bf16.msra.mxu0 0
      %3277 = vmatprep.mubr.bf16.mxu0 0
      %3278 = vmatmul.mubr.bf16.gmra.mxu0 %v3194
      %v3279 = vpop.f32.mrf.mxu0
      %v3280 = vadd.f32 %v3095, %v3279
      %v3281 = vpop.f32.mrf.mxu0
      %v3282 = vpop.f32.mrf.mxu0
      %v3283 = vadd.f32 %v3095, %v3282
      %v3284 = vpop.f32.mrf.mxu0
      %3285 = vmatprep.mubr.bf16.mxu0 0
      %3286 = vmatmul.mubr.bf16.gmra.mxu0 %v3197
      %v3287 = vpop.f32.mrf.mxu0
      %v3288 = vadd.f32 %v3095, %v3287
      %v3289 = vpop.f32.mrf.mxu0
      %v3290 = vpop.f32.mrf.mxu0
      %v3291 = vadd.f32 %v3095, %v3290
      %v3292 = vpop.f32.mrf.mxu0
      %3293 = vmatprep.mubr.bf16.mxu0 0
      %3294 = vmatmul.mubr.bf16.gmra.mxu0 %v3200
      %v3295 = vpop.f32.mrf.mxu0
      %v3296 = vadd.f32 %v3095, %v3295
      %v3297 = vpop.f32.mrf.mxu0
      %v3298 = vpop.f32.mrf.mxu0
      %v3299 = vadd.f32 %v3095, %v3298
      %v3300 = vpop.f32.mrf.mxu0
      %3301 = vmatprep.mubr.bf16.mxu0 0
      %3302 = vmatmul.mubr.bf16.gmra.mxu0 %v3203
      %v3303 = vpop.f32.mrf.mxu0
      %v3304 = vadd.f32 %v3095, %v3303
      %v3305 = vpop.f32.mrf.mxu0
      %v3306 = vpop.f32.mrf.mxu0
      %v3307 = vadd.f32 %v3095, %v3306
      %v3308 = vpop.f32.mrf.mxu0
      %3309 = vmatprep.mubr.bf16.mxu0 0
      %3310 = vmatmul.mubr.bf16.gmra.mxu0 %v3206
      %v3311 = vpop.f32.mrf.mxu0
      %v3312 = vadd.f32 %v3095, %v3311
      %v3313 = vpop.f32.mrf.mxu0
      %v3314 = vpop.f32.mrf.mxu0
      %v3315 = vadd.f32 %v3095, %v3314
      %v3316 = vpop.f32.mrf.mxu0
      %3317 = vmatprep.mubr.bf16.mxu0 0
      %3318 = vmatmul.mubr.bf16.gmra.mxu0 %v3209
      %v3319 = vpop.f32.mrf.mxu0
      %v3320 = vadd.f32 %v3095, %v3319
      %v3321 = vpop.f32.mrf.mxu0
      %v3322 = vpop.f32.mrf.mxu0
      %v3323 = vadd.f32 %v3095, %v3322
      %v3324 = vpop.f32.mrf.mxu0
      %3325 = vmatprep.mubr.bf16.mxu0 0
      %3326 = vmatmul.mubr.bf16.gmra.mxu0 %v3212
      %v3327 = vpop.f32.mrf.mxu0
      %v3328 = vadd.f32 %v3095, %v3327
      %v3329 = vpop.f32.mrf.mxu0
      %v3330 = vpop.f32.mrf.mxu0
      %v3331 = vadd.f32 %v3095, %v3330
      %v3332 = vpop.f32.mrf.mxu0
      %3333 = vmatprep.mubr.bf16.mxu0 0
      %3334 = vmatmul.mubr.bf16.gmra.mxu0 %v3215
      %v3335 = vpop.f32.mrf.mxu0
      %v3336 = vadd.f32 %v3095, %v3335
      %v3337 = vpop.f32.mrf.mxu0
      %v3338 = vpop.f32.mrf.mxu0
      %v3339 = vadd.f32 %v3095, %v3338
      %v3340 = vpop.f32.mrf.mxu0
      %3341 = vmatprep.mubr.bf16.mxu0 0
      %3342 = vmatmul.mubr.bf16.gmra.mxu0 %v3218
      %v3343 = vpop.f32.mrf.mxu0
      %v3344 = vadd.f32 %v3095, %v3343
      %v3345 = vpop.f32.mrf.mxu0
      %v3346 = vpop.f32.mrf.mxu0
      %v3347 = vadd.f32 %v3095, %v3346
      %v3348 = vpop.f32.mrf.mxu0
      %3349 = vmatprep.mubr.bf16.mxu0 0
      %3350 = vmatmul.mubr.bf16.gmra.mxu0 %v3221
      %v3351 = vpop.f32.mrf.mxu0
      %v3352 = vadd.f32 %v3095, %v3351
      %v3353 = vpop.f32.mrf.mxu0
      %v3354 = vpop.f32.mrf.mxu0
      %v3355 = vadd.f32 %v3095, %v3354
      %v3356 = vpop.f32.mrf.mxu0
      %3357 = vmatprep.mubr.bf16.mxu0 0
      %3358 = vmatmul.mubr.bf16.gmra.mxu0 %v3224
      %v3359 = vpop.f32.mrf.mxu0
      %v3360 = vadd.f32 %v3095, %v3359
      %v3361 = vpop.f32.mrf.mxu0
      %v3362 = vpop.f32.mrf.mxu0
      %v3363 = vadd.f32 %v3095, %v3362
      %v3364 = vpop.f32.mrf.mxu0
      %3365 = vmatprep.mubr.bf16.mxu0 0
      %3366 = vmatmul.mubr.bf16.gmra.mxu0 %v3227
      %v3367 = vpop.f32.mrf.mxu0
      %v3368 = vadd.f32 %v3095, %v3367
      %v3369 = vpop.f32.mrf.mxu0
      %v3370 = vpop.f32.mrf.mxu0
      %v3371 = vadd.f32 %v3095, %v3370
      %v3372 = vpop.f32.mrf.mxu0
      %3373 = vmatprep.mubr.bf16.mxu0 0
      %3374 = vmatmul.mubr.bf16.gmra.mxu0 %v3230
      %v3375 = vpop.f32.mrf.mxu0
      %v3376 = vadd.f32 %v3095, %v3375
      %v3377 = vpop.f32.mrf.mxu0
      %v3378 = vpop.f32.mrf.mxu0
      %v3379 = vadd.f32 %v3095, %v3378
      %v3380 = vpop.f32.mrf.mxu0
      %3381 = vmatprep.mubr.bf16.mxu0 0
      %3382 = vmatmul.mubr.bf16.gmra.mxu0 %v3233
      %v3383 = vpop.f32.mrf.mxu0
      %v3384 = vadd.f32 %v3095, %v3383
      %v3385 = vpop.f32.mrf.mxu0
      %v3386 = vpop.f32.mrf.mxu0
      %v3387 = vadd.f32 %v3095, %v3386
      %v3388 = vpop.f32.mrf.mxu0
      %3389 = vmatprep.mubr.bf16.mxu0 0
      %3390 = vmatmul.mubr.bf16.gmra.mxu0 %v3236
      %v3391 = vpop.f32.mrf.mxu0
      %v3392 = vadd.f32 %v3095, %v3391
      %v3393 = vpop.f32.mrf.mxu0
      %v3394 = vpop.f32.mrf.mxu0
      %v3395 = vadd.f32 %v3095, %v3394
      %v3396 = vpop.f32.mrf.mxu0
      %3397 = vmatprep.mubr.bf16.mxu0 0
      %3398 = vmatmul.mubr.bf16.gmra.mxu0 %v3239
      %v3399 = vpop.f32.mrf.mxu0
      %v3400 = vadd.f32 %v3095, %v3399
      %v3401 = vpop.f32.mrf.mxu0
      %v3402 = vpop.f32.mrf.mxu0
      %v3403 = vadd.f32 %v3095, %v3402
      %v3404 = vpop.f32.mrf.mxu0
      %3405 = vdwg.mxu0
      %v3406 = vmax.f32 %v3280, 0.0
      %v3407 = vmax.f32 %v3283, 0.0
      %v3408 = vmax.f32 %v3288, 0.0
      %v3409 = vmax.f32 %v3291, 0.0
      %v3410 = vmax.f32 %v3296, 0.0
      %v3411 = vmax.f32 %v3299, 0.0
      %v3412 = vmax.f32 %v3304, 0.0
      %v3413 = vmax.f32 %v3307, 0.0
      %v3414 = vmax.f32 %v3312, 0.0
      %v3415 = vmax.f32 %v3315, 0.0
      %v3416 = vmax.f32 %v3320, 0.0
      %v3417 = vmax.f32 %v3323, 0.0
      %v3418 = vmax.f32 %v3328, 0.0
      %v3419 = vmax.f32 %v3331, 0.0
      %v3420 = vmax.f32 %v3336, 0.0
      %v3421 = vmax.f32 %v3339, 0.0
      %v3422 = vmax.f32 %v3344, 0.0
      %v3423 = vmax.f32 %v3347, 0.0
      %v3424 = vmax.f32 %v3352, 0.0
      %v3425 = vmax.f32 %v3355, 0.0
      %v3426 = vmax.f32 %v3360, 0.0
      %v3427 = vmax.f32 %v3363, 0.0
      %v3428 = vmax.f32 %v3368, 0.0
      %v3429 = vmax.f32 %v3371, 0.0
      %v3430 = vmax.f32 %v3376, 0.0
      %v3431 = vmax.f32 %v3379, 0.0
      %v3432 = vmax.f32 %v3384, 0.0
      %v3433 = vmax.f32 %v3387, 0.0
      %v3434 = vmax.f32 %v3392, 0.0
      %v3435 = vmax.f32 %v3395, 0.0
      %v3436 = vmax.f32 %v3400, 0.0
      %v3437 = vmax.f32 %v3403, 0.0
      %v3438 = vpack.c.bf16 %v3407, %v3406
      %v3439 = vpack.c.bf16 %v3409, %v3408
      %v3440 = vpack.c.bf16 %v3411, %v3410
      %v3441 = vpack.c.bf16 %v3413, %v3412
      %v3442 = vpack.c.bf16 %v3415, %v3414
      %v3443 = vpack.c.bf16 %v3417, %v3416
      %v3444 = vpack.c.bf16 %v3419, %v3418
      %v3445 = vpack.c.bf16 %v3421, %v3420
      %v3446 = vpack.c.bf16 %v3423, %v3422
      %v3447 = vpack.c.bf16 %v3425, %v3424
      %v3448 = vpack.c.bf16 %v3427, %v3426
      %v3449 = vpack.c.bf16 %v3429, %v3428
      %v3450 = vpack.c.bf16 %v3431, %v3430
      %v3451 = vpack.c.bf16 %v3433, %v3432
      %v3452 = vpack.c.bf16 %v3435, %v3434
      %v3453 = vpack.c.bf16 %v3437, %v3436
      %v3454 = vld [vmem:[%s5] sm:$0x3]
      %v3455 = vld [vmem:[%s6] sm:$0x1]
      %v3457 = vlaneseq
      %v3458 = vshrl.u32 %v3457, 7
      %v3459 = vsub.s32 0, %v3458
      %v3460 = vrot.slane %v3455, %v3459
      %v3463 = vsel %vm746, %v3438, 0
      %v3466 = vsel %vm746, %v3439, 0
      %v3469 = vsel %vm746, %v3440, 0
      %v3472 = vsel %vm746, %v3441, 0
      %v3475 = vsel %vm746, %v3442, 0
      %v3478 = vsel %vm746, %v3443, 0
      %v3481 = vsel %vm746, %v3444, 0
      %v3484 = vsel %vm746, %v3445, 0
      %v3487 = vsel %vm746, %v3446, 0
      %v3490 = vsel %vm746, %v3447, 0
      %v3493 = vsel %vm746, %v3448, 0
      %v3496 = vsel %vm746, %v3449, 0
      %v3499 = vsel %vm746, %v3450, 0
      %v3502 = vsel %vm746, %v3451, 0
      %v3505 = vsel %vm746, %v3452, 0
      %v3508 = vsel %vm746, %v3453, 0
      %v3511 = vsel %vm3241, %v3454, 0
      %3513 = vmatprep.subr.bf16.mxu0 0
      %3514 = vmatpush1.bf16.msra.mxu0 0
      %3515 = vmatprep.subr.bf16.mxu0 0
      %3516 = vmatpush1.bf16.msra.mxu0 0
      %3517 = vmatprep.subr.bf16.mxu0 0
      %3518 = vmatpush1.bf16.msra.mxu0 0
      %3519 = vmatprep.subr.bf16.mxu0 0
      %3520 = vmatpush1.bf16.msra.mxu0 0
      %3521 = vmatprep.subr.bf16.mxu0 0
      %3522 = vmatpush1.bf16.msra.mxu0 0
      %3523 = vmatprep.subr.bf16.mxu0 0
      %3524 = vmatpush1.bf16.msra.mxu0 0
      %3525 = vmatprep.subr.bf16.mxu0 0
      %3526 = vmatpush1.bf16.msra.mxu0 0
      %3527 = vmatprep.subr.bf16.mxu0 0
      %3528 = vmatpush1.bf16.msra.mxu0 %v3511
      %3529 = vmatprep.subr.bf16.mxu0 0
      %3530 = vmatpush2.bf16.msra.mxu0 0
      %3531 = vmatprep.subr.bf16.mxu0 0
      %3532 = vmatpush2.bf16.msra.mxu0 0
      %3533 = vmatprep.subr.bf16.mxu0 0
      %3534 = vmatpush2.bf16.msra.mxu0 0
      %3535 = vmatprep.subr.bf16.mxu0 0
      %3536 = vmatpush2.bf16.msra.mxu0 0
      %3537 = vmatprep.subr.bf16.mxu0 0
      %3538 = vmatpush2.bf16.msra.mxu0 0
      %3539 = vmatprep.subr.bf16.mxu0 0
      %3540 = vmatpush2.bf16.msra.mxu0 0
      %3541 = vmatprep.subr.bf16.mxu0 0
      %3542 = vmatpush2.bf16.msra.mxu0 0
      %3543 = vmatprep.subr.bf16.mxu0 0
      %3544 = vmatpush2.bf16.msra.mxu0 0
      %3545 = vmatprep.mubr.bf16.mxu0 0
      %3546 = vmatmul.mubr.bf16.gmra.mxu0 %v3463
      %v3547 = vpop.f32.mrf.mxu0
      %v3548 = vadd.f32 %v3460, %v3547
      %v3549 = vpop.f32.mrf.mxu0
      %v3550 = vpop.f32.mrf.mxu0
      %v3551 = vadd.f32 %v3460, %v3550
      %v3552 = vpop.f32.mrf.mxu0
      %3553 = vmatprep.mubr.bf16.mxu0 0
      %3554 = vmatmul.mubr.bf16.gmra.mxu0 %v3466
      %v3555 = vpop.f32.mrf.mxu0
      %v3556 = vadd.f32 %v3460, %v3555
      %v3557 = vpop.f32.mrf.mxu0
      %v3558 = vpop.f32.mrf.mxu0
      %v3559 = vadd.f32 %v3460, %v3558
      %v3560 = vpop.f32.mrf.mxu0
      %3561 = vmatprep.mubr.bf16.mxu0 0
      %3562 = vmatmul.mubr.bf16.gmra.mxu0 %v3469
      %v3563 = vpop.f32.mrf.mxu0
      %v3564 = vadd.f32 %v3460, %v3563
      %v3565 = vpop.f32.mrf.mxu0
      %v3566 = vpop.f32.mrf.mxu0
      %v3567 = vadd.f32 %v3460, %v3566
      %v3568 = vpop.f32.mrf.mxu0
      %3569 = vmatprep.mubr.bf16.mxu0 0
      %3570 = vmatmul.mubr.bf16.gmra.mxu0 %v3472
      %v3571 = vpop.f32.mrf.mxu0
      %v3572 = vadd.f32 %v3460, %v3571
      %v3573 = vpop.f32.mrf.mxu0
      %v3574 = vpop.f32.mrf.mxu0
      %v3575 = vadd.f32 %v3460, %v3574
      %v3576 = vpop.f32.mrf.mxu0
      %3577 = vmatprep.mubr.bf16.mxu0 0
      %3578 = vmatmul.mubr.bf16.gmra.mxu0 %v3475
      %v3579 = vpop.f32.mrf.mxu0
      %v3580 = vadd.f32 %v3460, %v3579
      %v3581 = vpop.f32.mrf.mxu0
      %v3582 = vpop.f32.mrf.mxu0
      %v3583 = vadd.f32 %v3460, %v3582
      %v3584 = vpop.f32.mrf.mxu0
      %3585 = vmatprep.mubr.bf16.mxu0 0
      %3586 = vmatmul.mubr.bf16.gmra.mxu0 %v3478
      %v3587 = vpop.f32.mrf.mxu0
      %v3588 = vadd.f32 %v3460, %v3587
      %v3589 = vpop.f32.mrf.mxu0
      %v3590 = vpop.f32.mrf.mxu0
      %v3591 = vadd.f32 %v3460, %v3590
      %v3592 = vpop.f32.mrf.mxu0
      %3593 = vmatprep.mubr.bf16.mxu0 0
      %3594 = vmatmul.mubr.bf16.gmra.mxu0 %v3481
      %v3595 = vpop.f32.mrf.mxu0
      %v3596 = vadd.f32 %v3460, %v3595
      %v3597 = vpop.f32.mrf.mxu0
      %v3598 = vpop.f32.mrf.mxu0
      %v3599 = vadd.f32 %v3460, %v3598
      %v3600 = vpop.f32.mrf.mxu0
      %3601 = vmatprep.mubr.bf16.mxu0 0
      %3602 = vmatmul.mubr.bf16.gmra.mxu0 %v3484
      %v3603 = vpop.f32.mrf.mxu0
      %v3604 = vadd.f32 %v3460, %v3603
      %v3605 = vpop.f32.mrf.mxu0
      %v3606 = vpop.f32.mrf.mxu0
      %v3607 = vadd.f32 %v3460, %v3606
      %v3608 = vpop.f32.mrf.mxu0
      %3609 = vmatprep.mubr.bf16.mxu0 0
      %3610 = vmatmul.mubr.bf16.gmra.mxu0 %v3487
      %v3611 = vpop.f32.mrf.mxu0
      %v3612 = vadd.f32 %v3460, %v3611
      %v3613 = vpop.f32.mrf.mxu0
      %v3614 = vpop.f32.mrf.mxu0
      %v3615 = vadd.f32 %v3460, %v3614
      %v3616 = vpop.f32.mrf.mxu0
      %3617 = vmatprep.mubr.bf16.mxu0 0
      %3618 = vmatmul.mubr.bf16.gmra.mxu0 %v3490
      %v3619 = vpop.f32.mrf.mxu0
      %v3620 = vadd.f32 %v3460, %v3619
      %v3621 = vpop.f32.mrf.mxu0
      %v3622 = vpop.f32.mrf.mxu0
      %v3623 = vadd.f32 %v3460, %v3622
      %v3624 = vpop.f32.mrf.mxu0
      %3625 = vmatprep.mubr.bf16.mxu0 0
      %3626 = vmatmul.mubr.bf16.gmra.mxu0 %v3493
      %v3627 = vpop.f32.mrf.mxu0
      %v3628 = vadd.f32 %v3460, %v3627
      %v3629 = vpop.f32.mrf.mxu0
      %v3630 = vpop.f32.mrf.mxu0
      %v3631 = vadd.f32 %v3460, %v3630
      %v3632 = vpop.f32.mrf.mxu0
      %3633 = vmatprep.mubr.bf16.mxu0 0
      %3634 = vmatmul.mubr.bf16.gmra.mxu0 %v3496
      %v3635 = vpop.f32.mrf.mxu0
      %v3636 = vadd.f32 %v3460, %v3635
      %v3637 = vpop.f32.mrf.mxu0
      %v3638 = vpop.f32.mrf.mxu0
      %v3639 = vadd.f32 %v3460, %v3638
      %v3640 = vpop.f32.mrf.mxu0
      %3641 = vmatprep.mubr.bf16.mxu0 0
      %3642 = vmatmul.mubr.bf16.gmra.mxu0 %v3499
      %v3643 = vpop.f32.mrf.mxu0
      %v3644 = vadd.f32 %v3460, %v3643
      %v3645 = vpop.f32.mrf.mxu0
      %v3646 = vpop.f32.mrf.mxu0
      %v3647 = vadd.f32 %v3460, %v3646
      %v3648 = vpop.f32.mrf.mxu0
      %3649 = vmatprep.mubr.bf16.mxu0 0
      %3650 = vmatmul.mubr.bf16.gmra.mxu0 %v3502
      %v3651 = vpop.f32.mrf.mxu0
      %v3652 = vadd.f32 %v3460, %v3651
      %v3653 = vpop.f32.mrf.mxu0
      %v3654 = vpop.f32.mrf.mxu0
      %v3655 = vadd.f32 %v3460, %v3654
      %v3656 = vpop.f32.mrf.mxu0
      %3657 = vmatprep.mubr.bf16.mxu0 0
      %3658 = vmatmul.mubr.bf16.gmra.mxu0 %v3505
      %v3659 = vpop.f32.mrf.mxu0
      %v3660 = vadd.f32 %v3460, %v3659
      %v3661 = vpop.f32.mrf.mxu0
      %v3662 = vpop.f32.mrf.mxu0
      %v3663 = vadd.f32 %v3460, %v3662
      %v3664 = vpop.f32.mrf.mxu0
      %3665 = vmatprep.mubr.bf16.mxu0 0
      %3666 = vmatmul.mubr.bf16.gmra.mxu0 %v3508
      %v3667 = vpop.f32.mrf.mxu0
      %v3668 = vadd.f32 %v3460, %v3667
      %v3669 = vpop.f32.mrf.mxu0
      %v3670 = vpop.f32.mrf.mxu0
      %v3671 = vadd.f32 %v3460, %v3670
      %v3672 = vpop.f32.mrf.mxu0
      %3673 = vdwg.mxu0
      %v3674 = vadd.f32 %v3548, %v280
      %v3675 = vadd.f32 %v3551, %v281
      %v3676 = vadd.f32 %v3556, %v282
      %v3677 = vadd.f32 %v3559, %v283
      %v3678 = vadd.f32 %v3564, %v284
      %v3679 = vadd.f32 %v3567, %v285
      %v3680 = vadd.f32 %v3572, %v286
      %v3681 = vadd.f32 %v3575, %v287
      %v3682 = vadd.f32 %v3580, %v288
      %v3683 = vadd.f32 %v3583, %v289
      %v3684 = vadd.f32 %v3588, %v290
      %v3685 = vadd.f32 %v3591, %v291
      %v3686 = vadd.f32 %v3596, %v292
      %v3687 = vadd.f32 %v3599, %v293
      %v3688 = vadd.f32 %v3604, %v294
      %v3689 = vadd.f32 %v3607, %v295
      %v3690 = vadd.f32 %v3612, %v296
      %v3691 = vadd.f32 %v3615, %v297
      %v3692 = vadd.f32 %v3620, %v298
      %v3693 = vadd.f32 %v3623, %v299
      %v3694 = vadd.f32 %v3628, %v300
      %v3695 = vadd.f32 %v3631, %v301
      %v3696 = vadd.f32 %v3636, %v302
      %v3697 = vadd.f32 %v3639, %v303
      %v3698 = vadd.f32 %v3644, %v304
      %v3699 = vadd.f32 %v3647, %v305
      %v3700 = vadd.f32 %v3652, %v306
      %v3701 = vadd.f32 %v3655, %v307
      %v3702 = vadd.f32 %v3660, %v308
      %v3703 = vadd.f32 %v3663, %v309
      %v3704 = vadd.f32 %v3668, %v310
      %v3705 = vadd.f32 %v3671, %v311
      %v3706 = vmax.f32 %v3674, 0.0
      %v3707 = vmax.f32 %v3675, 0.0
      %v3708 = vmax.f32 %v3676, 0.0
      %v3709 = vmax.f32 %v3677, 0.0
      %v3710 = vmax.f32 %v3678, 0.0
      %v3711 = vmax.f32 %v3679, 0.0
      %v3712 = vmax.f32 %v3680, 0.0
      %v3713 = vmax.f32 %v3681, 0.0
      %v3714 = vmax.f32 %v3682, 0.0
      %v3715 = vmax.f32 %v3683, 0.0
      %v3716 = vmax.f32 %v3684, 0.0
      %v3717 = vmax.f32 %v3685, 0.0
      %v3718 = vmax.f32 %v3686, 0.0
      %v3719 = vmax.f32 %v3687, 0.0
      %v3720 = vmax.f32 %v3688, 0.0
      %v3721 = vmax.f32 %v3689, 0.0
      %v3722 = vmax.f32 %v3690, 0.0
      %v3723 = vmax.f32 %v3691, 0.0
      %v3724 = vmax.f32 %v3692, 0.0
      %v3725 = vmax.f32 %v3693, 0.0
      %v3726 = vmax.f32 %v3694, 0.0
      %v3727 = vmax.f32 %v3695, 0.0
      %v3728 = vmax.f32 %v3696, 0.0
      %v3729 = vmax.f32 %v3697, 0.0
      %v3730 = vmax.f32 %v3698, 0.0
      %v3731 = vmax.f32 %v3699, 0.0
      %v3732 = vmax.f32 %v3700, 0.0
      %v3733 = vmax.f32 %v3701, 0.0
      %v3734 = vmax.f32 %v3702, 0.0
      %v3735 = vmax.f32 %v3703, 0.0
      %v3736 = vmax.f32 %v3704, 0.0
      %v3737 = vmax.f32 %v3705, 0.0
      %3738 = vst.msk [vmem:[%s278] sm:$0xff] %vm343, %v3706
      %3739 = vst.msk [vmem:[%s278 + $0x8] sm:$0xff] %vm343, %v3707
      %3740 = vst.msk [vmem:[%s278 + $0x10] sm:$0xff] %vm343, %v3708
      %3741 = vst.msk [vmem:[%s278 + $0x18] sm:$0xff] %vm343, %v3709
      %3742 = vst.msk [vmem:[%s278 + $0x20] sm:$0xff] %vm343, %v3710
      %3743 = vst.msk [vmem:[%s278 + $0x28] sm:$0xff] %vm343, %v3711
      %3744 = vst.msk [vmem:[%s278 + $0x30] sm:$0xff] %vm343, %v3712
      %3745 = vst.msk [vmem:[%s278 + $0x38] sm:$0xff] %vm343, %v3713
      %3746 = vst.msk [vmem:[%s278 + $0x40] sm:$0xff] %vm343, %v3714
      %3747 = vst.msk [vmem:[%s278 + $0x48] sm:$0xff] %vm343, %v3715
      %3748 = vst.msk [vmem:[%s278 + $0x50] sm:$0xff] %vm343, %v3716
      %3749 = vst.msk [vmem:[%s278 + $0x58] sm:$0xff] %vm343, %v3717
      %3750 = vst.msk [vmem:[%s278 + $0x60] sm:$0xff] %vm343, %v3718
      %3751 = vst.msk [vmem:[%s278 + $0x68] sm:$0xff] %vm343, %v3719
      %3752 = vst.msk [vmem:[%s278 + $0x70] sm:$0xff] %vm343, %v3720
      %3753 = vst.msk [vmem:[%s278 + $0x78] sm:$0xff] %vm343, %v3721
      %3754 = vst.msk [vmem:[%s278 + $0x80] sm:$0xff] %vm343, %v3722
      %3755 = vst.msk [vmem:[%s278 + $0x88] sm:$0xff] %vm343, %v3723
      %3756 = vst.msk [vmem:[%s278 + $0x90] sm:$0xff] %vm343, %v3724
      %3757 = vst.msk [vmem:[%s278 + $0x98] sm:$0xff] %vm343, %v3725
      %3758 = vst.msk [vmem:[%s278 + $0xa0] sm:$0xff] %vm343, %v3726
      %3759 = vst.msk [vmem:[%s278 + $0xa8] sm:$0xff] %vm343, %v3727
      %3760 = vst.msk [vmem:[%s278 + $0xb0] sm:$0xff] %vm343, %v3728
      %3761 = vst.msk [vmem:[%s278 + $0xb8] sm:$0xff] %vm343, %v3729
      %3762 = vst.msk [vmem:[%s278 + $0xc0] sm:$0xff] %vm343, %v3730
      %3763 = vst.msk [vmem:[%s278 + $0xc8] sm:$0xff] %vm343, %v3731
      %3764 = vst.msk [vmem:[%s278 + $0xd0] sm:$0xff] %vm343, %v3732
      %3765 = vst.msk [vmem:[%s278 + $0xd8] sm:$0xff] %vm343, %v3733
      %3766 = vst.msk [vmem:[%s278 + $0xe0] sm:$0xff] %vm343, %v3734
      %3767 = vst.msk [vmem:[%s278 + $0xe8] sm:$0xff] %vm343, %v3735
      %3768 = vst.msk [vmem:[%s278 + $0xf0] sm:$0xff] %vm343, %v3736
      %3769 = vst.msk [vmem:[%s278 + $0xf8] sm:$0xff] %vm343, %v3737
      %p3770 = scmp.lt.s32.totalorder %s18, 1
      %s3771 = scalar_select %p3770, %s18, 1
      %s3772 = smul.addr %s3771, 32
      %s3773 = smul.addr %s3772, 8
      %s3774 = scalar_lea.vmem %s7, %s3773
      // Predicated region
      $region49: #{tpu_custom_call.1} parent=47 // pred_check
        %p3775 = pneg %p188
      $region50: #{tpu_custom_call.1} parent=47 // pred_check_branch
        %3777 = sbr.rel (%p3775) target = $region52
      $region51: #{tpu_custom_call.1} parent=47 // pred_region
        _
      $region52: #{tpu_custom_call.1} parent=47 // pred_fallthru
        _
    $region48: #{tpu_custom_call.1} parent=5 // pred_fallthru
      _
    %p3778 = scmp.le.s32.totalorder 2, %s13
    // Predicated region
    $region53: #{tpu_custom_call.1} parent=5 // pred_check
      %p3779 = pneg %p3778
    $region54: #{tpu_custom_call.1} parent=5 // pred_check_branch
      %3781 = sbr.rel (%p3779) target = $region56
    $region55: #{tpu_custom_call.1} parent=5 // pred_region
      %s3782 = ssub.s32 %s13, 2
      // Predicated region
      $region57: #{tpu_custom_call.1} parent=55 // pred_check
        %p3783 = pneg %p194
      $region58: #{tpu_custom_call.1} parent=55 // pred_check_branch
        %3785 = sbr.rel (%p3783) target = $region60
      $region59: #{tpu_custom_call.1} parent=55 // pred_region
        %p3786 = scmp.lt.s32.totalorder %s19, 1
        %s3787 = scalar_select %p3786, %s19, 1
        %s3788 = smul.addr %s3787, 32
        %s3789 = smul.addr %s3788, 8
        %s3790 = scalar_lea.vmem %s7, %s3789
      $region60: #{tpu_custom_call.1} parent=55 // pred_fallthru
        _
    $region56: #{tpu_custom_call.1} parent=5 // pred_fallthru
      _
  $region6: #{tpu_custom_call.1} parent=0 // loop_footer
    %s17 = sadd.s32 1, %s13
  $region7: #{tpu_custom_call.1} parent=0 // loop_footer_branch
    %12 = sbr.rel target = $region3
  $region8: #{tpu_custom_call.1} parent=0 // loop_exit
    _

</llo_original>
